<compile_context>
chip_gen: v7x
topology: tpu7x:2x2x1
jax: 0.10.0
libtpu: 0.0.40
codegen_flags: <defaults>
</compile_context>

<pallas_src>
import jax
import jax.numpy as jnp
from jax.experimental import pallas as pl
from jax.experimental.pallas import tpu as pltpu  # noqa: F401  (TPU backend)


def _sigmoid(x):
    return 1.0 / (1.0 + jnp.exp(-x))


def _softmax_lastdim(x):
    x = x - jnp.max(x, axis=-1, keepdims=True)
    e = jnp.exp(x)
    return e * pl.reciprocal(jnp.sum(e, axis=-1, keepdims=True), approx=True)


def _l2norm(x, eps=1e-8):
    return x / (jnp.sqrt(jnp.sum(x * x, axis=-1, keepdims=True)) + eps)


def gated_fusion_kernel(
    v1_ref, v2_ref,
    wk_img_ref, wk_txt_ref, wq_img_ref, wq_txt_ref,
    wwk_img_ref, wwk_txt_ref, wwq_img_ref, wwq_txt_ref,
    fc1_w_ref, fc2_w_ref,
    out_w1_ref, out_b1_ref, out_w2_ref, out_b2_ref,
    sa1_w1_ref, sa1_b1_ref, sa1_w2_ref, sa1_b2_ref,
    sa2_w1_ref, sa2_b1_ref, sa2_w2_ref, sa2_b2_ref,
    score_ref,
):
    B1, S1, D = v1_ref.shape
    B2, S2, _ = v2_ref.shape
    P = B1 * B2
    inv_scale = 1.0 / (D ** 0.5)
    f32 = jnp.float32

    v1 = v1_ref[...].astype(f32)          # (B1, S1, D)
    v2 = v2_ref[...].astype(f32)          # (B2, S2, D)

    # ---- per-modality key/query projections: flatten (B, S) -> M, one matmul each
    v1f = v1.reshape(B1 * S1, D)
    v2f = v2.reshape(B2 * S2, D)
    k1 = jnp.dot(v1f, wk_img_ref[...], preferred_element_type=f32).reshape(B1, S1, D)
    q1 = jnp.dot(v1f, wq_img_ref[...], preferred_element_type=f32).reshape(B1, S1, D)
    k2 = jnp.dot(v2f, wk_txt_ref[...], preferred_element_type=f32).reshape(B2, S2, D)
    q2 = jnp.dot(v2f, wq_txt_ref[...], preferred_element_type=f32).reshape(B2, S2, D)

    # ---- expand to all (i, j) image/text pairs, flattened to one batch axis P
    def expand_img(x):   # (B1, S1, D) -> (P, S1, D); pair p = i*B2 + j -> x[i]
        return jnp.broadcast_to(x[:, None, :, :], (B1, B2, S1, D)).reshape(P, S1, D)

    def expand_txt(x):   # (B2, S2, D) -> (P, S2, D); pair p = i*B2 + j -> x[j]
        return jnp.broadcast_to(x[None, :, :, :], (B1, B2, S2, D)).reshape(P, S2, D)

    v1e, k1e, q1e = expand_img(v1), expand_img(k1), expand_img(q1)
    v2e, k2e, q2e = expand_txt(v2), expand_txt(k2), expand_txt(q2)

    def attend(q, k, v):   # qkv_attention; K^T folded into the dot dimension numbers
        s = jnp.einsum("bqd,bkd->bqk", q, k, preferred_element_type=f32) * inv_scale
        return jnp.einsum("bqk,bkd->bqd", _softmax_lastdim(s), v,
                          preferred_element_type=f32)

    weighted_v1 = attend(q2e, k1e, v1e)          # (P, S2, D)
    weighted_v2 = attend(q1e, k2e, v2e)          # (P, S1, D)

    # ---- second-stage projections (flattened again to fill the MXU M dim)
    wv1f = weighted_v1.reshape(P * S2, D)
    wv2f = weighted_v2.reshape(P * S1, D)
    wv2_q = jnp.dot(wv2f, wwq_txt_ref[...], preferred_element_type=f32).reshape(P, S1, D)
    wv2_k = jnp.dot(wv2f, wwk_txt_ref[...], preferred_element_type=f32).reshape(P, S1, D)
    wv1_q = jnp.dot(wv1f, wwq_img_ref[...], preferred_element_type=f32).reshape(P, S2, D)
    wv1_k = jnp.dot(wv1f, wwk_img_ref[...], preferred_element_type=f32).reshape(P, S2, D)

    fused_v1 = _l2norm(attend(wv2_q, wv2_k, weighted_v2))   # (P, S1, D)
    fused_v2 = _l2norm(attend(wv1_q, wv1_k, weighted_v1))   # (P, S2, D)

    # ---- gated concat fusion + fc_1 / fc_2 + residual (Dropout: inference no-op)
    gate1 = _sigmoid(jnp.sum(v1e * fused_v1, axis=-1, keepdims=True))   # (P, S1, 1)
    gate2 = _sigmoid(jnp.sum(v2e * fused_v2, axis=-1, keepdims=True))   # (P, S2, 1)
    co1 = jnp.concatenate([v1e, fused_v1], axis=-1) * gate1             # (P, S1, 2D)
    co2 = jnp.concatenate([v2e, fused_v2], axis=-1) * gate2             # (P, S2, 2D)
    co1 = jnp.maximum(
        jnp.dot(co1.reshape(P * S1, 2 * D), fc1_w_ref[...], preferred_element_type=f32),
        0.0).reshape(P, S1, D) + v1e
    co2 = jnp.maximum(
        jnp.dot(co2.reshape(P * S2, 2 * D), fc2_w_ref[...], preferred_element_type=f32),
        0.0).reshape(P, S2, D) + v2e

    # ---- SummaryAttn reduce (is_cat=False), head-mean folded into the matmul
    def summary_reduce(x, w1, b1, w2, b2):
        Pb, S, Dx = x.shape
        h = jnp.maximum(
            jnp.dot(x.reshape(Pb * S, Dx), w1, preferred_element_type=f32) + b1, 0.0)
        sc = (jnp.dot(h, w2, preferred_element_type=f32) + b2).reshape(Pb, S, -1)  # (P,S,H)
        # softmax over the sequence axis directly (no (S,H)->(H,S) transpose)
        sc = sc - jnp.max(sc, axis=1, keepdims=True)
        e = jnp.exp(sc)
        p = e * pl.reciprocal(jnp.sum(e, axis=1, keepdims=True), approx=True)      # (P,S,H)
        pbar = jnp.mean(p, axis=-1, keepdims=True)                                 # (P,S,1)
        return jnp.sum(pbar * x, axis=1)                                           # (P,D)

    r1 = _l2norm(summary_reduce(co1, sa1_w1_ref[...], sa1_b1_ref[...],
                                sa1_w2_ref[...], sa1_b2_ref[...]))
    r2 = _l2norm(summary_reduce(co2, sa2_w1_ref[...], sa2_b1_ref[...],
                                sa2_w2_ref[...], sa2_b2_ref[...]))

    # ---- fc_out: Linear(2D, D) + ReLU + Linear(D, 1) + Sigmoid
    feat = jnp.concatenate([r1, r2], axis=-1)                                      # (P, 2D)
    hid = jnp.maximum(
        jnp.dot(feat, out_w1_ref[...], preferred_element_type=f32) + out_b1_ref[...], 0.0)
    logit = jnp.dot(hid, out_w2_ref[...], preferred_element_type=f32) + out_b2_ref[...]
    score_ref[...] = _sigmoid(logit).astype(score_ref.dtype)                       # (P, 1)


def gated_fusion(v1, v2, prm):
    """GatedFusionNew.forward(v1, v2, get_score=True) -> (B1, B2) score matrix."""
    B1, S1, D = v1.shape
    B2, S2, _ = v2.shape
    P = B1 * B2
    H = prm["sa1_w2"].shape[1]

    args = (
        v1, v2,
        prm["wk_img"], prm["wk_txt"], prm["wq_img"], prm["wq_txt"],
        prm["wwk_img"], prm["wwk_txt"], prm["wwq_img"], prm["wwq_txt"],
        prm["fc1_w"], prm["fc2_w"],
        prm["out_w1"], prm["out_b1"], prm["out_w2"], prm["out_b2"],
        prm["sa1_w1"], prm["sa1_b1"], prm["sa1_w2"], prm["sa1_b2"],
        prm["sa2_w1"], prm["sa2_b1"], prm["sa2_w2"], prm["sa2_b2"],
    )

    # rough cost estimate so XLA schedules the surrounding graph sensibly
    flops = (
        4 * D * D * (B1 * S1 + B2 * S2)            # key/query projections
        + P * 8 * S1 * S2 * D                      # two cross attentions
        + 4 * D * D * P * (S1 + S2)                # weighted_* projections
        + P * 4 * D * (S1 * S1 + S2 * S2)          # two fused self attentions
        + 4 * D * D * P * (S1 + S2)                # fc_1 / fc_2
        + P * (S1 + S2) * (2 * D * D + 2 * D * H)  # SummaryAttn linears
        + P * 2 * D * (S1 + S2)                    # SummaryAttn apply
        + P * (4 * D * D + 2 * D)                  # fc_out
    )
    transcendentals = P * (2 * S1 * S2 + S1 * S1 + S2 * S2 + (S1 + S2) * (H + 1) + 1)
    bytes_accessed = 4 * (sum(int(a.size) for a in args) + P)

    out = pl.pallas_call(
        gated_fusion_kernel,
        out_shape=jax.ShapeDtypeStruct((P, 1), v1.dtype),
        cost_estimate=pl.CostEstimate(
            flops=int(flops),
            transcendentals=int(transcendentals),
            bytes_accessed=int(bytes_accessed),
        ),
    )(*args)
    return out.reshape(B1, B2)


def gated_fusion_ref(v1, v2, prm):
    """Pure-JAX reference mirroring the PyTorch forward (eval mode)."""
    B1, S1, D = v1.shape
    B2, S2, _ = v2.shape

    def l2n(x, eps=1e-8):
        return x / (jnp.sqrt(jnp.sum(x * x, axis=-1, keepdims=True)) + eps)

    def attn(q, k, v):
        s = jnp.einsum("...qd,...kd->...qk", q, k) / (D ** 0.5)
        return jnp.einsum("...qk,...kd->...qd", jax.nn.softmax(s, axis=-1), v)

    k1 = v1 @ prm["wk_img"]; q1 = v1 @ prm["wq_img"]
    k2 = v2 @ prm["wk_txt"]; q2 = v2 @ prm["wq_txt"]
    ex1 = lambda x: jnp.broadcast_to(x[:, None], (B1, B2, S1, D))
    ex2 = lambda x: jnp.broadcast_to(x[None], (B1, B2, S2, D))
    v1e, k1e, q1e = ex1(v1), ex1(k1), ex1(q1)
    v2e, k2e, q2e = ex2(v2), ex2(k2), ex2(q2)

    weighted_v1 = attn(q2e, k1e, v1e)
    weighted_v2 = attn(q1e, k2e, v2e)
    wv2_q = weighted_v2 @ prm["wwq_txt"]; wv2_k = weighted_v2 @ prm["wwk_txt"]
    wv1_q = weighted_v1 @ prm["wwq_img"]; wv1_k = weighted_v1 @ prm["wwk_img"]
    fused_v1 = l2n(attn(wv2_q, wv2_k, weighted_v2))
    fused_v2 = l2n(attn(wv1_q, wv1_k, weighted_v1))

    g1 = jax.nn.sigmoid(jnp.sum(v1e * fused_v1, -1, keepdims=True))
    g2 = jax.nn.sigmoid(jnp.sum(v2e * fused_v2, -1, keepdims=True))
    co1 = jnp.concatenate([v1e, fused_v1], -1) * g1
    co2 = jnp.concatenate([v2e, fused_v2], -1) * g2
    co1 = jax.nn.relu(co1 @ prm["fc1_w"]) + v1e
    co2 = jax.nn.relu(co2 @ prm["fc2_w"]) + v2e

    def summary(x, w1, b1, w2, b2):
        h = jax.nn.relu(x @ w1 + b1)
        sc = jnp.swapaxes(h @ w2 + b2, -2, -1)          # (..., H, S)
        p = jax.nn.softmax(sc, axis=-1)
        return jnp.einsum("...hs,...sd->...hd", p, x).mean(axis=-2)

    r1 = l2n(summary(co1, prm["sa1_w1"], prm["sa1_b1"], prm["sa1_w2"], prm["sa1_b2"]))
    r2 = l2n(summary(co2, prm["sa2_w1"], prm["sa2_b1"], prm["sa2_w2"], prm["sa2_b2"]))

    feat = jnp.concatenate([r1, r2], -1)
    hid = jax.nn.relu(feat @ prm["out_w1"] + prm["out_b1"])
    return jax.nn.sigmoid(hid @ prm["out_w2"] + prm["out_b2"])[..., 0]   # (B1, B2)


if __name__ == "__main__":
    D, H = 32, 4            # dim, num_attn
    B1, S1 = 2, 8           # image batch, regions per image
    B2, S2 = 2, 8           # caption batch, words per caption

    key = jax.random.PRNGKey(0)
    kit = iter(jax.random.split(key, 24))

    def unif(shape, scale):
        return jax.random.uniform(next(kit), shape, jnp.float32, -scale, scale)

    v1 = jax.random.normal(next(kit), (B1, S1, D), jnp.float32)
    v2 = jax.random.normal(next(kit), (B2, S2, D), jnp.float32)

    r = (6.0 / (D + D)) ** 0.5      # Xavier range used by the module's init
    prm = dict(
        wk_img=unif((D, D), r), wk_txt=unif((D, D), r),
        wq_img=unif((D, D), r), wq_txt=unif((D, D), r),
        wwk_img=unif((D, D), r), wwk_txt=unif((D, D), r),
        wwq_img=unif((D, D), r), wwq_txt=unif((D, D), r),
        fc1_w=unif((2 * D, D), r), fc2_w=unif((2 * D, D), r),
        out_w1=unif((2 * D, D), r), out_b1=jnp.zeros((1, D), jnp.float32),
        out_w2=unif((D, 1), r), out_b2=jnp.zeros((1, 1), jnp.float32),
        sa1_w1=unif((D, D), r), sa1_b1=unif((1, D), 0.05),
        sa1_w2=unif((D, H), r), sa1_b2=unif((1, H), 0.05),
        sa2_w1=unif((D, D), r), sa2_b1=unif((1, D), 0.05),
        sa2_w2=unif((D, H), r), sa2_b2=unif((1, H), 0.05),
    )

    score = gated_fusion(v1, v2, prm)
    score = jax.block_until_ready(score)

    with jax.default_matmul_precision("float32"):
        ref = gated_fusion_ref(v1, v2, prm)

    assert score.shape == (B1, B2)
    # approx EUP reciprocal in the softmax denominators => slightly loose tolerance
    assert jnp.allclose(score, ref, atol=1e-2, rtol=1e-2), (score, ref)
    print("KERNEL_OK")
</pallas_src>

<mosaic_0001>
module attributes {stable_mosaic.version = 11 : i64} {
  func.func @gated_fusion_kernel(%arg0: memref<2x8x32xf32, #tpu.memory_space<vmem>>, %arg1: memref<2x8x32xf32, #tpu.memory_space<vmem>>, %arg2: memref<32x32xf32, #tpu.memory_space<vmem>>, %arg3: memref<32x32xf32, #tpu.memory_space<vmem>>, %arg4: memref<32x32xf32, #tpu.memory_space<vmem>>, %arg5: memref<32x32xf32, #tpu.memory_space<vmem>>, %arg6: memref<32x32xf32, #tpu.memory_space<vmem>>, %arg7: memref<32x32xf32, #tpu.memory_space<vmem>>, %arg8: memref<32x32xf32, #tpu.memory_space<vmem>>, %arg9: memref<32x32xf32, #tpu.memory_space<vmem>>, %arg10: memref<64x32xf32, #tpu.memory_space<vmem>>, %arg11: memref<64x32xf32, #tpu.memory_space<vmem>>, %arg12: memref<64x32xf32, #tpu.memory_space<vmem>>, %arg13: memref<1x32xf32, #tpu.memory_space<vmem>>, %arg14: memref<32x1xf32, #tpu.memory_space<vmem>>, %arg15: memref<1x1xf32, #tpu.memory_space<vmem>>, %arg16: memref<32x32xf32, #tpu.memory_space<vmem>>, %arg17: memref<1x32xf32, #tpu.memory_space<vmem>>, %arg18: memref<32x4xf32, #tpu.memory_space<vmem>>, %arg19: memref<1x4xf32, #tpu.memory_space<vmem>>, %arg20: memref<32x32xf32, #tpu.memory_space<vmem>>, %arg21: memref<1x32xf32, #tpu.memory_space<vmem>>, %arg22: memref<32x4xf32, #tpu.memory_space<vmem>>, %arg23: memref<1x4xf32, #tpu.memory_space<vmem>>, %arg24: memref<4x1xf32, #tpu.memory_space<vmem>>) attributes {dimension_semantics = [], scalar_prefetch = 0 : i64, scratch_operands = 0 : i64, tpu.core_type = #tpu.core_type<tc>} {
    %c0 = arith.constant 0 : index
    %c0_0 = arith.constant 0 : index
    %c0_1 = arith.constant 0 : index
    %0 = vector.load %arg0[%c0, %c0_0, %c0_1] : memref<2x8x32xf32, #tpu.memory_space<vmem>>, vector<2x8x32xf32>
    %c0_2 = arith.constant 0 : index
    %c0_3 = arith.constant 0 : index
    %c0_4 = arith.constant 0 : index
    %1 = vector.load %arg1[%c0_2, %c0_3, %c0_4] : memref<2x8x32xf32, #tpu.memory_space<vmem>>, vector<2x8x32xf32>
    %2 = vector.shape_cast %0 : vector<2x8x32xf32> to vector<16x32xf32>
    %3 = vector.shape_cast %1 : vector<2x8x32xf32> to vector<16x32xf32>
    %c0_5 = arith.constant 0 : index
    %c0_6 = arith.constant 0 : index
    %4 = vector.load %arg2[%c0_5, %c0_6] : memref<32x32xf32, #tpu.memory_space<vmem>>, vector<32x32xf32>
    %cst = arith.constant dense<0.000000e+00> : vector<16x32xf32>
    %5 = tpu.matmul %2, %4, %cst {dimension_numbers = #tpu.dot_dimension_numbers<[1], [0], [0], [1], [0, 0, 1, 1], [], []>} : vector<16x32xf32>, vector<32x32xf32>, vector<16x32xf32> -> vector<16x32xf32>
    %6 = vector.shape_cast %5 : vector<16x32xf32> to vector<2x8x32xf32>
    %c0_7 = arith.constant 0 : index
    %c0_8 = arith.constant 0 : index
    %7 = vector.load %arg4[%c0_7, %c0_8] : memref<32x32xf32, #tpu.memory_space<vmem>>, vector<32x32xf32>
    %cst_9 = arith.constant dense<0.000000e+00> : vector<16x32xf32>
    %8 = tpu.matmul %2, %7, %cst_9 {dimension_numbers = #tpu.dot_dimension_numbers<[1], [0], [0], [1], [0, 0, 1, 1], [], []>} : vector<16x32xf32>, vector<32x32xf32>, vector<16x32xf32> -> vector<16x32xf32>
    %9 = vector.shape_cast %8 : vector<16x32xf32> to vector<2x8x32xf32>
    %c0_10 = arith.constant 0 : index
    %c0_11 = arith.constant 0 : index
    %10 = vector.load %arg3[%c0_10, %c0_11] : memref<32x32xf32, #tpu.memory_space<vmem>>, vector<32x32xf32>
    %cst_12 = arith.constant dense<0.000000e+00> : vector<16x32xf32>
    %11 = tpu.matmul %3, %10, %cst_12 {dimension_numbers = #tpu.dot_dimension_numbers<[1], [0], [0], [1], [0, 0, 1, 1], [], []>} : vector<16x32xf32>, vector<32x32xf32>, vector<16x32xf32> -> vector<16x32xf32>
    %12 = vector.shape_cast %11 : vector<16x32xf32> to vector<2x8x32xf32>
    %c0_13 = arith.constant 0 : index
    %c0_14 = arith.constant 0 : index
    %13 = vector.load %arg5[%c0_13, %c0_14] : memref<32x32xf32, #tpu.memory_space<vmem>>, vector<32x32xf32>
    %cst_15 = arith.constant dense<0.000000e+00> : vector<16x32xf32>
    %14 = tpu.matmul %3, %13, %cst_15 {dimension_numbers = #tpu.dot_dimension_numbers<[1], [0], [0], [1], [0, 0, 1, 1], [], []>} : vector<16x32xf32>, vector<32x32xf32>, vector<16x32xf32> -> vector<16x32xf32>
    %15 = vector.shape_cast %14 : vector<16x32xf32> to vector<2x8x32xf32>
    %16 = vector.shape_cast %0 : vector<2x8x32xf32> to vector<2x1x8x32xf32>
    %17 = vector.shape_cast %16 : vector<2x1x8x32xf32> to vector<2x1x8x32xf32>
    %18 = vector.broadcast %17 : vector<2x1x8x32xf32> to vector<2x2x8x32xf32>
    %19 = vector.shape_cast %18 : vector<2x2x8x32xf32> to vector<4x8x32xf32>
    %20 = vector.shape_cast %6 : vector<2x8x32xf32> to vector<2x1x8x32xf32>
    %21 = vector.shape_cast %20 : vector<2x1x8x32xf32> to vector<2x1x8x32xf32>
    %22 = vector.broadcast %21 : vector<2x1x8x32xf32> to vector<2x2x8x32xf32>
    %23 = vector.shape_cast %22 : vector<2x2x8x32xf32> to vector<4x8x32xf32>
    %24 = vector.shape_cast %9 : vector<2x8x32xf32> to vector<2x1x8x32xf32>
    %25 = vector.shape_cast %24 : vector<2x1x8x32xf32> to vector<2x1x8x32xf32>
    %26 = vector.broadcast %25 : vector<2x1x8x32xf32> to vector<2x2x8x32xf32>
    %27 = vector.shape_cast %26 : vector<2x2x8x32xf32> to vector<4x8x32xf32>
    %28 = vector.shape_cast %1 : vector<2x8x32xf32> to vector<1x2x8x32xf32>
    %29 = vector.shape_cast %28 : vector<1x2x8x32xf32> to vector<1x2x8x32xf32>
    %30 = vector.broadcast %29 : vector<1x2x8x32xf32> to vector<2x2x8x32xf32>
    %31 = vector.shape_cast %30 : vector<2x2x8x32xf32> to vector<4x8x32xf32>
    %32 = vector.shape_cast %12 : vector<2x8x32xf32> to vector<1x2x8x32xf32>
    %33 = vector.shape_cast %32 : vector<1x2x8x32xf32> to vector<1x2x8x32xf32>
    %34 = vector.broadcast %33 : vector<1x2x8x32xf32> to vector<2x2x8x32xf32>
    %35 = vector.shape_cast %34 : vector<2x2x8x32xf32> to vector<4x8x32xf32>
    %36 = vector.shape_cast %15 : vector<2x8x32xf32> to vector<1x2x8x32xf32>
    %37 = vector.shape_cast %36 : vector<1x2x8x32xf32> to vector<1x2x8x32xf32>
    %38 = vector.broadcast %37 : vector<1x2x8x32xf32> to vector<2x2x8x32xf32>
    %39 = vector.shape_cast %38 : vector<2x2x8x32xf32> to vector<4x8x32xf32>
    "tpu.trace_start"() <{level = 10 : i32, message = "bqd,bkd->bqk"}> : () -> ()
    %cst_16 = arith.constant dense<0.000000e+00> : vector<4x8x8xf32>
    %40 = tpu.matmul %39, %23, %cst_16 {dimension_numbers = #tpu.dot_dimension_numbers<[2], [2], [1], [1], [0, 0, 0, 1, 1, 1], [0], [0]>} : vector<4x8x32xf32>, vector<4x8x32xf32>, vector<4x8x8xf32> -> vector<4x8x8xf32>
    "tpu.trace_stop"() : () -> ()
    %cst_17 = arith.constant 0.176776692 : f32
    %41 = vector.broadcast %cst_17 : f32 to vector<4x8x8xf32>
    %42 = arith.mulf %40, %41 : vector<4x8x8xf32>
    %cst_18 = arith.constant dense<0xFF800000> : vector<4x8xf32>
    %43 = vector.multi_reduction <maximumf>, %42, %cst_18 [2] : vector<4x8x8xf32> to vector<4x8xf32>
    %44 = vector.shape_cast %43 : vector<4x8xf32> to vector<4x8x1xf32>
    %45 = vector.broadcast %44 : vector<4x8x1xf32> to vector<4x8x8xf32>
    %46 = arith.subf %42, %45 : vector<4x8x8xf32>
    %47 = math.exp %46 : vector<4x8x8xf32>
    %cst_19 = arith.constant dense<0.000000e+00> : vector<4x8xf32>
    %48 = vector.multi_reduction <add>, %47, %cst_19 [2] : vector<4x8x8xf32> to vector<4x8xf32>
    %49 = vector.shape_cast %48 : vector<4x8xf32> to vector<4x8x1xf32>
    %50 = tpu.reciprocal %49 {approx = true} : vector<4x8x1xf32> -> vector<4x8x1xf32>
    %51 = vector.broadcast %50 : vector<4x8x1xf32> to vector<4x8x8xf32>
    %52 = arith.mulf %47, %51 : vector<4x8x8xf32>
    "tpu.trace_start"() <{level = 10 : i32, message = "bqk,bkd->bqd"}> : () -> ()
    %cst_20 = arith.constant dense<0.000000e+00> : vector<4x8x32xf32>
    %53 = tpu.matmul %52, %19, %cst_20 {dimension_numbers = #tpu.dot_dimension_numbers<[2], [1], [1], [2], [0, 0, 0, 1, 1, 2], [0], [0]>} : vector<4x8x8xf32>, vector<4x8x32xf32>, vector<4x8x32xf32> -> vector<4x8x32xf32>
    "tpu.trace_stop"() : () -> ()
    "tpu.trace_start"() <{level = 10 : i32, message = "bqd,bkd->bqk"}> : () -> ()
    %cst_21 = arith.constant dense<0.000000e+00> : vector<4x8x8xf32>
    %54 = tpu.matmul %27, %35, %cst_21 {dimension_numbers = #tpu.dot_dimension_numbers<[2], [2], [1], [1], [0, 0, 0, 1, 1, 1], [0], [0]>} : vector<4x8x32xf32>, vector<4x8x32xf32>, vector<4x8x8xf32> -> vector<4x8x8xf32>
    "tpu.trace_stop"() : () -> ()
    %cst_22 = arith.constant 0.176776692 : f32
    %55 = vector.broadcast %cst_22 : f32 to vector<4x8x8xf32>
    %56 = arith.mulf %54, %55 : vector<4x8x8xf32>
    %cst_23 = arith.constant dense<0xFF800000> : vector<4x8xf32>
    %57 = vector.multi_reduction <maximumf>, %56, %cst_23 [2] : vector<4x8x8xf32> to vector<4x8xf32>
    %58 = vector.shape_cast %57 : vector<4x8xf32> to vector<4x8x1xf32>
    %59 = vector.broadcast %58 : vector<4x8x1xf32> to vector<4x8x8xf32>
    %60 = arith.subf %56, %59 : vector<4x8x8xf32>
    %61 = math.exp %60 : vector<4x8x8xf32>
    %cst_24 = arith.constant dense<0.000000e+00> : vector<4x8xf32>
    %62 = vector.multi_reduction <add>, %61, %cst_24 [2] : vector<4x8x8xf32> to vector<4x8xf32>
    %63 = vector.shape_cast %62 : vector<4x8xf32> to vector<4x8x1xf32>
    %64 = tpu.reciprocal %63 {approx = true} : vector<4x8x1xf32> -> vector<4x8x1xf32>
    %65 = vector.broadcast %64 : vector<4x8x1xf32> to vector<4x8x8xf32>
    %66 = arith.mulf %61, %65 : vector<4x8x8xf32>
    "tpu.trace_start"() <{level = 10 : i32, message = "bqk,bkd->bqd"}> : () -> ()
    %cst_25 = arith.constant dense<0.000000e+00> : vector<4x8x32xf32>
    %67 = tpu.matmul %66, %31, %cst_25 {dimension_numbers = #tpu.dot_dimension_numbers<[2], [1], [1], [2], [0, 0, 0, 1, 1, 2], [0], [0]>} : vector<4x8x8xf32>, vector<4x8x32xf32>, vector<4x8x32xf32> -> vector<4x8x32xf32>
    "tpu.trace_stop"() : () -> ()
    %68 = vector.shape_cast %53 : vector<4x8x32xf32> to vector<32x32xf32>
    %69 = vector.shape_cast %67 : vector<4x8x32xf32> to vector<32x32xf32>
    %c0_26 = arith.constant 0 : index
    %c0_27 = arith.constant 0 : index
    %70 = vector.load %arg9[%c0_26, %c0_27] : memref<32x32xf32, #tpu.memory_space<vmem>>, vector<32x32xf32>
    %cst_28 = arith.constant dense<0.000000e+00> : vector<32x32xf32>
    %71 = tpu.matmul %69, %70, %cst_28 {dimension_numbers = #tpu.dot_dimension_numbers<[1], [0], [0], [1], [0, 0, 1, 1], [], []>} : vector<32x32xf32>, vector<32x32xf32>, vector<32x32xf32> -> vector<32x32xf32>
    %72 = vector.shape_cast %71 : vector<32x32xf32> to vector<4x8x32xf32>
    %c0_29 = arith.constant 0 : index
    %c0_30 = arith.constant 0 : index
    %73 = vector.load %arg7[%c0_29, %c0_30] : memref<32x32xf32, #tpu.memory_space<vmem>>, vector<32x32xf32>
    %cst_31 = arith.constant dense<0.000000e+00> : vector<32x32xf32>
    %74 = tpu.matmul %69, %73, %cst_31 {dimension_numbers = #tpu.dot_dimension_numbers<[1], [0], [0], [1], [0, 0, 1, 1], [], []>} : vector<32x32xf32>, vector<32x32xf32>, vector<32x32xf32> -> vector<32x32xf32>
    %75 = vector.shape_cast %74 : vector<32x32xf32> to vector<4x8x32xf32>
    %c0_32 = arith.constant 0 : index
    %c0_33 = arith.constant 0 : index
    %76 = vector.load %arg8[%c0_32, %c0_33] : memref<32x32xf32, #tpu.memory_space<vmem>>, vector<32x32xf32>
    %cst_34 = arith.constant dense<0.000000e+00> : vector<32x32xf32>
    %77 = tpu.matmul %68, %76, %cst_34 {dimension_numbers = #tpu.dot_dimension_numbers<[1], [0], [0], [1], [0, 0, 1, 1], [], []>} : vector<32x32xf32>, vector<32x32xf32>, vector<32x32xf32> -> vector<32x32xf32>
    %78 = vector.shape_cast %77 : vector<32x32xf32> to vector<4x8x32xf32>
    %c0_35 = arith.constant 0 : index
    %c0_36 = arith.constant 0 : index
    %79 = vector.load %arg6[%c0_35, %c0_36] : memref<32x32xf32, #tpu.memory_space<vmem>>, vector<32x32xf32>
    %cst_37 = arith.constant dense<0.000000e+00> : vector<32x32xf32>
    %80 = tpu.matmul %68, %79, %cst_37 {dimension_numbers = #tpu.dot_dimension_numbers<[1], [0], [0], [1], [0, 0, 1, 1], [], []>} : vector<32x32xf32>, vector<32x32xf32>, vector<32x32xf32> -> vector<32x32xf32>
    %81 = vector.shape_cast %80 : vector<32x32xf32> to vector<4x8x32xf32>
    "tpu.trace_start"() <{level = 10 : i32, message = "bqd,bkd->bqk"}> : () -> ()
    %cst_38 = arith.constant dense<0.000000e+00> : vector<4x8x8xf32>
    %82 = tpu.matmul %72, %75, %cst_38 {dimension_numbers = #tpu.dot_dimension_numbers<[2], [2], [1], [1], [0, 0, 0, 1, 1, 1], [0], [0]>} : vector<4x8x32xf32>, vector<4x8x32xf32>, vector<4x8x8xf32> -> vector<4x8x8xf32>
    "tpu.trace_stop"() : () -> ()
    %cst_39 = arith.constant 0.176776692 : f32
    %83 = vector.broadcast %cst_39 : f32 to vector<4x8x8xf32>
    %84 = arith.mulf %82, %83 : vector<4x8x8xf32>
    %cst_40 = arith.constant dense<0xFF800000> : vector<4x8xf32>
    %85 = vector.multi_reduction <maximumf>, %84, %cst_40 [2] : vector<4x8x8xf32> to vector<4x8xf32>
    %86 = vector.shape_cast %85 : vector<4x8xf32> to vector<4x8x1xf32>
    %87 = vector.broadcast %86 : vector<4x8x1xf32> to vector<4x8x8xf32>
    %88 = arith.subf %84, %87 : vector<4x8x8xf32>
    %89 = math.exp %88 : vector<4x8x8xf32>
    %cst_41 = arith.constant dense<0.000000e+00> : vector<4x8xf32>
    %90 = vector.multi_reduction <add>, %89, %cst_41 [2] : vector<4x8x8xf32> to vector<4x8xf32>
    %91 = vector.shape_cast %90 : vector<4x8xf32> to vector<4x8x1xf32>
    %92 = tpu.reciprocal %91 {approx = true} : vector<4x8x1xf32> -> vector<4x8x1xf32>
    %93 = vector.broadcast %92 : vector<4x8x1xf32> to vector<4x8x8xf32>
    %94 = arith.mulf %89, %93 : vector<4x8x8xf32>
    "tpu.trace_start"() <{level = 10 : i32, message = "bqk,bkd->bqd"}> : () -> ()
    %cst_42 = arith.constant dense<0.000000e+00> : vector<4x8x32xf32>
    %95 = tpu.matmul %94, %67, %cst_42 {dimension_numbers = #tpu.dot_dimension_numbers<[2], [1], [1], [2], [0, 0, 0, 1, 1, 2], [0], [0]>} : vector<4x8x8xf32>, vector<4x8x32xf32>, vector<4x8x32xf32> -> vector<4x8x32xf32>
    "tpu.trace_stop"() : () -> ()
    %96 = arith.mulf %95, %95 : vector<4x8x32xf32>
    %cst_43 = arith.constant dense<0.000000e+00> : vector<4x8xf32>
    %97 = vector.multi_reduction <add>, %96, %cst_43 [2] : vector<4x8x32xf32> to vector<4x8xf32>
    %98 = vector.shape_cast %97 : vector<4x8xf32> to vector<4x8x1xf32>
    %99 = math.sqrt %98 : vector<4x8x1xf32>
    %cst_44 = arith.constant 9.99999993E-9 : f32
    %100 = vector.broadcast %cst_44 : f32 to vector<4x8x1xf32>
    %101 = arith.addf %99, %100 : vector<4x8x1xf32>
    %102 = vector.broadcast %101 : vector<4x8x1xf32> to vector<4x8x32xf32>
    %103 = arith.divf %95, %102 : vector<4x8x32xf32>
    "tpu.trace_start"() <{level = 10 : i32, message = "bqd,bkd->bqk"}> : () -> ()
    %cst_45 = arith.constant dense<0.000000e+00> : vector<4x8x8xf32>
    %104 = tpu.matmul %78, %81, %cst_45 {dimension_numbers = #tpu.dot_dimension_numbers<[2], [2], [1], [1], [0, 0, 0, 1, 1, 1], [0], [0]>} : vector<4x8x32xf32>, vector<4x8x32xf32>, vector<4x8x8xf32> -> vector<4x8x8xf32>
    "tpu.trace_stop"() : () -> ()
    %cst_46 = arith.constant 0.176776692 : f32
    %105 = vector.broadcast %cst_46 : f32 to vector<4x8x8xf32>
    %106 = arith.mulf %104, %105 : vector<4x8x8xf32>
    %cst_47 = arith.constant dense<0xFF800000> : vector<4x8xf32>
    %107 = vector.multi_reduction <maximumf>, %106, %cst_47 [2] : vector<4x8x8xf32> to vector<4x8xf32>
    %108 = vector.shape_cast %107 : vector<4x8xf32> to vector<4x8x1xf32>
    %109 = vector.broadcast %108 : vector<4x8x1xf32> to vector<4x8x8xf32>
    %110 = arith.subf %106, %109 : vector<4x8x8xf32>
    %111 = math.exp %110 : vector<4x8x8xf32>
    %cst_48 = arith.constant dense<0.000000e+00> : vector<4x8xf32>
    %112 = vector.multi_reduction <add>, %111, %cst_48 [2] : vector<4x8x8xf32> to vector<4x8xf32>
    %113 = vector.shape_cast %112 : vector<4x8xf32> to vector<4x8x1xf32>
    %114 = tpu.reciprocal %113 {approx = true} : vector<4x8x1xf32> -> vector<4x8x1xf32>
    %115 = vector.broadcast %114 : vector<4x8x1xf32> to vector<4x8x8xf32>
    %116 = arith.mulf %111, %115 : vector<4x8x8xf32>
    "tpu.trace_start"() <{level = 10 : i32, message = "bqk,bkd->bqd"}> : () -> ()
    %cst_49 = arith.constant dense<0.000000e+00> : vector<4x8x32xf32>
    %117 = tpu.matmul %116, %53, %cst_49 {dimension_numbers = #tpu.dot_dimension_numbers<[2], [1], [1], [2], [0, 0, 0, 1, 1, 2], [0], [0]>} : vector<4x8x8xf32>, vector<4x8x32xf32>, vector<4x8x32xf32> -> vector<4x8x32xf32>
    "tpu.trace_stop"() : () -> ()
    %118 = arith.mulf %117, %117 : vector<4x8x32xf32>
    %cst_50 = arith.constant dense<0.000000e+00> : vector<4x8xf32>
    %119 = vector.multi_reduction <add>, %118, %cst_50 [2] : vector<4x8x32xf32> to vector<4x8xf32>
    %120 = vector.shape_cast %119 : vector<4x8xf32> to vector<4x8x1xf32>
    %121 = math.sqrt %120 : vector<4x8x1xf32>
    %cst_51 = arith.constant 9.99999993E-9 : f32
    %122 = vector.broadcast %cst_51 : f32 to vector<4x8x1xf32>
    %123 = arith.addf %121, %122 : vector<4x8x1xf32>
    %124 = vector.broadcast %123 : vector<4x8x1xf32> to vector<4x8x32xf32>
    %125 = arith.divf %117, %124 : vector<4x8x32xf32>
    %126 = arith.mulf %19, %103 : vector<4x8x32xf32>
    %cst_52 = arith.constant dense<0.000000e+00> : vector<4x8xf32>
    %127 = vector.multi_reduction <add>, %126, %cst_52 [2] : vector<4x8x32xf32> to vector<4x8xf32>
    %128 = vector.shape_cast %127 : vector<4x8xf32> to vector<4x8x1xf32>
    %cst_53 = arith.constant 0.000000e+00 : f32
    %129 = vector.broadcast %cst_53 : f32 to vector<4x8x1xf32>
    %130 = arith.subf %129, %128 : vector<4x8x1xf32>
    %131 = math.exp %130 : vector<4x8x1xf32>
    %cst_54 = arith.constant 1.000000e+00 : f32
    %132 = vector.broadcast %cst_54 : f32 to vector<4x8x1xf32>
    %133 = arith.addf %132, %131 : vector<4x8x1xf32>
    %cst_55 = arith.constant 1.000000e+00 : f32
    %134 = vector.broadcast %cst_55 : f32 to vector<4x8x1xf32>
    %135 = arith.divf %134, %133 : vector<4x8x1xf32>
    %136 = arith.mulf %31, %125 : vector<4x8x32xf32>
    %cst_56 = arith.constant dense<0.000000e+00> : vector<4x8xf32>
    %137 = vector.multi_reduction <add>, %136, %cst_56 [2] : vector<4x8x32xf32> to vector<4x8xf32>
    %138 = vector.shape_cast %137 : vector<4x8xf32> to vector<4x8x1xf32>
    %cst_57 = arith.constant 0.000000e+00 : f32
    %139 = vector.broadcast %cst_57 : f32 to vector<4x8x1xf32>
    %140 = arith.subf %139, %138 : vector<4x8x1xf32>
    %141 = math.exp %140 : vector<4x8x1xf32>
    %cst_58 = arith.constant 1.000000e+00 : f32
    %142 = vector.broadcast %cst_58 : f32 to vector<4x8x1xf32>
    %143 = arith.addf %142, %141 : vector<4x8x1xf32>
    %cst_59 = arith.constant 1.000000e+00 : f32
    %144 = vector.broadcast %cst_59 : f32 to vector<4x8x1xf32>
    %145 = arith.divf %144, %143 : vector<4x8x1xf32>
    %146 = tpu.concatenate %19, %103 in 2 : vector<4x8x32xf32>, vector<4x8x32xf32> -> vector<4x8x64xf32>
    %147 = vector.broadcast %135 : vector<4x8x1xf32> to vector<4x8x64xf32>
    %148 = arith.mulf %146, %147 : vector<4x8x64xf32>
    %149 = tpu.concatenate %31, %125 in 2 : vector<4x8x32xf32>, vector<4x8x32xf32> -> vector<4x8x64xf32>
    %150 = vector.broadcast %145 : vector<4x8x1xf32> to vector<4x8x64xf32>
    %151 = arith.mulf %149, %150 : vector<4x8x64xf32>
    %152 = vector.shape_cast %148 : vector<4x8x64xf32> to vector<32x64xf32>
    %c0_60 = arith.constant 0 : index
    %c0_61 = arith.constant 0 : index
    %153 = vector.load %arg10[%c0_60, %c0_61] : memref<64x32xf32, #tpu.memory_space<vmem>>, vector<64x32xf32>
    %cst_62 = arith.constant dense<0.000000e+00> : vector<32x32xf32>
    %154 = tpu.matmul %152, %153, %cst_62 {dimension_numbers = #tpu.dot_dimension_numbers<[1], [0], [0], [1], [0, 0, 1, 1], [], []>} : vector<32x64xf32>, vector<64x32xf32>, vector<32x32xf32> -> vector<32x32xf32>
    %cst_63 = arith.constant 0.000000e+00 : f32
    %155 = vector.broadcast %cst_63 : f32 to vector<32x32xf32>
    %156 = arith.maximumf %154, %155 : vector<32x32xf32>
    %157 = vector.shape_cast %156 : vector<32x32xf32> to vector<4x8x32xf32>
    %158 = arith.addf %157, %19 : vector<4x8x32xf32>
    %159 = vector.shape_cast %151 : vector<4x8x64xf32> to vector<32x64xf32>
    %c0_64 = arith.constant 0 : index
    %c0_65 = arith.constant 0 : index
    %160 = vector.load %arg11[%c0_64, %c0_65] : memref<64x32xf32, #tpu.memory_space<vmem>>, vector<64x32xf32>
    %cst_66 = arith.constant dense<0.000000e+00> : vector<32x32xf32>
    %161 = tpu.matmul %159, %160, %cst_66 {dimension_numbers = #tpu.dot_dimension_numbers<[1], [0], [0], [1], [0, 0, 1, 1], [], []>} : vector<32x64xf32>, vector<64x32xf32>, vector<32x32xf32> -> vector<32x32xf32>
    %cst_67 = arith.constant 0.000000e+00 : f32
    %162 = vector.broadcast %cst_67 : f32 to vector<32x32xf32>
    %163 = arith.maximumf %161, %162 : vector<32x32xf32>
    %164 = vector.shape_cast %163 : vector<32x32xf32> to vector<4x8x32xf32>
    %165 = arith.addf %164, %31 : vector<4x8x32xf32>
    %c0_68 = arith.constant 0 : index
    %c0_69 = arith.constant 0 : index
    %166 = vector.load %arg16[%c0_68, %c0_69] : memref<32x32xf32, #tpu.memory_space<vmem>>, vector<32x32xf32>
    %c0_70 = arith.constant 0 : index
    %c0_71 = arith.constant 0 : index
    %167 = vector.load %arg17[%c0_70, %c0_71] : memref<1x32xf32, #tpu.memory_space<vmem>>, vector<1x32xf32>
    %c0_72 = arith.constant 0 : index
    %c0_73 = arith.constant 0 : index
    %168 = vector.load %arg18[%c0_72, %c0_73] : memref<32x4xf32, #tpu.memory_space<vmem>>, vector<32x4xf32>
    %c0_74 = arith.constant 0 : index
    %c0_75 = arith.constant 0 : index
    %169 = vector.load %arg19[%c0_74, %c0_75] : memref<1x4xf32, #tpu.memory_space<vmem>>, vector<1x4xf32>
    %170 = vector.shape_cast %158 : vector<4x8x32xf32> to vector<32x32xf32>
    %cst_76 = arith.constant dense<0.000000e+00> : vector<32x32xf32>
    %171 = tpu.matmul %170, %166, %cst_76 {dimension_numbers = #tpu.dot_dimension_numbers<[1], [0], [0], [1], [0, 0, 1, 1], [], []>} : vector<32x32xf32>, vector<32x32xf32>, vector<32x32xf32> -> vector<32x32xf32>
    %172 = vector.broadcast %167 : vector<1x32xf32> to vector<32x32xf32>
    %173 = arith.addf %171, %172 : vector<32x32xf32>
    %cst_77 = arith.constant 0.000000e+00 : f32
    %174 = vector.broadcast %cst_77 : f32 to vector<32x32xf32>
    %175 = arith.maximumf %173, %174 : vector<32x32xf32>
    %cst_78 = arith.constant dense<0.000000e+00> : vector<32x4xf32>
    %176 = tpu.matmul %175, %168, %cst_78 {dimension_numbers = #tpu.dot_dimension_numbers<[1], [0], [0], [1], [0, 0, 1, 1], [], []>} : vector<32x32xf32>, vector<32x4xf32>, vector<32x4xf32> -> vector<32x4xf32>
    %177 = vector.broadcast %169 : vector<1x4xf32> to vector<32x4xf32>
    %178 = arith.addf %176, %177 : vector<32x4xf32>
    %179 = vector.shape_cast %178 : vector<32x4xf32> to vector<4x8x4xf32>
    %cst_79 = arith.constant dense<0xFF800000> : vector<4x4xf32>
    %180 = vector.multi_reduction <maximumf>, %179, %cst_79 [1] : vector<4x8x4xf32> to vector<4x4xf32>
    %181 = vector.shape_cast %180 : vector<4x4xf32> to vector<4x1x4xf32>
    %182 = vector.broadcast %181 : vector<4x1x4xf32> to vector<4x8x4xf32>
    %183 = arith.subf %179, %182 : vector<4x8x4xf32>
    %184 = math.exp %183 : vector<4x8x4xf32>
    %cst_80 = arith.constant dense<0.000000e+00> : vector<4x4xf32>
    %185 = vector.multi_reduction <add>, %184, %cst_80 [1] : vector<4x8x4xf32> to vector<4x4xf32>
    %186 = vector.shape_cast %185 : vector<4x4xf32> to vector<4x1x4xf32>
    %187 = tpu.reciprocal %186 {approx = true} : vector<4x1x4xf32> -> vector<4x1x4xf32>
    %188 = vector.broadcast %187 : vector<4x1x4xf32> to vector<4x8x4xf32>
    %189 = arith.mulf %184, %188 : vector<4x8x4xf32>
    %cst_81 = arith.constant dense<0.000000e+00> : vector<4x8xf32>
    %190 = vector.multi_reduction <add>, %189, %cst_81 [2] : vector<4x8x4xf32> to vector<4x8xf32>
    %191 = vector.shape_cast %190 : vector<4x8xf32> to vector<4x8x1xf32>
    %cst_82 = arith.constant 4.000000e+00 : f32
    %192 = vector.broadcast %cst_82 : f32 to vector<4x8x1xf32>
    %193 = arith.divf %191, %192 : vector<4x8x1xf32>
    %194 = vector.broadcast %193 : vector<4x8x1xf32> to vector<4x8x32xf32>
    %195 = arith.mulf %194, %158 : vector<4x8x32xf32>
    %cst_83 = arith.constant dense<0.000000e+00> : vector<4x32xf32>
    %196 = vector.multi_reduction <add>, %195, %cst_83 [1] : vector<4x8x32xf32> to vector<4x32xf32>
    %197 = arith.mulf %196, %196 : vector<4x32xf32>
    %cst_84 = arith.constant dense<0.000000e+00> : vector<4xf32>
    %198 = vector.multi_reduction <add>, %197, %cst_84 [1] : vector<4x32xf32> to vector<4xf32>
    %199 = vector.shape_cast %198 : vector<4xf32> to vector<4x1xf32>
    %200 = math.sqrt %199 : vector<4x1xf32>
    %cst_85 = arith.constant 9.99999993E-9 : f32
    %201 = vector.broadcast %cst_85 : f32 to vector<4x1xf32>
    %202 = arith.addf %200, %201 : vector<4x1xf32>
    %203 = vector.broadcast %202 : vector<4x1xf32> to vector<4x32xf32>
    %204 = arith.divf %196, %203 : vector<4x32xf32>
    %c0_86 = arith.constant 0 : index
    %c0_87 = arith.constant 0 : index
    %205 = vector.load %arg20[%c0_86, %c0_87] : memref<32x32xf32, #tpu.memory_space<vmem>>, vector<32x32xf32>
    %c0_88 = arith.constant 0 : index
    %c0_89 = arith.constant 0 : index
    %206 = vector.load %arg21[%c0_88, %c0_89] : memref<1x32xf32, #tpu.memory_space<vmem>>, vector<1x32xf32>
    %c0_90 = arith.constant 0 : index
    %c0_91 = arith.constant 0 : index
    %207 = vector.load %arg22[%c0_90, %c0_91] : memref<32x4xf32, #tpu.memory_space<vmem>>, vector<32x4xf32>
    %c0_92 = arith.constant 0 : index
    %c0_93 = arith.constant 0 : index
    %208 = vector.load %arg23[%c0_92, %c0_93] : memref<1x4xf32, #tpu.memory_space<vmem>>, vector<1x4xf32>
    %209 = vector.shape_cast %165 : vector<4x8x32xf32> to vector<32x32xf32>
    %cst_94 = arith.constant dense<0.000000e+00> : vector<32x32xf32>
    %210 = tpu.matmul %209, %205, %cst_94 {dimension_numbers = #tpu.dot_dimension_numbers<[1], [0], [0], [1], [0, 0, 1, 1], [], []>} : vector<32x32xf32>, vector<32x32xf32>, vector<32x32xf32> -> vector<32x32xf32>
    %211 = vector.broadcast %206 : vector<1x32xf32> to vector<32x32xf32>
    %212 = arith.addf %210, %211 : vector<32x32xf32>
    %cst_95 = arith.constant 0.000000e+00 : f32
    %213 = vector.broadcast %cst_95 : f32 to vector<32x32xf32>
    %214 = arith.maximumf %212, %213 : vector<32x32xf32>
    %cst_96 = arith.constant dense<0.000000e+00> : vector<32x4xf32>
    %215 = tpu.matmul %214, %207, %cst_96 {dimension_numbers = #tpu.dot_dimension_numbers<[1], [0], [0], [1], [0, 0, 1, 1], [], []>} : vector<32x32xf32>, vector<32x4xf32>, vector<32x4xf32> -> vector<32x4xf32>
    %216 = vector.broadcast %208 : vector<1x4xf32> to vector<32x4xf32>
    %217 = arith.addf %215, %216 : vector<32x4xf32>
    %218 = vector.shape_cast %217 : vector<32x4xf32> to vector<4x8x4xf32>
    %cst_97 = arith.constant dense<0xFF800000> : vector<4x4xf32>
    %219 = vector.multi_reduction <maximumf>, %218, %cst_97 [1] : vector<4x8x4xf32> to vector<4x4xf32>
    %220 = vector.shape_cast %219 : vector<4x4xf32> to vector<4x1x4xf32>
    %221 = vector.broadcast %220 : vector<4x1x4xf32> to vector<4x8x4xf32>
    %222 = arith.subf %218, %221 : vector<4x8x4xf32>
    %223 = math.exp %222 : vector<4x8x4xf32>
    %cst_98 = arith.constant dense<0.000000e+00> : vector<4x4xf32>
    %224 = vector.multi_reduction <add>, %223, %cst_98 [1] : vector<4x8x4xf32> to vector<4x4xf32>
    %225 = vector.shape_cast %224 : vector<4x4xf32> to vector<4x1x4xf32>
    %226 = tpu.reciprocal %225 {approx = true} : vector<4x1x4xf32> -> vector<4x1x4xf32>
    %227 = vector.broadcast %226 : vector<4x1x4xf32> to vector<4x8x4xf32>
    %228 = arith.mulf %223, %227 : vector<4x8x4xf32>
    %cst_99 = arith.constant dense<0.000000e+00> : vector<4x8xf32>
    %229 = vector.multi_reduction <add>, %228, %cst_99 [2] : vector<4x8x4xf32> to vector<4x8xf32>
    %230 = vector.shape_cast %229 : vector<4x8xf32> to vector<4x8x1xf32>
    %cst_100 = arith.constant 4.000000e+00 : f32
    %231 = vector.broadcast %cst_100 : f32 to vector<4x8x1xf32>
    %232 = arith.divf %230, %231 : vector<4x8x1xf32>
    %233 = vector.broadcast %232 : vector<4x8x1xf32> to vector<4x8x32xf32>
    %234 = arith.mulf %233, %165 : vector<4x8x32xf32>
    %cst_101 = arith.constant dense<0.000000e+00> : vector<4x32xf32>
    %235 = vector.multi_reduction <add>, %234, %cst_101 [1] : vector<4x8x32xf32> to vector<4x32xf32>
    %236 = arith.mulf %235, %235 : vector<4x32xf32>
    %cst_102 = arith.constant dense<0.000000e+00> : vector<4xf32>
    %237 = vector.multi_reduction <add>, %236, %cst_102 [1] : vector<4x32xf32> to vector<4xf32>
    %238 = vector.shape_cast %237 : vector<4xf32> to vector<4x1xf32>
    %239 = math.sqrt %238 : vector<4x1xf32>
    %cst_103 = arith.constant 9.99999993E-9 : f32
    %240 = vector.broadcast %cst_103 : f32 to vector<4x1xf32>
    %241 = arith.addf %239, %240 : vector<4x1xf32>
    %242 = vector.broadcast %241 : vector<4x1xf32> to vector<4x32xf32>
    %243 = arith.divf %235, %242 : vector<4x32xf32>
    %244 = tpu.concatenate %204, %243 in 1 : vector<4x32xf32>, vector<4x32xf32> -> vector<4x64xf32>
    %c0_104 = arith.constant 0 : index
    %c0_105 = arith.constant 0 : index
    %245 = vector.load %arg12[%c0_104, %c0_105] : memref<64x32xf32, #tpu.memory_space<vmem>>, vector<64x32xf32>
    %cst_106 = arith.constant dense<0.000000e+00> : vector<4x32xf32>
    %246 = tpu.matmul %244, %245, %cst_106 {dimension_numbers = #tpu.dot_dimension_numbers<[1], [0], [0], [1], [0, 0, 1, 1], [], []>} : vector<4x64xf32>, vector<64x32xf32>, vector<4x32xf32> -> vector<4x32xf32>
    %c0_107 = arith.constant 0 : index
    %c0_108 = arith.constant 0 : index
    %247 = vector.load %arg13[%c0_107, %c0_108] : memref<1x32xf32, #tpu.memory_space<vmem>>, vector<1x32xf32>
    %248 = vector.broadcast %247 : vector<1x32xf32> to vector<4x32xf32>
    %249 = arith.addf %246, %248 : vector<4x32xf32>
    %cst_109 = arith.constant 0.000000e+00 : f32
    %250 = vector.broadcast %cst_109 : f32 to vector<4x32xf32>
    %251 = arith.maximumf %249, %250 : vector<4x32xf32>
    %c0_110 = arith.constant 0 : index
    %c0_111 = arith.constant 0 : index
    %252 = vector.load %arg14[%c0_110, %c0_111] : memref<32x1xf32, #tpu.memory_space<vmem>>, vector<32x1xf32>
    %cst_112 = arith.constant dense<0.000000e+00> : vector<4x1xf32>
    %253 = tpu.matmul %251, %252, %cst_112 {dimension_numbers = #tpu.dot_dimension_numbers<[1], [0], [0], [1], [0, 0, 1, 1], [], []>} : vector<4x32xf32>, vector<32x1xf32>, vector<4x1xf32> -> vector<4x1xf32>
    %c0_113 = arith.constant 0 : index
    %c0_114 = arith.constant 0 : index
    %254 = vector.load %arg15[%c0_113, %c0_114] : memref<1x1xf32, #tpu.memory_space<vmem>>, vector<1x1xf32>
    %255 = vector.broadcast %254 : vector<1x1xf32> to vector<4x1xf32>
    %256 = arith.addf %253, %255 : vector<4x1xf32>
    %cst_115 = arith.constant 0.000000e+00 : f32
    %257 = vector.broadcast %cst_115 : f32 to vector<4x1xf32>
    %258 = arith.subf %257, %256 : vector<4x1xf32>
    %259 = math.exp %258 : vector<4x1xf32>
    %cst_116 = arith.constant 1.000000e+00 : f32
    %260 = vector.broadcast %cst_116 : f32 to vector<4x1xf32>
    %261 = arith.addf %260, %259 : vector<4x1xf32>
    %cst_117 = arith.constant 1.000000e+00 : f32
    %262 = vector.broadcast %cst_117 : f32 to vector<4x1xf32>
    %263 = arith.divf %262, %261 : vector<4x1xf32>
    %c0_118 = arith.constant 0 : index
    %c0_119 = arith.constant 0 : index
    %264 = vector.load %arg24[%c0_118, %c0_119] : memref<4x1xf32, #tpu.memory_space<vmem>>, vector<4x1xf32>
    tpu.vector_store %arg24[%c0_118, %c0_119], %263 {strides = array<i32>} : memref<4x1xf32, #tpu.memory_space<vmem>>, vector<4x1xf32>,
    return
  }
}

</mosaic_0001>

<llo_original>
// kernel: tpu_custom_call.1
$region0: #{tpu_custom_call.1}
  #allocation0 [shape = 'u32[]', space=smem, size = 0x4, offset = 0x4, fixed_abs, tag = 'smem constant byte address 0x4 - core index']
  #allocation1 [shape = 'u32[144,128]{1,0:T(1,128)}', space=vmem, size = 0x12000, scoped, tag = 'internal scratch']
  #allocation2 [shape = 'f32[1,1]{1,0:T(1,128)S(1)}', space=vmem, size = 0x200, scoped, tag = 'scoped memory for tpu_custom_call.1']
  %s0 = inlined_call_operand.hbm [shape: f32[2,8,32], index: 0, kind: input, shape index: {}]
  %s1 = inlined_call_operand.hbm [shape: f32[2,8,32], index: 1, kind: input, shape index: {}]
  %s2 = inlined_call_operand.vmem [shape: f32[32,32], index: 2, kind: input, shape index: {}]
  %s3 = inlined_call_operand.vmem [shape: f32[32,32], index: 3, kind: input, shape index: {}]
  %s4 = inlined_call_operand.vmem [shape: f32[32,32], index: 4, kind: input, shape index: {}]
  %s5 = inlined_call_operand.vmem [shape: f32[32,32], index: 5, kind: input, shape index: {}]
  %s6 = inlined_call_operand.vmem [shape: f32[32,32], index: 6, kind: input, shape index: {}]
  %s7 = inlined_call_operand.vmem [shape: f32[32,32], index: 7, kind: input, shape index: {}]
  %s8 = inlined_call_operand.vmem [shape: f32[32,32], index: 8, kind: input, shape index: {}]
  %s9 = inlined_call_operand.vmem [shape: f32[32,32], index: 9, kind: input, shape index: {}]
  %s10 = inlined_call_operand.vmem [shape: f32[64,32], index: 10, kind: input, shape index: {}]
  %s11 = inlined_call_operand.vmem [shape: f32[64,32], index: 11, kind: input, shape index: {}]
  %s12 = inlined_call_operand.vmem [shape: f32[64,32], index: 12, kind: input, shape index: {}]
  %s13 = inlined_call_operand.vmem [shape: f32[1,32], index: 13, kind: input, shape index: {}]
  %s14 = inlined_call_operand.vmem [shape: f32[32,1], index: 14, kind: input, shape index: {}]
  %s15 = inlined_call_operand.<no memory space> [shape: f32[1,1], index: 15, kind: input, shape index: {}]
  %s16 = inlined_call_operand.vmem [shape: f32[32,32], index: 16, kind: input, shape index: {}]
  %s17 = inlined_call_operand.vmem [shape: f32[1,32], index: 17, kind: input, shape index: {}]
  %s18 = inlined_call_operand.vmem [shape: f32[32,4], index: 18, kind: input, shape index: {}]
  %s19 = inlined_call_operand.vmem [shape: f32[1,4], index: 19, kind: input, shape index: {}]
  %s20 = inlined_call_operand.vmem [shape: f32[32,32], index: 20, kind: input, shape index: {}]
  %s21 = inlined_call_operand.vmem [shape: f32[1,32], index: 21, kind: input, shape index: {}]
  %s22 = inlined_call_operand.vmem [shape: f32[32,4], index: 22, kind: input, shape index: {}]
  %s23 = inlined_call_operand.vmem [shape: f32[1,4], index: 23, kind: input, shape index: {}]
  %s24 = inlined_call_operand.vmem [shape: f32[4,1], index: 24, kind: output, shape index: {}]
  %s25 = sld [smem:[#allocation0]]
  $region114: #{tpu_custom_call.1} parent=0
    _
  %s27 = ssub.s32 1, %s25
  %s28 = scalar_select 0, %s27, %s25
  %v29 = vstv %s15
  %30 = vst [vmem:[#allocation2] sm:$0x1] %v29
  $region1: #{tpu_custom_call.1} parent=0
    #allocation3 [shape = 'u8[8192]{0}', space=vmem, size = 0x2000, scoped, tag = 'input window, operand 0, single buffered']
    #allocation4 [shape = 's32[1]{0}', space=sflag, size = 0x4, scoped, tag = 'scoped memory for tpu_custom_call.1']
    #allocation5 [shape = 'u8[8192]{0}', space=vmem, size = 0x2000, scoped, tag = 'input window, operand 1, single buffered']
    #allocation6 [shape = 's32[1]{0}', space=sflag, size = 0x4, scoped, tag = 'scoped memory for tpu_custom_call.1']
    %31 = vsyncpa [#allocation4], 0
    %32 = vsyncpa [#allocation6], 0
    // Predicated region
    $region2: #{tpu_custom_call.1} parent=1 // pred_check
      _
    $region3: #{tpu_custom_call.1} parent=1 // pred_check_branch
      %34 = sbr.rel (0) target = $region5
    $region4: #{tpu_custom_call.1} parent=1 // pred_region
      %s36 = ssub.s32 256, 256
      %37 = vsyncadd [#allocation4], %s36
      %s38 = sshll.u32 [#allocation3], 4
      %s39 = int_to_ptr.vmem [resolvable:$true] %s38
      %44 = dma.hbm_to_vmem [thread:$0]  %s0, 256, %s39, [#allocation4], 128, 128, 8
    $region5: #{tpu_custom_call.1} parent=1 // pred_fallthru
      _
    // Predicated region
    $region6: #{tpu_custom_call.1} parent=1 // pred_check
      _
    $region7: #{tpu_custom_call.1} parent=1 // pred_check_branch
      %46 = sbr.rel (0) target = $region9
    $region8: #{tpu_custom_call.1} parent=1 // pred_region
      %s48 = ssub.s32 256, 256
      %49 = vsyncadd [#allocation6], %s48
      %s50 = sshll.u32 [#allocation5], 4
      %s51 = int_to_ptr.vmem [resolvable:$true] %s50
      %56 = dma.hbm_to_vmem [thread:$0]  %s1, 256, %s51, [#allocation6], 128, 128, 8
    $region9: #{tpu_custom_call.1} parent=1 // pred_fallthru
      _
    // Predicated region
    $region10: #{tpu_custom_call.1} parent=1 // pred_check
      _
    $region11: #{tpu_custom_call.1} parent=1 // pred_check_branch
      %58 = sbr.rel (0) target = $region13
    $region12: #{tpu_custom_call.1} parent=1 // pred_region
      _
    $region13: #{tpu_custom_call.1} parent=1 // pred_fallthru
      _
    // Predicated region
    $region14: #{tpu_custom_call.1} parent=1 // pred_check
      _
    $region15: #{tpu_custom_call.1} parent=1 // pred_check_branch
      %60 = sbr.rel (0) target = $region17
    $region16: #{tpu_custom_call.1} parent=1 // pred_region
      _
    $region17: #{tpu_custom_call.1} parent=1 // pred_fallthru
      _
    // Predicated region
    $region18: #{tpu_custom_call.1} parent=1 // pred_check
      _
    $region19: #{tpu_custom_call.1} parent=1 // pred_check_branch
      %62 = sbr.rel (0) target = $region21
    $region20: #{tpu_custom_call.1} parent=1 // pred_region
      _
    $region21: #{tpu_custom_call.1} parent=1 // pred_fallthru
      _
    // Predicated region
    $region22: #{tpu_custom_call.1} parent=1 // pred_check
      _
    $region23: #{tpu_custom_call.1} parent=1 // pred_check_branch
      %64 = sbr.rel (0) target = $region25
    $region24: #{tpu_custom_call.1} parent=1 // pred_region
      _
    $region25: #{tpu_custom_call.1} parent=1 // pred_fallthru
      _
    // Predicated region
    $region26: #{tpu_custom_call.1} parent=1 // pred_check
      _
    $region27: #{tpu_custom_call.1} parent=1 // pred_check_branch
      %66 = sbr.rel (0) target = $region29
    $region28: #{tpu_custom_call.1} parent=1 // pred_region
      _
    $region29: #{tpu_custom_call.1} parent=1 // pred_fallthru
      _
    // Predicated region
    $region30: #{tpu_custom_call.1} parent=1 // pred_check
      _
    $region31: #{tpu_custom_call.1} parent=1 // pred_check_branch
      %68 = sbr.rel (0) target = $region33
    $region32: #{tpu_custom_call.1} parent=1 // pred_region
      _
    $region33: #{tpu_custom_call.1} parent=1 // pred_fallthru
      _
    // Predicated region
    $region34: #{tpu_custom_call.1} parent=1 // pred_check
      _
    $region35: #{tpu_custom_call.1} parent=1 // pred_check_branch
      %70 = sbr.rel (0) target = $region37
    $region36: #{tpu_custom_call.1} parent=1 // pred_region
      _
    $region37: #{tpu_custom_call.1} parent=1 // pred_fallthru
      _
    // Predicated region
    $region38: #{tpu_custom_call.1} parent=1 // pred_check
      _
    $region39: #{tpu_custom_call.1} parent=1 // pred_check_branch
      %72 = sbr.rel (0) target = $region41
    $region40: #{tpu_custom_call.1} parent=1 // pred_region
      _
    $region41: #{tpu_custom_call.1} parent=1 // pred_fallthru
      _
    // Predicated region
    $region42: #{tpu_custom_call.1} parent=1 // pred_check
      _
    $region43: #{tpu_custom_call.1} parent=1 // pred_check_branch
      %74 = sbr.rel (0) target = $region45
    $region44: #{tpu_custom_call.1} parent=1 // pred_region
      _
    $region45: #{tpu_custom_call.1} parent=1 // pred_fallthru
      _
    // Predicated region
    $region46: #{tpu_custom_call.1} parent=1 // pred_check
      _
    $region47: #{tpu_custom_call.1} parent=1 // pred_check_branch
      %76 = sbr.rel (0) target = $region49
    $region48: #{tpu_custom_call.1} parent=1 // pred_region
      _
    $region49: #{tpu_custom_call.1} parent=1 // pred_fallthru
      _
    // Predicated region
    $region50: #{tpu_custom_call.1} parent=1 // pred_check
      _
    $region51: #{tpu_custom_call.1} parent=1 // pred_check_branch
      %78 = sbr.rel (0) target = $region53
    $region52: #{tpu_custom_call.1} parent=1 // pred_region
      _
    $region53: #{tpu_custom_call.1} parent=1 // pred_fallthru
      _
    // Predicated region
    $region54: #{tpu_custom_call.1} parent=1 // pred_check
      _
    $region55: #{tpu_custom_call.1} parent=1 // pred_check_branch
      %80 = sbr.rel (0) target = $region57
    $region56: #{tpu_custom_call.1} parent=1 // pred_region
      _
    $region57: #{tpu_custom_call.1} parent=1 // pred_fallthru
      _
    // Predicated region
    $region58: #{tpu_custom_call.1} parent=1 // pred_check
      _
    $region59: #{tpu_custom_call.1} parent=1 // pred_check_branch
      %82 = sbr.rel (0) target = $region61
    $region60: #{tpu_custom_call.1} parent=1 // pred_region
      _
    $region61: #{tpu_custom_call.1} parent=1 // pred_fallthru
      _
    // Predicated region
    $region62: #{tpu_custom_call.1} parent=1 // pred_check
      _
    $region63: #{tpu_custom_call.1} parent=1 // pred_check_branch
      %84 = sbr.rel (0) target = $region65
    $region64: #{tpu_custom_call.1} parent=1 // pred_region
      _
    $region65: #{tpu_custom_call.1} parent=1 // pred_fallthru
      _
    // Predicated region
    $region66: #{tpu_custom_call.1} parent=1 // pred_check
      _
    $region67: #{tpu_custom_call.1} parent=1 // pred_check_branch
      %86 = sbr.rel (0) target = $region69
    $region68: #{tpu_custom_call.1} parent=1 // pred_region
      _
    $region69: #{tpu_custom_call.1} parent=1 // pred_fallthru
      _
    // Predicated region
    $region70: #{tpu_custom_call.1} parent=1 // pred_check
      _
    $region71: #{tpu_custom_call.1} parent=1 // pred_check_branch
      %88 = sbr.rel (0) target = $region73
    $region72: #{tpu_custom_call.1} parent=1 // pred_region
      _
    $region73: #{tpu_custom_call.1} parent=1 // pred_fallthru
      _
    // Predicated region
    $region74: #{tpu_custom_call.1} parent=1 // pred_check
      _
    $region75: #{tpu_custom_call.1} parent=1 // pred_check_branch
      %90 = sbr.rel (0) target = $region77
    $region76: #{tpu_custom_call.1} parent=1 // pred_region
      _
    $region77: #{tpu_custom_call.1} parent=1 // pred_fallthru
      _
    // Predicated region
    $region78: #{tpu_custom_call.1} parent=1 // pred_check
      _
    $region79: #{tpu_custom_call.1} parent=1 // pred_check_branch
      %92 = sbr.rel (0) target = $region81
    $region80: #{tpu_custom_call.1} parent=1 // pred_region
      _
    $region81: #{tpu_custom_call.1} parent=1 // pred_fallthru
      _
    // Predicated region
    $region82: #{tpu_custom_call.1} parent=1 // pred_check
      _
    $region83: #{tpu_custom_call.1} parent=1 // pred_check_branch
      %94 = sbr.rel (0) target = $region85
    $region84: #{tpu_custom_call.1} parent=1 // pred_region
      _
    $region85: #{tpu_custom_call.1} parent=1 // pred_fallthru
      _
    // Predicated region
    $region86: #{tpu_custom_call.1} parent=1 // pred_check
      _
    $region87: #{tpu_custom_call.1} parent=1 // pred_check_branch
      %96 = sbr.rel (0) target = $region89
    $region88: #{tpu_custom_call.1} parent=1 // pred_region
      _
    $region89: #{tpu_custom_call.1} parent=1 // pred_fallthru
      _
    // Predicated region
    $region90: #{tpu_custom_call.1} parent=1 // pred_check
      _
    $region91: #{tpu_custom_call.1} parent=1 // pred_check_branch
      %98 = sbr.rel (0) target = $region93
    $region92: #{tpu_custom_call.1} parent=1 // pred_region
      _
    $region93: #{tpu_custom_call.1} parent=1 // pred_fallthru
      _
    // Predicated region
    $region94: #{tpu_custom_call.1} parent=1 // pred_check
      _
    $region95: #{tpu_custom_call.1} parent=1 // pred_check_branch
      %100 = sbr.rel (0) target = $region97
    $region96: #{tpu_custom_call.1} parent=1 // pred_region
      _
    $region97: #{tpu_custom_call.1} parent=1 // pred_fallthru
      _
    // Predicated region
    $region98: #{tpu_custom_call.1} parent=1 // pred_check
      _
    $region99: #{tpu_custom_call.1} parent=1 // pred_check_branch
      %102 = sbr.rel (0) target = $region101
    $region100: #{tpu_custom_call.1} parent=1 // pred_region
      %103 = dma.done [#allocation4], 256
    $region101: #{tpu_custom_call.1} parent=1 // pred_fallthru
      _
    // Predicated region
    $region102: #{tpu_custom_call.1} parent=1 // pred_check
      _
    $region103: #{tpu_custom_call.1} parent=1 // pred_check_branch
      %105 = sbr.rel (0) target = $region105
    $region104: #{tpu_custom_call.1} parent=1 // pred_region
      %106 = dma.done [#allocation6], 256
    $region105: #{tpu_custom_call.1} parent=1 // pred_fallthru
      _
    %v107 = vld [vmem:[#allocation3] sm:$0xff]
    %v108 = vld [vmem:[#allocation3 + $0x8] sm:$0xff]
    %v109 = vld [vmem:[#allocation5] sm:$0xff]
    %v110 = vld [vmem:[#allocation5 + $0x8] sm:$0xff]
    %v111 = vld [vmem:[%s2] sm:$0xff]
    %v112 = vld [vmem:[%s2 + $0x8] sm:$0xff]
    %v113 = vld [vmem:[%s2 + $0x10] sm:$0xff]
    %v114 = vld [vmem:[%s2 + $0x18] sm:$0xff]
    %vm115 = vcmask 261120
    %v117 = vsel %vm115, %v107, 0
    %v120 = vsel %vm115, %v108, 0
    %122 = vmatprep.subr.mxu0 0.0
    %123 = vmatpush1.msra.mxu0 %v111
    %124 = vmatprep.subr.mxu0 0.0
    %125 = vmatpush1.msra.mxu0 %v112
    %126 = vmatprep.subr.mxu0 0.0
    %127 = vmatpush1.msra.mxu0 %v113
    %128 = vmatprep.subr.mxu0 0.0
    %129 = vmatpush1.msra.mxu0 %v114
    %130 = vmatprep.subr.mxu0 0.0
    %131 = vmatpush1.msra.mxu0 0.0
    %132 = vmatprep.subr.mxu0 0.0
    %133 = vmatpush1.msra.mxu0 0.0
    %134 = vmatprep.subr.mxu0 0.0
    %135 = vmatpush1.msra.mxu0 0.0
    %136 = vmatprep.subr.mxu0 0.0
    %137 = vmatpush1.msra.mxu0 0.0
    %138 = vmatprep.subr.mxu0 0.0
    %139 = vmatpush1.msra.mxu0 0.0
    %140 = vmatprep.subr.mxu0 0.0
    %141 = vmatpush1.msra.mxu0 0.0
    %142 = vmatprep.subr.mxu0 0.0
    %143 = vmatpush1.msra.mxu0 0.0
    %144 = vmatprep.subr.mxu0 0.0
    %145 = vmatpush1.msra.mxu0 0.0
    %146 = vmatprep.subr.mxu0 0.0
    %147 = vmatpush1.msra.mxu0 0.0
    %148 = vmatprep.subr.mxu0 0.0
    %149 = vmatpush1.msra.mxu0 0.0
    %150 = vmatprep.subr.mxu0 0.0
    %151 = vmatpush1.msra.mxu0 0.0
    %152 = vmatprep.subr.mxu0 0.0
    %153 = vmatpush1.msra.mxu0 0.0
    %154 = vmatprep.subr.mxu0 0.0
    %155 = vmatpush1.msra.mxu0 0.0
    %156 = vmatprep.subr.mxu0 0.0
    %157 = vmatpush1.msra.mxu0 0.0
    %158 = vmatprep.subr.mxu0 0.0
    %159 = vmatpush1.msra.mxu0 0.0
    %160 = vmatprep.subr.mxu0 0.0
    %161 = vmatpush1.msra.mxu0 0.0
    %162 = vmatprep.subr.mxu0 0.0
    %163 = vmatpush1.msra.mxu0 0.0
    %164 = vmatprep.subr.mxu0 0.0
    %165 = vmatpush1.msra.mxu0 0.0
    %166 = vmatprep.subr.mxu0 0.0
    %167 = vmatpush1.msra.mxu0 0.0
    %168 = vmatprep.subr.mxu0 0.0
    %169 = vmatpush1.msra.mxu0 0.0
    %170 = vmatprep.subr.mxu0 0.0
    %171 = vmatpush1.msra.mxu0 0.0
    %172 = vmatprep.subr.mxu0 0.0
    %173 = vmatpush1.msra.mxu0 0.0
    %174 = vmatprep.subr.mxu0 0.0
    %175 = vmatpush1.msra.mxu0 0.0
    %176 = vmatprep.subr.mxu0 0.0
    %177 = vmatpush1.msra.mxu0 0.0
    %178 = vmatprep.subr.mxu0 0.0
    %179 = vmatpush1.msra.mxu0 0.0
    %180 = vmatprep.subr.mxu0 0.0
    %181 = vmatpush1.msra.mxu0 0.0
    %182 = vmatprep.subr.mxu0 0.0
    %183 = vmatpush1.msra.mxu0 0.0
    %184 = vmatprep.subr.mxu0 0.0
    %185 = vmatpush1.msra.mxu0 0.0
    %186 = vmatprep.mubr.f32.mxu0 0.0
    %187 = vmatmul.mubr.f32.gmra.mrb[0].mxu0 %v117
    %v188 = vpop.f32.mrb[0].mxu0
    %v189 = vadd.f32 0.0, %v188
    %v190 = vpop.f32.mrb[0].mxu0
    %191 = vmatprep.mubr.f32.mxu0 0.0
    %192 = vmatmul.mubr.f32.gmra.mrb[0].mxu0 %v120
    %v193 = vpop.f32.mrb[0].mxu0
    %v194 = vadd.f32 0.0, %v193
    %v195 = vpop.f32.mrb[0].mxu0
    %196 = vdwg.mxu0
    %v197 = vld [vmem:[%s4] sm:$0xff]
    %v198 = vld [vmem:[%s4 + $0x8] sm:$0xff]
    %v199 = vld [vmem:[%s4 + $0x10] sm:$0xff]
    %v200 = vld [vmem:[%s4 + $0x18] sm:$0xff]
    %201 = vmatprep.subr.mxu0 0.0
    %202 = vmatpush1.msra.mxu0 %v197
    %203 = vmatprep.subr.mxu0 0.0
    %204 = vmatpush1.msra.mxu0 %v198
    %205 = vmatprep.subr.mxu0 0.0
    %206 = vmatpush1.msra.mxu0 %v199
    %207 = vmatprep.subr.mxu0 0.0
    %208 = vmatpush1.msra.mxu0 %v200
    %209 = vmatprep.subr.mxu0 0.0
    %210 = vmatpush1.msra.mxu0 0.0
    %211 = vmatprep.subr.mxu0 0.0
    %212 = vmatpush1.msra.mxu0 0.0
    %213 = vmatprep.subr.mxu0 0.0
    %214 = vmatpush1.msra.mxu0 0.0
    %215 = vmatprep.subr.mxu0 0.0
    %216 = vmatpush1.msra.mxu0 0.0
    %217 = vmatprep.subr.mxu0 0.0
    %218 = vmatpush1.msra.mxu0 0.0
    %219 = vmatprep.subr.mxu0 0.0
    %220 = vmatpush1.msra.mxu0 0.0
    %221 = vmatprep.subr.mxu0 0.0
    %222 = vmatpush1.msra.mxu0 0.0
    %223 = vmatprep.subr.mxu0 0.0
    %224 = vmatpush1.msra.mxu0 0.0
    %225 = vmatprep.subr.mxu0 0.0
    %226 = vmatpush1.msra.mxu0 0.0
    %227 = vmatprep.subr.mxu0 0.0
    %228 = vmatpush1.msra.mxu0 0.0
    %229 = vmatprep.subr.mxu0 0.0
    %230 = vmatpush1.msra.mxu0 0.0
    %231 = vmatprep.subr.mxu0 0.0
    %232 = vmatpush1.msra.mxu0 0.0
    %233 = vmatprep.subr.mxu0 0.0
    %234 = vmatpush1.msra.mxu0 0.0
    %235 = vmatprep.subr.mxu0 0.0
    %236 = vmatpush1.msra.mxu0 0.0
    %237 = vmatprep.subr.mxu0 0.0
    %238 = vmatpush1.msra.mxu0 0.0
    %239 = vmatprep.subr.mxu0 0.0
    %240 = vmatpush1.msra.mxu0 0.0
    %241 = vmatprep.subr.mxu0 0.0
    %242 = vmatpush1.msra.mxu0 0.0
    %243 = vmatprep.subr.mxu0 0.0
    %244 = vmatpush1.msra.mxu0 0.0
    %245 = vmatprep.subr.mxu0 0.0
    %246 = vmatpush1.msra.mxu0 0.0
    %247 = vmatprep.subr.mxu0 0.0
    %248 = vmatpush1.msra.mxu0 0.0
    %249 = vmatprep.subr.mxu0 0.0
    %250 = vmatpush1.msra.mxu0 0.0
    %251 = vmatprep.subr.mxu0 0.0
    %252 = vmatpush1.msra.mxu0 0.0
    %253 = vmatprep.subr.mxu0 0.0
    %254 = vmatpush1.msra.mxu0 0.0
    %255 = vmatprep.subr.mxu0 0.0
    %256 = vmatpush1.msra.mxu0 0.0
    %257 = vmatprep.subr.mxu0 0.0
    %258 = vmatpush1.msra.mxu0 0.0
    %259 = vmatprep.subr.mxu0 0.0
    %260 = vmatpush1.msra.mxu0 0.0
    %261 = vmatprep.subr.mxu0 0.0
    %262 = vmatpush1.msra.mxu0 0.0
    %263 = vmatprep.subr.mxu0 0.0
    %264 = vmatpush1.msra.mxu0 0.0
    %265 = vmatprep.mubr.f32.mxu0 0.0
    %266 = vmatmul.mubr.f32.gmra.mrb[0].mxu0 %v117
    %v267 = vpop.f32.mrb[0].mxu0
    %v268 = vadd.f32 0.0, %v267
    %v269 = vpop.f32.mrb[0].mxu0
    %270 = vmatprep.mubr.f32.mxu0 0.0
    %271 = vmatmul.mubr.f32.gmra.mrb[0].mxu0 %v120
    %v272 = vpop.f32.mrb[0].mxu0
    %v273 = vadd.f32 0.0, %v272
    %v274 = vpop.f32.mrb[0].mxu0
    %275 = vdwg.mxu0
    %v276 = vld [vmem:[%s3] sm:$0xff]
    %v277 = vld [vmem:[%s3 + $0x8] sm:$0xff]
    %v278 = vld [vmem:[%s3 + $0x10] sm:$0xff]
    %v279 = vld [vmem:[%s3 + $0x18] sm:$0xff]
    %v281 = vsel %vm115, %v109, 0
    %v284 = vsel %vm115, %v110, 0
    %286 = vmatprep.subr.mxu0 0.0
    %287 = vmatpush1.msra.mxu0 %v276
    %288 = vmatprep.subr.mxu0 0.0
    %289 = vmatpush1.msra.mxu0 %v277
    %290 = vmatprep.subr.mxu0 0.0
    %291 = vmatpush1.msra.mxu0 %v278
    %292 = vmatprep.subr.mxu0 0.0
    %293 = vmatpush1.msra.mxu0 %v279
    %294 = vmatprep.subr.mxu0 0.0
    %295 = vmatpush1.msra.mxu0 0.0
    %296 = vmatprep.subr.mxu0 0.0
    %297 = vmatpush1.msra.mxu0 0.0
    %298 = vmatprep.subr.mxu0 0.0
    %299 = vmatpush1.msra.mxu0 0.0
    %300 = vmatprep.subr.mxu0 0.0
    %301 = vmatpush1.msra.mxu0 0.0
    %302 = vmatprep.subr.mxu0 0.0
    %303 = vmatpush1.msra.mxu0 0.0
    %304 = vmatprep.subr.mxu0 0.0
    %305 = vmatpush1.msra.mxu0 0.0
    %306 = vmatprep.subr.mxu0 0.0
    %307 = vmatpush1.msra.mxu0 0.0
    %308 = vmatprep.subr.mxu0 0.0
    %309 = vmatpush1.msra.mxu0 0.0
    %310 = vmatprep.subr.mxu0 0.0
    %311 = vmatpush1.msra.mxu0 0.0
    %312 = vmatprep.subr.mxu0 0.0
    %313 = vmatpush1.msra.mxu0 0.0
    %314 = vmatprep.subr.mxu0 0.0
    %315 = vmatpush1.msra.mxu0 0.0
    %316 = vmatprep.subr.mxu0 0.0
    %317 = vmatpush1.msra.mxu0 0.0
    %318 = vmatprep.subr.mxu0 0.0
    %319 = vmatpush1.msra.mxu0 0.0
    %320 = vmatprep.subr.mxu0 0.0
    %321 = vmatpush1.msra.mxu0 0.0
    %322 = vmatprep.subr.mxu0 0.0
    %323 = vmatpush1.msra.mxu0 0.0
    %324 = vmatprep.subr.mxu0 0.0
    %325 = vmatpush1.msra.mxu0 0.0
    %326 = vmatprep.subr.mxu0 0.0
    %327 = vmatpush1.msra.mxu0 0.0
    %328 = vmatprep.subr.mxu0 0.0
    %329 = vmatpush1.msra.mxu0 0.0
    %330 = vmatprep.subr.mxu0 0.0
    %331 = vmatpush1.msra.mxu0 0.0
    %332 = vmatprep.subr.mxu0 0.0
    %333 = vmatpush1.msra.mxu0 0.0
    %334 = vmatprep.subr.mxu0 0.0
    %335 = vmatpush1.msra.mxu0 0.0
    %336 = vmatprep.subr.mxu0 0.0
    %337 = vmatpush1.msra.mxu0 0.0
    %338 = vmatprep.subr.mxu0 0.0
    %339 = vmatpush1.msra.mxu0 0.0
    %340 = vmatprep.subr.mxu0 0.0
    %341 = vmatpush1.msra.mxu0 0.0
    %342 = vmatprep.subr.mxu0 0.0
    %343 = vmatpush1.msra.mxu0 0.0
    %344 = vmatprep.subr.mxu0 0.0
    %345 = vmatpush1.msra.mxu0 0.0
    %346 = vmatprep.subr.mxu0 0.0
    %347 = vmatpush1.msra.mxu0 0.0
    %348 = vmatprep.subr.mxu0 0.0
    %349 = vmatpush1.msra.mxu0 0.0
    %350 = vmatprep.mubr.f32.mxu0 0.0
    %351 = vmatmul.mubr.f32.gmra.mrb[0].mxu0 %v281
    %v352 = vpop.f32.mrb[0].mxu0
    %v353 = vadd.f32 0.0, %v352
    %v354 = vpop.f32.mrb[0].mxu0
    %355 = vmatprep.mubr.f32.mxu0 0.0
    %356 = vmatmul.mubr.f32.gmra.mrb[0].mxu0 %v284
    %v357 = vpop.f32.mrb[0].mxu0
    %v358 = vadd.f32 0.0, %v357
    %v359 = vpop.f32.mrb[0].mxu0
    %360 = vdwg.mxu0
    %v361 = vld [vmem:[%s5] sm:$0xff]
    %v362 = vld [vmem:[%s5 + $0x8] sm:$0xff]
    %v363 = vld [vmem:[%s5 + $0x10] sm:$0xff]
    %v364 = vld [vmem:[%s5 + $0x18] sm:$0xff]
    %365 = vmatprep.subr.mxu0 0.0
    %366 = vmatpush1.msra.mxu0 %v361
    %367 = vmatprep.subr.mxu0 0.0
    %368 = vmatpush1.msra.mxu0 %v362
    %369 = vmatprep.subr.mxu0 0.0
    %370 = vmatpush1.msra.mxu0 %v363
    %371 = vmatprep.subr.mxu0 0.0
    %372 = vmatpush1.msra.mxu0 %v364
    %373 = vmatprep.subr.mxu0 0.0
    %374 = vmatpush1.msra.mxu0 0.0
    %375 = vmatprep.subr.mxu0 0.0
    %376 = vmatpush1.msra.mxu0 0.0
    %377 = vmatprep.subr.mxu0 0.0
    %378 = vmatpush1.msra.mxu0 0.0
    %379 = vmatprep.subr.mxu0 0.0
    %380 = vmatpush1.msra.mxu0 0.0
    %381 = vmatprep.subr.mxu0 0.0
    %382 = vmatpush1.msra.mxu0 0.0
    %383 = vmatprep.subr.mxu0 0.0
    %384 = vmatpush1.msra.mxu0 0.0
    %385 = vmatprep.subr.mxu0 0.0
    %386 = vmatpush1.msra.mxu0 0.0
    %387 = vmatprep.subr.mxu0 0.0
    %388 = vmatpush1.msra.mxu0 0.0
    %389 = vmatprep.subr.mxu0 0.0
    %390 = vmatpush1.msra.mxu0 0.0
    %391 = vmatprep.subr.mxu0 0.0
    %392 = vmatpush1.msra.mxu0 0.0
    %393 = vmatprep.subr.mxu0 0.0
    %394 = vmatpush1.msra.mxu0 0.0
    %395 = vmatprep.subr.mxu0 0.0
    %396 = vmatpush1.msra.mxu0 0.0
    %397 = vmatprep.subr.mxu0 0.0
    %398 = vmatpush1.msra.mxu0 0.0
    %399 = vmatprep.subr.mxu0 0.0
    %400 = vmatpush1.msra.mxu0 0.0
    %401 = vmatprep.subr.mxu0 0.0
    %402 = vmatpush1.msra.mxu0 0.0
    %403 = vmatprep.subr.mxu0 0.0
    %404 = vmatpush1.msra.mxu0 0.0
    %405 = vmatprep.subr.mxu0 0.0
    %406 = vmatpush1.msra.mxu0 0.0
    %407 = vmatprep.subr.mxu0 0.0
    %408 = vmatpush1.msra.mxu0 0.0
    %409 = vmatprep.subr.mxu0 0.0
    %410 = vmatpush1.msra.mxu0 0.0
    %411 = vmatprep.subr.mxu0 0.0
    %412 = vmatpush1.msra.mxu0 0.0
    %413 = vmatprep.subr.mxu0 0.0
    %414 = vmatpush1.msra.mxu0 0.0
    %415 = vmatprep.subr.mxu0 0.0
    %416 = vmatpush1.msra.mxu0 0.0
    %417 = vmatprep.subr.mxu0 0.0
    %418 = vmatpush1.msra.mxu0 0.0
    %419 = vmatprep.subr.mxu0 0.0
    %420 = vmatpush1.msra.mxu0 0.0
    %421 = vmatprep.subr.mxu0 0.0
    %422 = vmatpush1.msra.mxu0 0.0
    %423 = vmatprep.subr.mxu0 0.0
    %424 = vmatpush1.msra.mxu0 0.0
    %425 = vmatprep.subr.mxu0 0.0
    %426 = vmatpush1.msra.mxu0 0.0
    %427 = vmatprep.subr.mxu0 0.0
    %428 = vmatpush1.msra.mxu0 0.0
    %429 = vmatprep.mubr.f32.mxu0 0.0
    %430 = vmatmul.mubr.f32.gmra.mrb[0].mxu0 %v281
    %v431 = vpop.f32.mrb[0].mxu0
    %v432 = vadd.f32 0.0, %v431
    %v433 = vpop.f32.mrb[0].mxu0
    %434 = vmatprep.mubr.f32.mxu0 0.0
    %435 = vmatmul.mubr.f32.gmra.mrb[0].mxu0 %v284
    %v436 = vpop.f32.mrb[0].mxu0
    %v437 = vadd.f32 0.0, %v436
    %v438 = vpop.f32.mrb[0].mxu0
    %439 = vdwg.mxu0
    %v441 = vsel %vm115, %v432, 0
    %v444 = vsel %vm115, %v189, 0
    %446 = vmatprep.subr.mxu0 0.0
    %447 = vmatpush1.xpose.msra.mxu0 %v444
    %448 = vmatprep.subr.mxu0 0.0
    %449 = vmatpush1.xpose.msra.mxu0 0.0
    %450 = vmatprep.subr.mxu0 0.0
    %451 = vmatpush1.xpose.msra.mxu0 0.0
    %452 = vmatprep.subr.mxu0 0.0
    %453 = vmatpush1.xpose.msra.mxu0 0.0
    %454 = vmatprep.subr.mxu0 0.0
    %455 = vmatpush1.xpose.msra.mxu0 0.0
    %456 = vmatprep.subr.mxu0 0.0
    %457 = vmatpush1.xpose.msra.mxu0 0.0
    %458 = vmatprep.subr.mxu0 0.0
    %459 = vmatpush1.xpose.msra.mxu0 0.0
    %460 = vmatprep.subr.mxu0 0.0
    %461 = vmatpush1.xpose.msra.mxu0 0.0
    %462 = vmatprep.subr.mxu0 0.0
    %463 = vmatpush1.xpose.msra.mxu0 0.0
    %464 = vmatprep.subr.mxu0 0.0
    %465 = vmatpush1.xpose.msra.mxu0 0.0
    %466 = vmatprep.subr.mxu0 0.0
    %467 = vmatpush1.xpose.msra.mxu0 0.0
    %468 = vmatprep.subr.mxu0 0.0
    %469 = vmatpush1.xpose.msra.mxu0 0.0
    %470 = vmatprep.subr.mxu0 0.0
    %471 = vmatpush1.xpose.msra.mxu0 0.0
    %472 = vmatprep.subr.mxu0 0.0
    %473 = vmatpush1.xpose.msra.mxu0 0.0
    %474 = vmatprep.subr.mxu0 0.0
    %475 = vmatpush1.xpose.msra.mxu0 0.0
    %476 = vmatprep.subr.mxu0 0.0
    %477 = vmatpush1.xpose.msra.mxu0 0.0
    %478 = vmatprep.subr.mxu0 0.0
    %479 = vmatpush1.xpose.msra.mxu0 0.0
    %480 = vmatprep.subr.mxu0 0.0
    %481 = vmatpush1.xpose.msra.mxu0 0.0
    %482 = vmatprep.subr.mxu0 0.0
    %483 = vmatpush1.xpose.msra.mxu0 0.0
    %484 = vmatprep.subr.mxu0 0.0
    %485 = vmatpush1.xpose.msra.mxu0 0.0
    %486 = vmatprep.subr.mxu0 0.0
    %487 = vmatpush1.xpose.msra.mxu0 0.0
    %488 = vmatprep.subr.mxu0 0.0
    %489 = vmatpush1.xpose.msra.mxu0 0.0
    %490 = vmatprep.subr.mxu0 0.0
    %491 = vmatpush1.xpose.msra.mxu0 0.0
    %492 = vmatprep.subr.mxu0 0.0
    %493 = vmatpush1.xpose.msra.mxu0 0.0
    %494 = vmatprep.subr.mxu0 0.0
    %495 = vmatpush1.xpose.msra.mxu0 0.0
    %496 = vmatprep.subr.mxu0 0.0
    %497 = vmatpush1.xpose.msra.mxu0 0.0
    %498 = vmatprep.subr.mxu0 0.0
    %499 = vmatpush1.xpose.msra.mxu0 0.0
    %500 = vmatprep.subr.mxu0 0.0
    %501 = vmatpush1.xpose.msra.mxu0 0.0
    %502 = vmatprep.subr.mxu0 0.0
    %503 = vmatpush1.xpose.msra.mxu0 0.0
    %504 = vmatprep.subr.mxu0 0.0
    %505 = vmatpush1.xpose.msra.mxu0 0.0
    %506 = vmatprep.subr.mxu0 0.0
    %507 = vmatpush1.xpose.msra.mxu0 0.0
    %508 = vmatprep.subr.mxu0 0.0
    %509 = vmatpush1.xpose.msra.mxu0 0.0
    %510 = vmatprep.mubr.f32.mxu0 0.0
    %511 = vmatmul.mubr.f32.gmra.mrb[0].mxu0 %v441
    %v512 = vpop.f32.mrb[0].mxu0
    %v513 = vadd.f32 0.0, %v512
    %v514 = vpop.f32.mrb[0].mxu0
    %515 = vdwg.mxu0
    %v517 = vsel %vm115, %v437, 0
    %519 = vmatprep.subr.mxu0 0.0
    %520 = vmatpush1.xpose.msra.mxu0 %v444
    %521 = vmatprep.subr.mxu0 0.0
    %522 = vmatpush1.xpose.msra.mxu0 0.0
    %523 = vmatprep.subr.mxu0 0.0
    %524 = vmatpush1.xpose.msra.mxu0 0.0
    %525 = vmatprep.subr.mxu0 0.0
    %526 = vmatpush1.xpose.msra.mxu0 0.0
    %527 = vmatprep.subr.mxu0 0.0
    %528 = vmatpush1.xpose.msra.mxu0 0.0
    %529 = vmatprep.subr.mxu0 0.0
    %530 = vmatpush1.xpose.msra.mxu0 0.0
    %531 = vmatprep.subr.mxu0 0.0
    %532 = vmatpush1.xpose.msra.mxu0 0.0
    %533 = vmatprep.subr.mxu0 0.0
    %534 = vmatpush1.xpose.msra.mxu0 0.0
    %535 = vmatprep.subr.mxu0 0.0
    %536 = vmatpush1.xpose.msra.mxu0 0.0
    %537 = vmatprep.subr.mxu0 0.0
    %538 = vmatpush1.xpose.msra.mxu0 0.0
    %539 = vmatprep.subr.mxu0 0.0
    %540 = vmatpush1.xpose.msra.mxu0 0.0
    %541 = vmatprep.subr.mxu0 0.0
    %542 = vmatpush1.xpose.msra.mxu0 0.0
    %543 = vmatprep.subr.mxu0 0.0
    %544 = vmatpush1.xpose.msra.mxu0 0.0
    %545 = vmatprep.subr.mxu0 0.0
    %546 = vmatpush1.xpose.msra.mxu0 0.0
    %547 = vmatprep.subr.mxu0 0.0
    %548 = vmatpush1.xpose.msra.mxu0 0.0
    %549 = vmatprep.subr.mxu0 0.0
    %550 = vmatpush1.xpose.msra.mxu0 0.0
    %551 = vmatprep.subr.mxu0 0.0
    %552 = vmatpush1.xpose.msra.mxu0 0.0
    %553 = vmatprep.subr.mxu0 0.0
    %554 = vmatpush1.xpose.msra.mxu0 0.0
    %555 = vmatprep.subr.mxu0 0.0
    %556 = vmatpush1.xpose.msra.mxu0 0.0
    %557 = vmatprep.subr.mxu0 0.0
    %558 = vmatpush1.xpose.msra.mxu0 0.0
    %559 = vmatprep.subr.mxu0 0.0
    %560 = vmatpush1.xpose.msra.mxu0 0.0
    %561 = vmatprep.subr.mxu0 0.0
    %562 = vmatpush1.xpose.msra.mxu0 0.0
    %563 = vmatprep.subr.mxu0 0.0
    %564 = vmatpush1.xpose.msra.mxu0 0.0
    %565 = vmatprep.subr.mxu0 0.0
    %566 = vmatpush1.xpose.msra.mxu0 0.0
    %567 = vmatprep.subr.mxu0 0.0
    %568 = vmatpush1.xpose.msra.mxu0 0.0
    %569 = vmatprep.subr.mxu0 0.0
    %570 = vmatpush1.xpose.msra.mxu0 0.0
    %571 = vmatprep.subr.mxu0 0.0
    %572 = vmatpush1.xpose.msra.mxu0 0.0
    %573 = vmatprep.subr.mxu0 0.0
    %574 = vmatpush1.xpose.msra.mxu0 0.0
    %575 = vmatprep.subr.mxu0 0.0
    %576 = vmatpush1.xpose.msra.mxu0 0.0
    %577 = vmatprep.subr.mxu0 0.0
    %578 = vmatpush1.xpose.msra.mxu0 0.0
    %579 = vmatprep.subr.mxu0 0.0
    %580 = vmatpush1.xpose.msra.mxu0 0.0
    %581 = vmatprep.subr.mxu0 0.0
    %582 = vmatpush1.xpose.msra.mxu0 0.0
    %583 = vmatprep.mubr.f32.mxu0 0.0
    %584 = vmatmul.mubr.f32.gmra.mrb[0].mxu0 %v517
    %v585 = vpop.f32.mrb[0].mxu0
    %v586 = vadd.f32 0.0, %v585
    %v587 = vpop.f32.mrb[0].mxu0
    %588 = vdwg.mxu0
    %v590 = vsel %vm115, %v194, 0
    %592 = vmatprep.subr.mxu0 0.0
    %593 = vmatpush1.xpose.msra.mxu0 %v590
    %594 = vmatprep.subr.mxu0 0.0
    %595 = vmatpush1.xpose.msra.mxu0 0.0
    %596 = vmatprep.subr.mxu0 0.0
    %597 = vmatpush1.xpose.msra.mxu0 0.0
    %598 = vmatprep.subr.mxu0 0.0
    %599 = vmatpush1.xpose.msra.mxu0 0.0
    %600 = vmatprep.subr.mxu0 0.0
    %601 = vmatpush1.xpose.msra.mxu0 0.0
    %602 = vmatprep.subr.mxu0 0.0
    %603 = vmatpush1.xpose.msra.mxu0 0.0
    %604 = vmatprep.subr.mxu0 0.0
    %605 = vmatpush1.xpose.msra.mxu0 0.0
    %606 = vmatprep.subr.mxu0 0.0
    %607 = vmatpush1.xpose.msra.mxu0 0.0
    %608 = vmatprep.subr.mxu0 0.0
    %609 = vmatpush1.xpose.msra.mxu0 0.0
    %610 = vmatprep.subr.mxu0 0.0
    %611 = vmatpush1.xpose.msra.mxu0 0.0
    %612 = vmatprep.subr.mxu0 0.0
    %613 = vmatpush1.xpose.msra.mxu0 0.0
    %614 = vmatprep.subr.mxu0 0.0
    %615 = vmatpush1.xpose.msra.mxu0 0.0
    %616 = vmatprep.subr.mxu0 0.0
    %617 = vmatpush1.xpose.msra.mxu0 0.0
    %618 = vmatprep.subr.mxu0 0.0
    %619 = vmatpush1.xpose.msra.mxu0 0.0
    %620 = vmatprep.subr.mxu0 0.0
    %621 = vmatpush1.xpose.msra.mxu0 0.0
    %622 = vmatprep.subr.mxu0 0.0
    %623 = vmatpush1.xpose.msra.mxu0 0.0
    %624 = vmatprep.subr.mxu0 0.0
    %625 = vmatpush1.xpose.msra.mxu0 0.0
    %626 = vmatprep.subr.mxu0 0.0
    %627 = vmatpush1.xpose.msra.mxu0 0.0
    %628 = vmatprep.subr.mxu0 0.0
    %629 = vmatpush1.xpose.msra.mxu0 0.0
    %630 = vmatprep.subr.mxu0 0.0
    %631 = vmatpush1.xpose.msra.mxu0 0.0
    %632 = vmatprep.subr.mxu0 0.0
    %633 = vmatpush1.xpose.msra.mxu0 0.0
    %634 = vmatprep.subr.mxu0 0.0
    %635 = vmatpush1.xpose.msra.mxu0 0.0
    %636 = vmatprep.subr.mxu0 0.0
    %637 = vmatpush1.xpose.msra.mxu0 0.0
    %638 = vmatprep.subr.mxu0 0.0
    %639 = vmatpush1.xpose.msra.mxu0 0.0
    %640 = vmatprep.subr.mxu0 0.0
    %641 = vmatpush1.xpose.msra.mxu0 0.0
    %642 = vmatprep.subr.mxu0 0.0
    %643 = vmatpush1.xpose.msra.mxu0 0.0
    %644 = vmatprep.subr.mxu0 0.0
    %645 = vmatpush1.xpose.msra.mxu0 0.0
    %646 = vmatprep.subr.mxu0 0.0
    %647 = vmatpush1.xpose.msra.mxu0 0.0
    %648 = vmatprep.subr.mxu0 0.0
    %649 = vmatpush1.xpose.msra.mxu0 0.0
    %650 = vmatprep.subr.mxu0 0.0
    %651 = vmatpush1.xpose.msra.mxu0 0.0
    %652 = vmatprep.subr.mxu0 0.0
    %653 = vmatpush1.xpose.msra.mxu0 0.0
    %654 = vmatprep.subr.mxu0 0.0
    %655 = vmatpush1.xpose.msra.mxu0 0.0
    %656 = vmatprep.mubr.f32.mxu0 0.0
    %657 = vmatmul.mubr.f32.gmra.mrb[0].mxu0 %v441
    %v658 = vpop.f32.mrb[0].mxu0
    %v659 = vadd.f32 0.0, %v658
    %v660 = vpop.f32.mrb[0].mxu0
    %661 = vdwg.mxu0
    %662 = vmatprep.subr.mxu0 0.0
    %663 = vmatpush1.xpose.msra.mxu0 %v590
    %664 = vmatprep.subr.mxu0 0.0
    %665 = vmatpush1.xpose.msra.mxu0 0.0
    %666 = vmatprep.subr.mxu0 0.0
    %667 = vmatpush1.xpose.msra.mxu0 0.0
    %668 = vmatprep.subr.mxu0 0.0
    %669 = vmatpush1.xpose.msra.mxu0 0.0
    %670 = vmatprep.subr.mxu0 0.0
    %671 = vmatpush1.xpose.msra.mxu0 0.0
    %672 = vmatprep.subr.mxu0 0.0
    %673 = vmatpush1.xpose.msra.mxu0 0.0
    %674 = vmatprep.subr.mxu0 0.0
    %675 = vmatpush1.xpose.msra.mxu0 0.0
    %676 = vmatprep.subr.mxu0 0.0
    %677 = vmatpush1.xpose.msra.mxu0 0.0
    %678 = vmatprep.subr.mxu0 0.0
    %679 = vmatpush1.xpose.msra.mxu0 0.0
    %680 = vmatprep.subr.mxu0 0.0
    %681 = vmatpush1.xpose.msra.mxu0 0.0
    %682 = vmatprep.subr.mxu0 0.0
    %683 = vmatpush1.xpose.msra.mxu0 0.0
    %684 = vmatprep.subr.mxu0 0.0
    %685 = vmatpush1.xpose.msra.mxu0 0.0
    %686 = vmatprep.subr.mxu0 0.0
    %687 = vmatpush1.xpose.msra.mxu0 0.0
    %688 = vmatprep.subr.mxu0 0.0
    %689 = vmatpush1.xpose.msra.mxu0 0.0
    %690 = vmatprep.subr.mxu0 0.0
    %691 = vmatpush1.xpose.msra.mxu0 0.0
    %692 = vmatprep.subr.mxu0 0.0
    %693 = vmatpush1.xpose.msra.mxu0 0.0
    %694 = vmatprep.subr.mxu0 0.0
    %695 = vmatpush1.xpose.msra.mxu0 0.0
    %696 = vmatprep.subr.mxu0 0.0
    %697 = vmatpush1.xpose.msra.mxu0 0.0
    %698 = vmatprep.subr.mxu0 0.0
    %699 = vmatpush1.xpose.msra.mxu0 0.0
    %700 = vmatprep.subr.mxu0 0.0
    %701 = vmatpush1.xpose.msra.mxu0 0.0
    %702 = vmatprep.subr.mxu0 0.0
    %703 = vmatpush1.xpose.msra.mxu0 0.0
    %704 = vmatprep.subr.mxu0 0.0
    %705 = vmatpush1.xpose.msra.mxu0 0.0
    %706 = vmatprep.subr.mxu0 0.0
    %707 = vmatpush1.xpose.msra.mxu0 0.0
    %708 = vmatprep.subr.mxu0 0.0
    %709 = vmatpush1.xpose.msra.mxu0 0.0
    %710 = vmatprep.subr.mxu0 0.0
    %711 = vmatpush1.xpose.msra.mxu0 0.0
    %712 = vmatprep.subr.mxu0 0.0
    %713 = vmatpush1.xpose.msra.mxu0 0.0
    %714 = vmatprep.subr.mxu0 0.0
    %715 = vmatpush1.xpose.msra.mxu0 0.0
    %716 = vmatprep.subr.mxu0 0.0
    %717 = vmatpush1.xpose.msra.mxu0 0.0
    %718 = vmatprep.subr.mxu0 0.0
    %719 = vmatpush1.xpose.msra.mxu0 0.0
    %720 = vmatprep.subr.mxu0 0.0
    %721 = vmatpush1.xpose.msra.mxu0 0.0
    %722 = vmatprep.subr.mxu0 0.0
    %723 = vmatpush1.xpose.msra.mxu0 0.0
    %724 = vmatprep.subr.mxu0 0.0
    %725 = vmatpush1.xpose.msra.mxu0 0.0
    %726 = vmatprep.mubr.f32.mxu0 0.0
    %727 = vmatmul.mubr.f32.gmra.mrb[0].mxu0 %v517
    %v728 = vpop.f32.mrb[0].mxu0
    %v729 = vadd.f32 0.0, %v728
    %v730 = vpop.f32.mrb[0].mxu0
    %731 = vdwg.mxu0
    %v732 = vmul.f32 %v513, 0.17677669
    %v733 = vmul.f32 %v586, 0.17677669
    %v734 = vmul.f32 %v659, 0.17677669
    %v735 = vmul.f32 %v729, 0.17677669
    %vm736 = vcmask 64512
    %v737 = vsel %vm736, %v732, -inf
    %738 = vmax.xlane.f32.xlu0 %v737
    %v739 = vpop.xlane.xlu0 %738
    %v740 = vsel %vm736, %v733, -inf
    %741 = vmax.xlane.f32.xlu0 %v740
    %v742 = vpop.xlane.xlu0 %741
    %v743 = vsel %vm736, %v734, -inf
    %744 = vmax.xlane.f32.xlu0 %v743
    %v745 = vpop.xlane.xlu0 %744
    %v746 = vsel %vm736, %v735, -inf
    %747 = vmax.xlane.f32.xlu0 %v746
    %v748 = vpop.xlane.xlu0 %747
    %v749 = vsub.f32 %v732, %v739
    %v750 = vsub.f32 %v733, %v742
    %v751 = vsub.f32 %v734, %v745
    %v752 = vsub.f32 %v735, %v748
    %v753 = vmul.f32 %v749, 1.442695
    %v754 = vpow.pop %v753
    %v755 = vmul.f32 %v750, 1.442695
    %v756 = vpow.pop %v755
    %v757 = vmul.f32 %v751, 1.442695
    %v758 = vpow.pop %v757
    %v759 = vmul.f32 %v752, 1.442695
    %v760 = vpow.pop %v759
    %v761 = vsel %vm736, %v754, 0.0
    %762 = vadd.xlane.f32.xlu0 %v761
    %v763 = vpop.xlane.xlu0 %762
    %v764 = vsel %vm736, %v756, 0.0
    %765 = vadd.xlane.f32.xlu0 %v764
    %v766 = vpop.xlane.xlu0 %765
    %v767 = vsel %vm736, %v758, 0.0
    %768 = vadd.xlane.f32.xlu0 %v767
    %v769 = vpop.xlane.xlu0 %768
    %v770 = vsel %vm736, %v760, 0.0
    %771 = vadd.xlane.f32.xlu0 %v770
    %v772 = vpop.xlane.xlu0 %771
    %v773 = vrcp.pop %v763
    %v774 = vrcp.pop %v766
    %v775 = vrcp.pop %v769
    %v776 = vrcp.pop %v772
    %v777 = vmul.f32 %v754, %v773
    %v778 = vmul.f32 %v756, %v774
    %v779 = vmul.f32 %v758, %v775
    %v780 = vmul.f32 %v760, %v776
    %v782 = vsel %vm736, %v777, 0
    %784 = vmatprep.subr.mxu0 0.0
    %785 = vmatpush1.msra.mxu0 %v107
    %786 = vmatprep.subr.mxu0 0.0
    %787 = vmatpush1.msra.mxu0 0.0
    %788 = vmatprep.subr.mxu0 0.0
    %789 = vmatpush1.msra.mxu0 0.0
    %790 = vmatprep.subr.mxu0 0.0
    %791 = vmatpush1.msra.mxu0 0.0
    %792 = vmatprep.subr.mxu0 0.0
    %793 = vmatpush1.msra.mxu0 0.0
    %794 = vmatprep.subr.mxu0 0.0
    %795 = vmatpush1.msra.mxu0 0.0
    %796 = vmatprep.subr.mxu0 0.0
    %797 = vmatpush1.msra.mxu0 0.0
    %798 = vmatprep.subr.mxu0 0.0
    %799 = vmatpush1.msra.mxu0 0.0
    %800 = vmatprep.subr.mxu0 0.0
    %801 = vmatpush1.msra.mxu0 0.0
    %802 = vmatprep.subr.mxu0 0.0
    %803 = vmatpush1.msra.mxu0 0.0
    %804 = vmatprep.subr.mxu0 0.0
    %805 = vmatpush1.msra.mxu0 0.0
    %806 = vmatprep.subr.mxu0 0.0
    %807 = vmatpush1.msra.mxu0 0.0
    %808 = vmatprep.subr.mxu0 0.0
    %809 = vmatpush1.msra.mxu0 0.0
    %810 = vmatprep.subr.mxu0 0.0
    %811 = vmatpush1.msra.mxu0 0.0
    %812 = vmatprep.subr.mxu0 0.0
    %813 = vmatpush1.msra.mxu0 0.0
    %814 = vmatprep.subr.mxu0 0.0
    %815 = vmatpush1.msra.mxu0 0.0
    %816 = vmatprep.subr.mxu0 0.0
    %817 = vmatpush1.msra.mxu0 0.0
    %818 = vmatprep.subr.mxu0 0.0
    %819 = vmatpush1.msra.mxu0 0.0
    %820 = vmatprep.subr.mxu0 0.0
    %821 = vmatpush1.msra.mxu0 0.0
    %822 = vmatprep.subr.mxu0 0.0
    %823 = vmatpush1.msra.mxu0 0.0
    %824 = vmatprep.subr.mxu0 0.0
    %825 = vmatpush1.msra.mxu0 0.0
    %826 = vmatprep.subr.mxu0 0.0
    %827 = vmatpush1.msra.mxu0 0.0
    %828 = vmatprep.subr.mxu0 0.0
    %829 = vmatpush1.msra.mxu0 0.0
    %830 = vmatprep.subr.mxu0 0.0
    %831 = vmatpush1.msra.mxu0 0.0
    %832 = vmatprep.subr.mxu0 0.0
    %833 = vmatpush1.msra.mxu0 0.0
    %834 = vmatprep.subr.mxu0 0.0
    %835 = vmatpush1.msra.mxu0 0.0
    %836 = vmatprep.subr.mxu0 0.0
    %837 = vmatpush1.msra.mxu0 0.0
    %838 = vmatprep.subr.mxu0 0.0
    %839 = vmatpush1.msra.mxu0 0.0
    %840 = vmatprep.subr.mxu0 0.0
    %841 = vmatpush1.msra.mxu0 0.0
    %842 = vmatprep.subr.mxu0 0.0
    %843 = vmatpush1.msra.mxu0 0.0
    %844 = vmatprep.subr.mxu0 0.0
    %845 = vmatpush1.msra.mxu0 0.0
    %846 = vmatprep.subr.mxu0 0.0
    %847 = vmatpush1.msra.mxu0 0.0
    %848 = vmatprep.mubr.f32.mxu0 0.0
    %849 = vmatmul.mubr.f32.gmra.mrb[0].mxu0 %v782
    %v850 = vpop.f32.mrb[0].mxu0
    %v851 = vadd.f32 0.0, %v850
    %v852 = vpop.f32.mrb[0].mxu0
    %853 = vdwg.mxu0
    %v855 = vsel %vm736, %v778, 0
    %857 = vmatprep.subr.mxu0 0.0
    %858 = vmatpush1.msra.mxu0 %v107
    %859 = vmatprep.subr.mxu0 0.0
    %860 = vmatpush1.msra.mxu0 0.0
    %861 = vmatprep.subr.mxu0 0.0
    %862 = vmatpush1.msra.mxu0 0.0
    %863 = vmatprep.subr.mxu0 0.0
    %864 = vmatpush1.msra.mxu0 0.0
    %865 = vmatprep.subr.mxu0 0.0
    %866 = vmatpush1.msra.mxu0 0.0
    %867 = vmatprep.subr.mxu0 0.0
    %868 = vmatpush1.msra.mxu0 0.0
    %869 = vmatprep.subr.mxu0 0.0
    %870 = vmatpush1.msra.mxu0 0.0
    %871 = vmatprep.subr.mxu0 0.0
    %872 = vmatpush1.msra.mxu0 0.0
    %873 = vmatprep.subr.mxu0 0.0
    %874 = vmatpush1.msra.mxu0 0.0
    %875 = vmatprep.subr.mxu0 0.0
    %876 = vmatpush1.msra.mxu0 0.0
    %877 = vmatprep.subr.mxu0 0.0
    %878 = vmatpush1.msra.mxu0 0.0
    %879 = vmatprep.subr.mxu0 0.0
    %880 = vmatpush1.msra.mxu0 0.0
    %881 = vmatprep.subr.mxu0 0.0
    %882 = vmatpush1.msra.mxu0 0.0
    %883 = vmatprep.subr.mxu0 0.0
    %884 = vmatpush1.msra.mxu0 0.0
    %885 = vmatprep.subr.mxu0 0.0
    %886 = vmatpush1.msra.mxu0 0.0
    %887 = vmatprep.subr.mxu0 0.0
    %888 = vmatpush1.msra.mxu0 0.0
    %889 = vmatprep.subr.mxu0 0.0
    %890 = vmatpush1.msra.mxu0 0.0
    %891 = vmatprep.subr.mxu0 0.0
    %892 = vmatpush1.msra.mxu0 0.0
    %893 = vmatprep.subr.mxu0 0.0
    %894 = vmatpush1.msra.mxu0 0.0
    %895 = vmatprep.subr.mxu0 0.0
    %896 = vmatpush1.msra.mxu0 0.0
    %897 = vmatprep.subr.mxu0 0.0
    %898 = vmatpush1.msra.mxu0 0.0
    %899 = vmatprep.subr.mxu0 0.0
    %900 = vmatpush1.msra.mxu0 0.0
    %901 = vmatprep.subr.mxu0 0.0
    %902 = vmatpush1.msra.mxu0 0.0
    %903 = vmatprep.subr.mxu0 0.0
    %904 = vmatpush1.msra.mxu0 0.0
    %905 = vmatprep.subr.mxu0 0.0
    %906 = vmatpush1.msra.mxu0 0.0
    %907 = vmatprep.subr.mxu0 0.0
    %908 = vmatpush1.msra.mxu0 0.0
    %909 = vmatprep.subr.mxu0 0.0
    %910 = vmatpush1.msra.mxu0 0.0
    %911 = vmatprep.subr.mxu0 0.0
    %912 = vmatpush1.msra.mxu0 0.0
    %913 = vmatprep.subr.mxu0 0.0
    %914 = vmatpush1.msra.mxu0 0.0
    %915 = vmatprep.subr.mxu0 0.0
    %916 = vmatpush1.msra.mxu0 0.0
    %917 = vmatprep.subr.mxu0 0.0
    %918 = vmatpush1.msra.mxu0 0.0
    %919 = vmatprep.subr.mxu0 0.0
    %920 = vmatpush1.msra.mxu0 0.0
    %921 = vmatprep.mubr.f32.mxu0 0.0
    %922 = vmatmul.mubr.f32.gmra.mrb[0].mxu0 %v855
    %v923 = vpop.f32.mrb[0].mxu0
    %v924 = vadd.f32 0.0, %v923
    %v925 = vpop.f32.mrb[0].mxu0
    %926 = vdwg.mxu0
    %v928 = vsel %vm736, %v779, 0
    %930 = vmatprep.subr.mxu0 0.0
    %931 = vmatpush1.msra.mxu0 %v108
    %932 = vmatprep.subr.mxu0 0.0
    %933 = vmatpush1.msra.mxu0 0.0
    %934 = vmatprep.subr.mxu0 0.0
    %935 = vmatpush1.msra.mxu0 0.0
    %936 = vmatprep.subr.mxu0 0.0
    %937 = vmatpush1.msra.mxu0 0.0
    %938 = vmatprep.subr.mxu0 0.0
    %939 = vmatpush1.msra.mxu0 0.0
    %940 = vmatprep.subr.mxu0 0.0
    %941 = vmatpush1.msra.mxu0 0.0
    %942 = vmatprep.subr.mxu0 0.0
    %943 = vmatpush1.msra.mxu0 0.0
    %944 = vmatprep.subr.mxu0 0.0
    %945 = vmatpush1.msra.mxu0 0.0
    %946 = vmatprep.subr.mxu0 0.0
    %947 = vmatpush1.msra.mxu0 0.0
    %948 = vmatprep.subr.mxu0 0.0
    %949 = vmatpush1.msra.mxu0 0.0
    %950 = vmatprep.subr.mxu0 0.0
    %951 = vmatpush1.msra.mxu0 0.0
    %952 = vmatprep.subr.mxu0 0.0
    %953 = vmatpush1.msra.mxu0 0.0
    %954 = vmatprep.subr.mxu0 0.0
    %955 = vmatpush1.msra.mxu0 0.0
    %956 = vmatprep.subr.mxu0 0.0
    %957 = vmatpush1.msra.mxu0 0.0
    %958 = vmatprep.subr.mxu0 0.0
    %959 = vmatpush1.msra.mxu0 0.0
    %960 = vmatprep.subr.mxu0 0.0
    %961 = vmatpush1.msra.mxu0 0.0
    %962 = vmatprep.subr.mxu0 0.0
    %963 = vmatpush1.msra.mxu0 0.0
    %964 = vmatprep.subr.mxu0 0.0
    %965 = vmatpush1.msra.mxu0 0.0
    %966 = vmatprep.subr.mxu0 0.0
    %967 = vmatpush1.msra.mxu0 0.0
    %968 = vmatprep.subr.mxu0 0.0
    %969 = vmatpush1.msra.mxu0 0.0
    %970 = vmatprep.subr.mxu0 0.0
    %971 = vmatpush1.msra.mxu0 0.0
    %972 = vmatprep.subr.mxu0 0.0
    %973 = vmatpush1.msra.mxu0 0.0
    %974 = vmatprep.subr.mxu0 0.0
    %975 = vmatpush1.msra.mxu0 0.0
    %976 = vmatprep.subr.mxu0 0.0
    %977 = vmatpush1.msra.mxu0 0.0
    %978 = vmatprep.subr.mxu0 0.0
    %979 = vmatpush1.msra.mxu0 0.0
    %980 = vmatprep.subr.mxu0 0.0
    %981 = vmatpush1.msra.mxu0 0.0
    %982 = vmatprep.subr.mxu0 0.0
    %983 = vmatpush1.msra.mxu0 0.0
    %984 = vmatprep.subr.mxu0 0.0
    %985 = vmatpush1.msra.mxu0 0.0
    %986 = vmatprep.subr.mxu0 0.0
    %987 = vmatpush1.msra.mxu0 0.0
    %988 = vmatprep.subr.mxu0 0.0
    %989 = vmatpush1.msra.mxu0 0.0
    %990 = vmatprep.subr.mxu0 0.0
    %991 = vmatpush1.msra.mxu0 0.0
    %992 = vmatprep.subr.mxu0 0.0
    %993 = vmatpush1.msra.mxu0 0.0
    %994 = vmatprep.mubr.f32.mxu0 0.0
    %995 = vmatmul.mubr.f32.gmra.mrb[0].mxu0 %v928
    %v996 = vpop.f32.mrb[0].mxu0
    %v997 = vadd.f32 0.0, %v996
    %v998 = vpop.f32.mrb[0].mxu0
    %999 = vdwg.mxu0
    %v1001 = vsel %vm736, %v780, 0
    %1003 = vmatprep.subr.mxu0 0.0
    %1004 = vmatpush1.msra.mxu0 %v108
    %1005 = vmatprep.subr.mxu0 0.0
    %1006 = vmatpush1.msra.mxu0 0.0
    %1007 = vmatprep.subr.mxu0 0.0
    %1008 = vmatpush1.msra.mxu0 0.0
    %1009 = vmatprep.subr.mxu0 0.0
    %1010 = vmatpush1.msra.mxu0 0.0
    %1011 = vmatprep.subr.mxu0 0.0
    %1012 = vmatpush1.msra.mxu0 0.0
    %1013 = vmatprep.subr.mxu0 0.0
    %1014 = vmatpush1.msra.mxu0 0.0
    %1015 = vmatprep.subr.mxu0 0.0
    %1016 = vmatpush1.msra.mxu0 0.0
    %1017 = vmatprep.subr.mxu0 0.0
    %1018 = vmatpush1.msra.mxu0 0.0
    %1019 = vmatprep.subr.mxu0 0.0
    %1020 = vmatpush1.msra.mxu0 0.0
    %1021 = vmatprep.subr.mxu0 0.0
    %1022 = vmatpush1.msra.mxu0 0.0
    %1023 = vmatprep.subr.mxu0 0.0
    %1024 = vmatpush1.msra.mxu0 0.0
    %1025 = vmatprep.subr.mxu0 0.0
    %1026 = vmatpush1.msra.mxu0 0.0
    %1027 = vmatprep.subr.mxu0 0.0
    %1028 = vmatpush1.msra.mxu0 0.0
    %1029 = vmatprep.subr.mxu0 0.0
    %1030 = vmatpush1.msra.mxu0 0.0
    %1031 = vmatprep.subr.mxu0 0.0
    %1032 = vmatpush1.msra.mxu0 0.0
    %1033 = vmatprep.subr.mxu0 0.0
    %1034 = vmatpush1.msra.mxu0 0.0
    %1035 = vmatprep.subr.mxu0 0.0
    %1036 = vmatpush1.msra.mxu0 0.0
    %1037 = vmatprep.subr.mxu0 0.0
    %1038 = vmatpush1.msra.mxu0 0.0
    %1039 = vmatprep.subr.mxu0 0.0
    %1040 = vmatpush1.msra.mxu0 0.0
    %1041 = vmatprep.subr.mxu0 0.0
    %1042 = vmatpush1.msra.mxu0 0.0
    %1043 = vmatprep.subr.mxu0 0.0
    %1044 = vmatpush1.msra.mxu0 0.0
    %1045 = vmatprep.subr.mxu0 0.0
    %1046 = vmatpush1.msra.mxu0 0.0
    %1047 = vmatprep.subr.mxu0 0.0
    %1048 = vmatpush1.msra.mxu0 0.0
    %1049 = vmatprep.subr.mxu0 0.0
    %1050 = vmatpush1.msra.mxu0 0.0
    %1051 = vmatprep.subr.mxu0 0.0
    %1052 = vmatpush1.msra.mxu0 0.0
    %1053 = vmatprep.subr.mxu0 0.0
    %1054 = vmatpush1.msra.mxu0 0.0
    %1055 = vmatprep.subr.mxu0 0.0
    %1056 = vmatpush1.msra.mxu0 0.0
    %1057 = vmatprep.subr.mxu0 0.0
    %1058 = vmatpush1.msra.mxu0 0.0
    %1059 = vmatprep.subr.mxu0 0.0
    %1060 = vmatpush1.msra.mxu0 0.0
    %1061 = vmatprep.subr.mxu0 0.0
    %1062 = vmatpush1.msra.mxu0 0.0
    %1063 = vmatprep.subr.mxu0 0.0
    %1064 = vmatpush1.msra.mxu0 0.0
    %1065 = vmatprep.subr.mxu0 0.0
    %1066 = vmatpush1.msra.mxu0 0.0
    %1067 = vmatprep.mubr.f32.mxu0 0.0
    %1068 = vmatmul.mubr.f32.gmra.mrb[0].mxu0 %v1001
    %v1069 = vpop.f32.mrb[0].mxu0
    %v1070 = vadd.f32 0.0, %v1069
    %v1071 = vpop.f32.mrb[0].mxu0
    %1072 = vdwg.mxu0
    %v1074 = vsel %vm115, %v268, 0
    %v1077 = vsel %vm115, %v353, 0
    %1079 = vmatprep.subr.mxu0 0.0
    %1080 = vmatpush1.xpose.msra.mxu0 %v1077
    %1081 = vmatprep.subr.mxu0 0.0
    %1082 = vmatpush1.xpose.msra.mxu0 0.0
    %1083 = vmatprep.subr.mxu0 0.0
    %1084 = vmatpush1.xpose.msra.mxu0 0.0
    %1085 = vmatprep.subr.mxu0 0.0
    %1086 = vmatpush1.xpose.msra.mxu0 0.0
    %1087 = vmatprep.subr.mxu0 0.0
    %1088 = vmatpush1.xpose.msra.mxu0 0.0
    %1089 = vmatprep.subr.mxu0 0.0
    %1090 = vmatpush1.xpose.msra.mxu0 0.0
    %1091 = vmatprep.subr.mxu0 0.0
    %1092 = vmatpush1.xpose.msra.mxu0 0.0
    %1093 = vmatprep.subr.mxu0 0.0
    %1094 = vmatpush1.xpose.msra.mxu0 0.0
    %1095 = vmatprep.subr.mxu0 0.0
    %1096 = vmatpush1.xpose.msra.mxu0 0.0
    %1097 = vmatprep.subr.mxu0 0.0
    %1098 = vmatpush1.xpose.msra.mxu0 0.0
    %1099 = vmatprep.subr.mxu0 0.0
    %1100 = vmatpush1.xpose.msra.mxu0 0.0
    %1101 = vmatprep.subr.mxu0 0.0
    %1102 = vmatpush1.xpose.msra.mxu0 0.0
    %1103 = vmatprep.subr.mxu0 0.0
    %1104 = vmatpush1.xpose.msra.mxu0 0.0
    %1105 = vmatprep.subr.mxu0 0.0
    %1106 = vmatpush1.xpose.msra.mxu0 0.0
    %1107 = vmatprep.subr.mxu0 0.0
    %1108 = vmatpush1.xpose.msra.mxu0 0.0
    %1109 = vmatprep.subr.mxu0 0.0
    %1110 = vmatpush1.xpose.msra.mxu0 0.0
    %1111 = vmatprep.subr.mxu0 0.0
    %1112 = vmatpush1.xpose.msra.mxu0 0.0
    %1113 = vmatprep.subr.mxu0 0.0
    %1114 = vmatpush1.xpose.msra.mxu0 0.0
    %1115 = vmatprep.subr.mxu0 0.0
    %1116 = vmatpush1.xpose.msra.mxu0 0.0
    %1117 = vmatprep.subr.mxu0 0.0
    %1118 = vmatpush1.xpose.msra.mxu0 0.0
    %1119 = vmatprep.subr.mxu0 0.0
    %1120 = vmatpush1.xpose.msra.mxu0 0.0
    %1121 = vmatprep.subr.mxu0 0.0
    %1122 = vmatpush1.xpose.msra.mxu0 0.0
    %1123 = vmatprep.subr.mxu0 0.0
    %1124 = vmatpush1.xpose.msra.mxu0 0.0
    %1125 = vmatprep.subr.mxu0 0.0
    %1126 = vmatpush1.xpose.msra.mxu0 0.0
    %1127 = vmatprep.subr.mxu0 0.0
    %1128 = vmatpush1.xpose.msra.mxu0 0.0
    %1129 = vmatprep.subr.mxu0 0.0
    %1130 = vmatpush1.xpose.msra.mxu0 0.0
    %1131 = vmatprep.subr.mxu0 0.0
    %1132 = vmatpush1.xpose.msra.mxu0 0.0
    %1133 = vmatprep.subr.mxu0 0.0
    %1134 = vmatpush1.xpose.msra.mxu0 0.0
    %1135 = vmatprep.subr.mxu0 0.0
    %1136 = vmatpush1.xpose.msra.mxu0 0.0
    %1137 = vmatprep.subr.mxu0 0.0
    %1138 = vmatpush1.xpose.msra.mxu0 0.0
    %1139 = vmatprep.subr.mxu0 0.0
    %1140 = vmatpush1.xpose.msra.mxu0 0.0
    %1141 = vmatprep.subr.mxu0 0.0
    %1142 = vmatpush1.xpose.msra.mxu0 0.0
    %1143 = vmatprep.mubr.f32.mxu0 0.0
    %1144 = vmatmul.mubr.f32.gmra.mrb[0].mxu0 %v1074
    %v1145 = vpop.f32.mrb[0].mxu0
    %v1146 = vadd.f32 0.0, %v1145
    %v1147 = vpop.f32.mrb[0].mxu0
    %1148 = vdwg.mxu0
    %v1150 = vsel %vm115, %v358, 0
    %1152 = vmatprep.subr.mxu0 0.0
    %1153 = vmatpush1.xpose.msra.mxu0 %v1150
    %1154 = vmatprep.subr.mxu0 0.0
    %1155 = vmatpush1.xpose.msra.mxu0 0.0
    %1156 = vmatprep.subr.mxu0 0.0
    %1157 = vmatpush1.xpose.msra.mxu0 0.0
    %1158 = vmatprep.subr.mxu0 0.0
    %1159 = vmatpush1.xpose.msra.mxu0 0.0
    %1160 = vmatprep.subr.mxu0 0.0
    %1161 = vmatpush1.xpose.msra.mxu0 0.0
    %1162 = vmatprep.subr.mxu0 0.0
    %1163 = vmatpush1.xpose.msra.mxu0 0.0
    %1164 = vmatprep.subr.mxu0 0.0
    %1165 = vmatpush1.xpose.msra.mxu0 0.0
    %1166 = vmatprep.subr.mxu0 0.0
    %1167 = vmatpush1.xpose.msra.mxu0 0.0
    %1168 = vmatprep.subr.mxu0 0.0
    %1169 = vmatpush1.xpose.msra.mxu0 0.0
    %1170 = vmatprep.subr.mxu0 0.0
    %1171 = vmatpush1.xpose.msra.mxu0 0.0
    %1172 = vmatprep.subr.mxu0 0.0
    %1173 = vmatpush1.xpose.msra.mxu0 0.0
    %1174 = vmatprep.subr.mxu0 0.0
    %1175 = vmatpush1.xpose.msra.mxu0 0.0
    %1176 = vmatprep.subr.mxu0 0.0
    %1177 = vmatpush1.xpose.msra.mxu0 0.0
    %1178 = vmatprep.subr.mxu0 0.0
    %1179 = vmatpush1.xpose.msra.mxu0 0.0
    %1180 = vmatprep.subr.mxu0 0.0
    %1181 = vmatpush1.xpose.msra.mxu0 0.0
    %1182 = vmatprep.subr.mxu0 0.0
    %1183 = vmatpush1.xpose.msra.mxu0 0.0
    %1184 = vmatprep.subr.mxu0 0.0
    %1185 = vmatpush1.xpose.msra.mxu0 0.0
    %1186 = vmatprep.subr.mxu0 0.0
    %1187 = vmatpush1.xpose.msra.mxu0 0.0
    %1188 = vmatprep.subr.mxu0 0.0
    %1189 = vmatpush1.xpose.msra.mxu0 0.0
    %1190 = vmatprep.subr.mxu0 0.0
    %1191 = vmatpush1.xpose.msra.mxu0 0.0
    %1192 = vmatprep.subr.mxu0 0.0
    %1193 = vmatpush1.xpose.msra.mxu0 0.0
    %1194 = vmatprep.subr.mxu0 0.0
    %1195 = vmatpush1.xpose.msra.mxu0 0.0
    %1196 = vmatprep.subr.mxu0 0.0
    %1197 = vmatpush1.xpose.msra.mxu0 0.0
    %1198 = vmatprep.subr.mxu0 0.0
    %1199 = vmatpush1.xpose.msra.mxu0 0.0
    %1200 = vmatprep.subr.mxu0 0.0
    %1201 = vmatpush1.xpose.msra.mxu0 0.0
    %1202 = vmatprep.subr.mxu0 0.0
    %1203 = vmatpush1.xpose.msra.mxu0 0.0
    %1204 = vmatprep.subr.mxu0 0.0
    %1205 = vmatpush1.xpose.msra.mxu0 0.0
    %1206 = vmatprep.subr.mxu0 0.0
    %1207 = vmatpush1.xpose.msra.mxu0 0.0
    %1208 = vmatprep.subr.mxu0 0.0
    %1209 = vmatpush1.xpose.msra.mxu0 0.0
    %1210 = vmatprep.subr.mxu0 0.0
    %1211 = vmatpush1.xpose.msra.mxu0 0.0
    %1212 = vmatprep.subr.mxu0 0.0
    %1213 = vmatpush1.xpose.msra.mxu0 0.0
    %1214 = vmatprep.subr.mxu0 0.0
    %1215 = vmatpush1.xpose.msra.mxu0 0.0
    %1216 = vmatprep.mubr.f32.mxu0 0.0
    %1217 = vmatmul.mubr.f32.gmra.mrb[0].mxu0 %v1074
    %v1218 = vpop.f32.mrb[0].mxu0
    %v1219 = vadd.f32 0.0, %v1218
    %v1220 = vpop.f32.mrb[0].mxu0
    %1221 = vdwg.mxu0
    %v1223 = vsel %vm115, %v273, 0
    %1225 = vmatprep.subr.mxu0 0.0
    %1226 = vmatpush1.xpose.msra.mxu0 %v1077
    %1227 = vmatprep.subr.mxu0 0.0
    %1228 = vmatpush1.xpose.msra.mxu0 0.0
    %1229 = vmatprep.subr.mxu0 0.0
    %1230 = vmatpush1.xpose.msra.mxu0 0.0
    %1231 = vmatprep.subr.mxu0 0.0
    %1232 = vmatpush1.xpose.msra.mxu0 0.0
    %1233 = vmatprep.subr.mxu0 0.0
    %1234 = vmatpush1.xpose.msra.mxu0 0.0
    %1235 = vmatprep.subr.mxu0 0.0
    %1236 = vmatpush1.xpose.msra.mxu0 0.0
    %1237 = vmatprep.subr.mxu0 0.0
    %1238 = vmatpush1.xpose.msra.mxu0 0.0
    %1239 = vmatprep.subr.mxu0 0.0
    %1240 = vmatpush1.xpose.msra.mxu0 0.0
    %1241 = vmatprep.subr.mxu0 0.0
    %1242 = vmatpush1.xpose.msra.mxu0 0.0
    %1243 = vmatprep.subr.mxu0 0.0
    %1244 = vmatpush1.xpose.msra.mxu0 0.0
    %1245 = vmatprep.subr.mxu0 0.0
    %1246 = vmatpush1.xpose.msra.mxu0 0.0
    %1247 = vmatprep.subr.mxu0 0.0
    %1248 = vmatpush1.xpose.msra.mxu0 0.0
    %1249 = vmatprep.subr.mxu0 0.0
    %1250 = vmatpush1.xpose.msra.mxu0 0.0
    %1251 = vmatprep.subr.mxu0 0.0
    %1252 = vmatpush1.xpose.msra.mxu0 0.0
    %1253 = vmatprep.subr.mxu0 0.0
    %1254 = vmatpush1.xpose.msra.mxu0 0.0
    %1255 = vmatprep.subr.mxu0 0.0
    %1256 = vmatpush1.xpose.msra.mxu0 0.0
    %1257 = vmatprep.subr.mxu0 0.0
    %1258 = vmatpush1.xpose.msra.mxu0 0.0
    %1259 = vmatprep.subr.mxu0 0.0
    %1260 = vmatpush1.xpose.msra.mxu0 0.0
    %1261 = vmatprep.subr.mxu0 0.0
    %1262 = vmatpush1.xpose.msra.mxu0 0.0
    %1263 = vmatprep.subr.mxu0 0.0
    %1264 = vmatpush1.xpose.msra.mxu0 0.0
    %1265 = vmatprep.subr.mxu0 0.0
    %1266 = vmatpush1.xpose.msra.mxu0 0.0
    %1267 = vmatprep.subr.mxu0 0.0
    %1268 = vmatpush1.xpose.msra.mxu0 0.0
    %1269 = vmatprep.subr.mxu0 0.0
    %1270 = vmatpush1.xpose.msra.mxu0 0.0
    %1271 = vmatprep.subr.mxu0 0.0
    %1272 = vmatpush1.xpose.msra.mxu0 0.0
    %1273 = vmatprep.subr.mxu0 0.0
    %1274 = vmatpush1.xpose.msra.mxu0 0.0
    %1275 = vmatprep.subr.mxu0 0.0
    %1276 = vmatpush1.xpose.msra.mxu0 0.0
    %1277 = vmatprep.subr.mxu0 0.0
    %1278 = vmatpush1.xpose.msra.mxu0 0.0
    %1279 = vmatprep.subr.mxu0 0.0
    %1280 = vmatpush1.xpose.msra.mxu0 0.0
    %1281 = vmatprep.subr.mxu0 0.0
    %1282 = vmatpush1.xpose.msra.mxu0 0.0
    %1283 = vmatprep.subr.mxu0 0.0
    %1284 = vmatpush1.xpose.msra.mxu0 0.0
    %1285 = vmatprep.subr.mxu0 0.0
    %1286 = vmatpush1.xpose.msra.mxu0 0.0
    %1287 = vmatprep.subr.mxu0 0.0
    %1288 = vmatpush1.xpose.msra.mxu0 0.0
    %1289 = vmatprep.mubr.f32.mxu0 0.0
    %1290 = vmatmul.mubr.f32.gmra.mrb[0].mxu0 %v1223
    %v1291 = vpop.f32.mrb[0].mxu0
    %v1292 = vadd.f32 0.0, %v1291
    %v1293 = vpop.f32.mrb[0].mxu0
    %1294 = vdwg.mxu0
    %1295 = vmatprep.subr.mxu0 0.0
    %1296 = vmatpush1.xpose.msra.mxu0 %v1150
    %1297 = vmatprep.subr.mxu0 0.0
    %1298 = vmatpush1.xpose.msra.mxu0 0.0
    %1299 = vmatprep.subr.mxu0 0.0
    %1300 = vmatpush1.xpose.msra.mxu0 0.0
    %1301 = vmatprep.subr.mxu0 0.0
    %1302 = vmatpush1.xpose.msra.mxu0 0.0
    %1303 = vmatprep.subr.mxu0 0.0
    %1304 = vmatpush1.xpose.msra.mxu0 0.0
    %1305 = vmatprep.subr.mxu0 0.0
    %1306 = vmatpush1.xpose.msra.mxu0 0.0
    %1307 = vmatprep.subr.mxu0 0.0
    %1308 = vmatpush1.xpose.msra.mxu0 0.0
    %1309 = vmatprep.subr.mxu0 0.0
    %1310 = vmatpush1.xpose.msra.mxu0 0.0
    %1311 = vmatprep.subr.mxu0 0.0
    %1312 = vmatpush1.xpose.msra.mxu0 0.0
    %1313 = vmatprep.subr.mxu0 0.0
    %1314 = vmatpush1.xpose.msra.mxu0 0.0
    %1315 = vmatprep.subr.mxu0 0.0
    %1316 = vmatpush1.xpose.msra.mxu0 0.0
    %1317 = vmatprep.subr.mxu0 0.0
    %1318 = vmatpush1.xpose.msra.mxu0 0.0
    %1319 = vmatprep.subr.mxu0 0.0
    %1320 = vmatpush1.xpose.msra.mxu0 0.0
    %1321 = vmatprep.subr.mxu0 0.0
    %1322 = vmatpush1.xpose.msra.mxu0 0.0
    %1323 = vmatprep.subr.mxu0 0.0
    %1324 = vmatpush1.xpose.msra.mxu0 0.0
    %1325 = vmatprep.subr.mxu0 0.0
    %1326 = vmatpush1.xpose.msra.mxu0 0.0
    %1327 = vmatprep.subr.mxu0 0.0
    %1328 = vmatpush1.xpose.msra.mxu0 0.0
    %1329 = vmatprep.subr.mxu0 0.0
    %1330 = vmatpush1.xpose.msra.mxu0 0.0
    %1331 = vmatprep.subr.mxu0 0.0
    %1332 = vmatpush1.xpose.msra.mxu0 0.0
    %1333 = vmatprep.subr.mxu0 0.0
    %1334 = vmatpush1.xpose.msra.mxu0 0.0
    %1335 = vmatprep.subr.mxu0 0.0
    %1336 = vmatpush1.xpose.msra.mxu0 0.0
    %1337 = vmatprep.subr.mxu0 0.0
    %1338 = vmatpush1.xpose.msra.mxu0 0.0
    %1339 = vmatprep.subr.mxu0 0.0
    %1340 = vmatpush1.xpose.msra.mxu0 0.0
    %1341 = vmatprep.subr.mxu0 0.0
    %1342 = vmatpush1.xpose.msra.mxu0 0.0
    %1343 = vmatprep.subr.mxu0 0.0
    %1344 = vmatpush1.xpose.msra.mxu0 0.0
    %1345 = vmatprep.subr.mxu0 0.0
    %1346 = vmatpush1.xpose.msra.mxu0 0.0
    %1347 = vmatprep.subr.mxu0 0.0
    %1348 = vmatpush1.xpose.msra.mxu0 0.0
    %1349 = vmatprep.subr.mxu0 0.0
    %1350 = vmatpush1.xpose.msra.mxu0 0.0
    %1351 = vmatprep.subr.mxu0 0.0
    %1352 = vmatpush1.xpose.msra.mxu0 0.0
    %1353 = vmatprep.subr.mxu0 0.0
    %1354 = vmatpush1.xpose.msra.mxu0 0.0
    %1355 = vmatprep.subr.mxu0 0.0
    %1356 = vmatpush1.xpose.msra.mxu0 0.0
    %1357 = vmatprep.subr.mxu0 0.0
    %1358 = vmatpush1.xpose.msra.mxu0 0.0
    %1359 = vmatprep.mubr.f32.mxu0 0.0
    %1360 = vmatmul.mubr.f32.gmra.mrb[0].mxu0 %v1223
    %v1361 = vpop.f32.mrb[0].mxu0
    %v1362 = vadd.f32 0.0, %v1361
    %v1363 = vpop.f32.mrb[0].mxu0
    %1364 = vdwg.mxu0
    %v1365 = vmul.f32 %v1146, 0.17677669
    %v1366 = vmul.f32 %v1219, 0.17677669
    %v1367 = vmul.f32 %v1292, 0.17677669
    %v1368 = vmul.f32 %v1362, 0.17677669
    %v1369 = vsel %vm736, %v1365, -inf
    %1370 = vmax.xlane.f32.xlu0 %v1369
    %v1371 = vpop.xlane.xlu0 %1370
    %v1372 = vsel %vm736, %v1366, -inf
    %1373 = vmax.xlane.f32.xlu0 %v1372
    %v1374 = vpop.xlane.xlu0 %1373
    %v1375 = vsel %vm736, %v1367, -inf
    %1376 = vmax.xlane.f32.xlu0 %v1375
    %v1377 = vpop.xlane.xlu0 %1376
    %v1378 = vsel %vm736, %v1368, -inf
    %1379 = vmax.xlane.f32.xlu0 %v1378
    %v1380 = vpop.xlane.xlu0 %1379
    %v1381 = vsub.f32 %v1365, %v1371
    %v1382 = vsub.f32 %v1366, %v1374
    %v1383 = vsub.f32 %v1367, %v1377
    %v1384 = vsub.f32 %v1368, %v1380
    %v1385 = vmul.f32 %v1381, 1.442695
    %v1386 = vpow.pop %v1385
    %v1387 = vmul.f32 %v1382, 1.442695
    %v1388 = vpow.pop %v1387
    %v1389 = vmul.f32 %v1383, 1.442695
    %v1390 = vpow.pop %v1389
    %v1391 = vmul.f32 %v1384, 1.442695
    %v1392 = vpow.pop %v1391
    %v1393 = vsel %vm736, %v1386, 0.0
    %1394 = vadd.xlane.f32.xlu0 %v1393
    %v1395 = vpop.xlane.xlu0 %1394
    %v1396 = vsel %vm736, %v1388, 0.0
    %1397 = vadd.xlane.f32.xlu0 %v1396
    %v1398 = vpop.xlane.xlu0 %1397
    %v1399 = vsel %vm736, %v1390, 0.0
    %1400 = vadd.xlane.f32.xlu0 %v1399
    %v1401 = vpop.xlane.xlu0 %1400
    %v1402 = vsel %vm736, %v1392, 0.0
    %1403 = vadd.xlane.f32.xlu0 %v1402
    %v1404 = vpop.xlane.xlu0 %1403
    %v1405 = vrcp.pop %v1395
    %v1406 = vrcp.pop %v1398
    %v1407 = vrcp.pop %v1401
    %v1408 = vrcp.pop %v1404
    %v1409 = vmul.f32 %v1386, %v1405
    %v1410 = vmul.f32 %v1388, %v1406
    %v1411 = vmul.f32 %v1390, %v1407
    %v1412 = vmul.f32 %v1392, %v1408
    %v1414 = vsel %vm736, %v1409, 0
    %1416 = vmatprep.subr.mxu0 0.0
    %1417 = vmatpush1.msra.mxu0 %v109
    %1418 = vmatprep.subr.mxu0 0.0
    %1419 = vmatpush1.msra.mxu0 0.0
    %1420 = vmatprep.subr.mxu0 0.0
    %1421 = vmatpush1.msra.mxu0 0.0
    %1422 = vmatprep.subr.mxu0 0.0
    %1423 = vmatpush1.msra.mxu0 0.0
    %1424 = vmatprep.subr.mxu0 0.0
    %1425 = vmatpush1.msra.mxu0 0.0
    %1426 = vmatprep.subr.mxu0 0.0
    %1427 = vmatpush1.msra.mxu0 0.0
    %1428 = vmatprep.subr.mxu0 0.0
    %1429 = vmatpush1.msra.mxu0 0.0
    %1430 = vmatprep.subr.mxu0 0.0
    %1431 = vmatpush1.msra.mxu0 0.0
    %1432 = vmatprep.subr.mxu0 0.0
    %1433 = vmatpush1.msra.mxu0 0.0
    %1434 = vmatprep.subr.mxu0 0.0
    %1435 = vmatpush1.msra.mxu0 0.0
    %1436 = vmatprep.subr.mxu0 0.0
    %1437 = vmatpush1.msra.mxu0 0.0
    %1438 = vmatprep.subr.mxu0 0.0
    %1439 = vmatpush1.msra.mxu0 0.0
    %1440 = vmatprep.subr.mxu0 0.0
    %1441 = vmatpush1.msra.mxu0 0.0
    %1442 = vmatprep.subr.mxu0 0.0
    %1443 = vmatpush1.msra.mxu0 0.0
    %1444 = vmatprep.subr.mxu0 0.0
    %1445 = vmatpush1.msra.mxu0 0.0
    %1446 = vmatprep.subr.mxu0 0.0
    %1447 = vmatpush1.msra.mxu0 0.0
    %1448 = vmatprep.subr.mxu0 0.0
    %1449 = vmatpush1.msra.mxu0 0.0
    %1450 = vmatprep.subr.mxu0 0.0
    %1451 = vmatpush1.msra.mxu0 0.0
    %1452 = vmatprep.subr.mxu0 0.0
    %1453 = vmatpush1.msra.mxu0 0.0
    %1454 = vmatprep.subr.mxu0 0.0
    %1455 = vmatpush1.msra.mxu0 0.0
    %1456 = vmatprep.subr.mxu0 0.0
    %1457 = vmatpush1.msra.mxu0 0.0
    %1458 = vmatprep.subr.mxu0 0.0
    %1459 = vmatpush1.msra.mxu0 0.0
    %1460 = vmatprep.subr.mxu0 0.0
    %1461 = vmatpush1.msra.mxu0 0.0
    %1462 = vmatprep.subr.mxu0 0.0
    %1463 = vmatpush1.msra.mxu0 0.0
    %1464 = vmatprep.subr.mxu0 0.0
    %1465 = vmatpush1.msra.mxu0 0.0
    %1466 = vmatprep.subr.mxu0 0.0
    %1467 = vmatpush1.msra.mxu0 0.0
    %1468 = vmatprep.subr.mxu0 0.0
    %1469 = vmatpush1.msra.mxu0 0.0
    %1470 = vmatprep.subr.mxu0 0.0
    %1471 = vmatpush1.msra.mxu0 0.0
    %1472 = vmatprep.subr.mxu0 0.0
    %1473 = vmatpush1.msra.mxu0 0.0
    %1474 = vmatprep.subr.mxu0 0.0
    %1475 = vmatpush1.msra.mxu0 0.0
    %1476 = vmatprep.subr.mxu0 0.0
    %1477 = vmatpush1.msra.mxu0 0.0
    %1478 = vmatprep.subr.mxu0 0.0
    %1479 = vmatpush1.msra.mxu0 0.0
    %1480 = vmatprep.mubr.f32.mxu0 0.0
    %1481 = vmatmul.mubr.f32.gmra.mrb[0].mxu0 %v1414
    %v1482 = vpop.f32.mrb[0].mxu0
    %v1483 = vadd.f32 0.0, %v1482
    %v1484 = vpop.f32.mrb[0].mxu0
    %1485 = vdwg.mxu0
    %v1487 = vsel %vm736, %v1410, 0
    %1489 = vmatprep.subr.mxu0 0.0
    %1490 = vmatpush1.msra.mxu0 %v110
    %1491 = vmatprep.subr.mxu0 0.0
    %1492 = vmatpush1.msra.mxu0 0.0
    %1493 = vmatprep.subr.mxu0 0.0
    %1494 = vmatpush1.msra.mxu0 0.0
    %1495 = vmatprep.subr.mxu0 0.0
    %1496 = vmatpush1.msra.mxu0 0.0
    %1497 = vmatprep.subr.mxu0 0.0
    %1498 = vmatpush1.msra.mxu0 0.0
    %1499 = vmatprep.subr.mxu0 0.0
    %1500 = vmatpush1.msra.mxu0 0.0
    %1501 = vmatprep.subr.mxu0 0.0
    %1502 = vmatpush1.msra.mxu0 0.0
    %1503 = vmatprep.subr.mxu0 0.0
    %1504 = vmatpush1.msra.mxu0 0.0
    %1505 = vmatprep.subr.mxu0 0.0
    %1506 = vmatpush1.msra.mxu0 0.0
    %1507 = vmatprep.subr.mxu0 0.0
    %1508 = vmatpush1.msra.mxu0 0.0
    %1509 = vmatprep.subr.mxu0 0.0
    %1510 = vmatpush1.msra.mxu0 0.0
    %1511 = vmatprep.subr.mxu0 0.0
    %1512 = vmatpush1.msra.mxu0 0.0
    %1513 = vmatprep.subr.mxu0 0.0
    %1514 = vmatpush1.msra.mxu0 0.0
    %1515 = vmatprep.subr.mxu0 0.0
    %1516 = vmatpush1.msra.mxu0 0.0
    %1517 = vmatprep.subr.mxu0 0.0
    %1518 = vmatpush1.msra.mxu0 0.0
    %1519 = vmatprep.subr.mxu0 0.0
    %1520 = vmatpush1.msra.mxu0 0.0
    %1521 = vmatprep.subr.mxu0 0.0
    %1522 = vmatpush1.msra.mxu0 0.0
    %1523 = vmatprep.subr.mxu0 0.0
    %1524 = vmatpush1.msra.mxu0 0.0
    %1525 = vmatprep.subr.mxu0 0.0
    %1526 = vmatpush1.msra.mxu0 0.0
    %1527 = vmatprep.subr.mxu0 0.0
    %1528 = vmatpush1.msra.mxu0 0.0
    %1529 = vmatprep.subr.mxu0 0.0
    %1530 = vmatpush1.msra.mxu0 0.0
    %1531 = vmatprep.subr.mxu0 0.0
    %1532 = vmatpush1.msra.mxu0 0.0
    %1533 = vmatprep.subr.mxu0 0.0
    %1534 = vmatpush1.msra.mxu0 0.0
    %1535 = vmatprep.subr.mxu0 0.0
    %1536 = vmatpush1.msra.mxu0 0.0
    %1537 = vmatprep.subr.mxu0 0.0
    %1538 = vmatpush1.msra.mxu0 0.0
    %1539 = vmatprep.subr.mxu0 0.0
    %1540 = vmatpush1.msra.mxu0 0.0
    %1541 = vmatprep.subr.mxu0 0.0
    %1542 = vmatpush1.msra.mxu0 0.0
    %1543 = vmatprep.subr.mxu0 0.0
    %1544 = vmatpush1.msra.mxu0 0.0
    %1545 = vmatprep.subr.mxu0 0.0
    %1546 = vmatpush1.msra.mxu0 0.0
    %1547 = vmatprep.subr.mxu0 0.0
    %1548 = vmatpush1.msra.mxu0 0.0
    %1549 = vmatprep.subr.mxu0 0.0
    %1550 = vmatpush1.msra.mxu0 0.0
    %1551 = vmatprep.subr.mxu0 0.0
    %1552 = vmatpush1.msra.mxu0 0.0
    %1553 = vmatprep.mubr.f32.mxu0 0.0
    %1554 = vmatmul.mubr.f32.gmra.mrb[0].mxu0 %v1487
    %v1555 = vpop.f32.mrb[0].mxu0
    %v1556 = vadd.f32 0.0, %v1555
    %v1557 = vpop.f32.mrb[0].mxu0
    %1558 = vdwg.mxu0
    %v1560 = vsel %vm736, %v1411, 0
    %1562 = vmatprep.subr.mxu0 0.0
    %1563 = vmatpush1.msra.mxu0 %v109
    %1564 = vmatprep.subr.mxu0 0.0
    %1565 = vmatpush1.msra.mxu0 0.0
    %1566 = vmatprep.subr.mxu0 0.0
    %1567 = vmatpush1.msra.mxu0 0.0
    %1568 = vmatprep.subr.mxu0 0.0
    %1569 = vmatpush1.msra.mxu0 0.0
    %1570 = vmatprep.subr.mxu0 0.0
    %1571 = vmatpush1.msra.mxu0 0.0
    %1572 = vmatprep.subr.mxu0 0.0
    %1573 = vmatpush1.msra.mxu0 0.0
    %1574 = vmatprep.subr.mxu0 0.0
    %1575 = vmatpush1.msra.mxu0 0.0
    %1576 = vmatprep.subr.mxu0 0.0
    %1577 = vmatpush1.msra.mxu0 0.0
    %1578 = vmatprep.subr.mxu0 0.0
    %1579 = vmatpush1.msra.mxu0 0.0
    %1580 = vmatprep.subr.mxu0 0.0
    %1581 = vmatpush1.msra.mxu0 0.0
    %1582 = vmatprep.subr.mxu0 0.0
    %1583 = vmatpush1.msra.mxu0 0.0
    %1584 = vmatprep.subr.mxu0 0.0
    %1585 = vmatpush1.msra.mxu0 0.0
    %1586 = vmatprep.subr.mxu0 0.0
    %1587 = vmatpush1.msra.mxu0 0.0
    %1588 = vmatprep.subr.mxu0 0.0
    %1589 = vmatpush1.msra.mxu0 0.0
    %1590 = vmatprep.subr.mxu0 0.0
    %1591 = vmatpush1.msra.mxu0 0.0
    %1592 = vmatprep.subr.mxu0 0.0
    %1593 = vmatpush1.msra.mxu0 0.0
    %1594 = vmatprep.subr.mxu0 0.0
    %1595 = vmatpush1.msra.mxu0 0.0
    %1596 = vmatprep.subr.mxu0 0.0
    %1597 = vmatpush1.msra.mxu0 0.0
    %1598 = vmatprep.subr.mxu0 0.0
    %1599 = vmatpush1.msra.mxu0 0.0
    %1600 = vmatprep.subr.mxu0 0.0
    %1601 = vmatpush1.msra.mxu0 0.0
    %1602 = vmatprep.subr.mxu0 0.0
    %1603 = vmatpush1.msra.mxu0 0.0
    %1604 = vmatprep.subr.mxu0 0.0
    %1605 = vmatpush1.msra.mxu0 0.0
    %1606 = vmatprep.subr.mxu0 0.0
    %1607 = vmatpush1.msra.mxu0 0.0
    %1608 = vmatprep.subr.mxu0 0.0
    %1609 = vmatpush1.msra.mxu0 0.0
    %1610 = vmatprep.subr.mxu0 0.0
    %1611 = vmatpush1.msra.mxu0 0.0
    %1612 = vmatprep.subr.mxu0 0.0
    %1613 = vmatpush1.msra.mxu0 0.0
    %1614 = vmatprep.subr.mxu0 0.0
    %1615 = vmatpush1.msra.mxu0 0.0
    %1616 = vmatprep.subr.mxu0 0.0
    %1617 = vmatpush1.msra.mxu0 0.0
    %1618 = vmatprep.subr.mxu0 0.0
    %1619 = vmatpush1.msra.mxu0 0.0
    %1620 = vmatprep.subr.mxu0 0.0
    %1621 = vmatpush1.msra.mxu0 0.0
    %1622 = vmatprep.subr.mxu0 0.0
    %1623 = vmatpush1.msra.mxu0 0.0
    %1624 = vmatprep.subr.mxu0 0.0
    %1625 = vmatpush1.msra.mxu0 0.0
    %1626 = vmatprep.mubr.f32.mxu0 0.0
    %1627 = vmatmul.mubr.f32.gmra.mrb[0].mxu0 %v1560
    %v1628 = vpop.f32.mrb[0].mxu0
    %v1629 = vadd.f32 0.0, %v1628
    %v1630 = vpop.f32.mrb[0].mxu0
    %1631 = vdwg.mxu0
    %v1633 = vsel %vm736, %v1412, 0
    %1635 = vmatprep.subr.mxu0 0.0
    %1636 = vmatpush1.msra.mxu0 %v110
    %1637 = vmatprep.subr.mxu0 0.0
    %1638 = vmatpush1.msra.mxu0 0.0
    %1639 = vmatprep.subr.mxu0 0.0
    %1640 = vmatpush1.msra.mxu0 0.0
    %1641 = vmatprep.subr.mxu0 0.0
    %1642 = vmatpush1.msra.mxu0 0.0
    %1643 = vmatprep.subr.mxu0 0.0
    %1644 = vmatpush1.msra.mxu0 0.0
    %1645 = vmatprep.subr.mxu0 0.0
    %1646 = vmatpush1.msra.mxu0 0.0
    %1647 = vmatprep.subr.mxu0 0.0
    %1648 = vmatpush1.msra.mxu0 0.0
    %1649 = vmatprep.subr.mxu0 0.0
    %1650 = vmatpush1.msra.mxu0 0.0
    %1651 = vmatprep.subr.mxu0 0.0
    %1652 = vmatpush1.msra.mxu0 0.0
    %1653 = vmatprep.subr.mxu0 0.0
    %1654 = vmatpush1.msra.mxu0 0.0
    %1655 = vmatprep.subr.mxu0 0.0
    %1656 = vmatpush1.msra.mxu0 0.0
    %1657 = vmatprep.subr.mxu0 0.0
    %1658 = vmatpush1.msra.mxu0 0.0
    %1659 = vmatprep.subr.mxu0 0.0
    %1660 = vmatpush1.msra.mxu0 0.0
    %1661 = vmatprep.subr.mxu0 0.0
    %1662 = vmatpush1.msra.mxu0 0.0
    %1663 = vmatprep.subr.mxu0 0.0
    %1664 = vmatpush1.msra.mxu0 0.0
    %1665 = vmatprep.subr.mxu0 0.0
    %1666 = vmatpush1.msra.mxu0 0.0
    %1667 = vmatprep.subr.mxu0 0.0
    %1668 = vmatpush1.msra.mxu0 0.0
    %1669 = vmatprep.subr.mxu0 0.0
    %1670 = vmatpush1.msra.mxu0 0.0
    %1671 = vmatprep.subr.mxu0 0.0
    %1672 = vmatpush1.msra.mxu0 0.0
    %1673 = vmatprep.subr.mxu0 0.0
    %1674 = vmatpush1.msra.mxu0 0.0
    %1675 = vmatprep.subr.mxu0 0.0
    %1676 = vmatpush1.msra.mxu0 0.0
    %1677 = vmatprep.subr.mxu0 0.0
    %1678 = vmatpush1.msra.mxu0 0.0
    %1679 = vmatprep.subr.mxu0 0.0
    %1680 = vmatpush1.msra.mxu0 0.0
    %1681 = vmatprep.subr.mxu0 0.0
    %1682 = vmatpush1.msra.mxu0 0.0
    %1683 = vmatprep.subr.mxu0 0.0
    %1684 = vmatpush1.msra.mxu0 0.0
    %1685 = vmatprep.subr.mxu0 0.0
    %1686 = vmatpush1.msra.mxu0 0.0
    %1687 = vmatprep.subr.mxu0 0.0
    %1688 = vmatpush1.msra.mxu0 0.0
    %1689 = vmatprep.subr.mxu0 0.0
    %1690 = vmatpush1.msra.mxu0 0.0
    %1691 = vmatprep.subr.mxu0 0.0
    %1692 = vmatpush1.msra.mxu0 0.0
    %1693 = vmatprep.subr.mxu0 0.0
    %1694 = vmatpush1.msra.mxu0 0.0
    %1695 = vmatprep.subr.mxu0 0.0
    %1696 = vmatpush1.msra.mxu0 0.0
    %1697 = vmatprep.subr.mxu0 0.0
    %1698 = vmatpush1.msra.mxu0 0.0
    %1699 = vmatprep.mubr.f32.mxu0 0.0
    %1700 = vmatmul.mubr.f32.gmra.mrb[0].mxu0 %v1633
    %v1701 = vpop.f32.mrb[0].mxu0
    %v1702 = vadd.f32 0.0, %v1701
    %v1703 = vpop.f32.mrb[0].mxu0
    %1704 = vdwg.mxu0
    %v1705 = vld [vmem:[%s9] sm:$0xff]
    %v1706 = vld [vmem:[%s9 + $0x8] sm:$0xff]
    %v1707 = vld [vmem:[%s9 + $0x10] sm:$0xff]
    %v1708 = vld [vmem:[%s9 + $0x18] sm:$0xff]
    %v1710 = vsel %vm115, %v1483, 0
    %v1713 = vsel %vm115, %v1556, 0
    %v1716 = vsel %vm115, %v1629, 0
    %v1719 = vsel %vm115, %v1702, 0
    %1721 = vmatprep.subr.mxu0 0.0
    %1722 = vmatpush1.msra.mxu0 %v1705
    %1723 = vmatprep.subr.mxu0 0.0
    %1724 = vmatpush1.msra.mxu0 %v1706
    %1725 = vmatprep.subr.mxu0 0.0
    %1726 = vmatpush1.msra.mxu0 %v1707
    %1727 = vmatprep.subr.mxu0 0.0
    %1728 = vmatpush1.msra.mxu0 %v1708
    %1729 = vmatprep.subr.mxu0 0.0
    %1730 = vmatpush1.msra.mxu0 0.0
    %1731 = vmatprep.subr.mxu0 0.0
    %1732 = vmatpush1.msra.mxu0 0.0
    %1733 = vmatprep.subr.mxu0 0.0
    %1734 = vmatpush1.msra.mxu0 0.0
    %1735 = vmatprep.subr.mxu0 0.0
    %1736 = vmatpush1.msra.mxu0 0.0
    %1737 = vmatprep.subr.mxu0 0.0
    %1738 = vmatpush1.msra.mxu0 0.0
    %1739 = vmatprep.subr.mxu0 0.0
    %1740 = vmatpush1.msra.mxu0 0.0
    %1741 = vmatprep.subr.mxu0 0.0
    %1742 = vmatpush1.msra.mxu0 0.0
    %1743 = vmatprep.subr.mxu0 0.0
    %1744 = vmatpush1.msra.mxu0 0.0
    %1745 = vmatprep.subr.mxu0 0.0
    %1746 = vmatpush1.msra.mxu0 0.0
    %1747 = vmatprep.subr.mxu0 0.0
    %1748 = vmatpush1.msra.mxu0 0.0
    %1749 = vmatprep.subr.mxu0 0.0
    %1750 = vmatpush1.msra.mxu0 0.0
    %1751 = vmatprep.subr.mxu0 0.0
    %1752 = vmatpush1.msra.mxu0 0.0
    %1753 = vmatprep.subr.mxu0 0.0
    %1754 = vmatpush1.msra.mxu0 0.0
    %1755 = vmatprep.subr.mxu0 0.0
    %1756 = vmatpush1.msra.mxu0 0.0
    %1757 = vmatprep.subr.mxu0 0.0
    %1758 = vmatpush1.msra.mxu0 0.0
    %1759 = vmatprep.subr.mxu0 0.0
    %1760 = vmatpush1.msra.mxu0 0.0
    %1761 = vmatprep.subr.mxu0 0.0
    %1762 = vmatpush1.msra.mxu0 0.0
    %1763 = vmatprep.subr.mxu0 0.0
    %1764 = vmatpush1.msra.mxu0 0.0
    %1765 = vmatprep.subr.mxu0 0.0
    %1766 = vmatpush1.msra.mxu0 0.0
    %1767 = vmatprep.subr.mxu0 0.0
    %1768 = vmatpush1.msra.mxu0 0.0
    %1769 = vmatprep.subr.mxu0 0.0
    %1770 = vmatpush1.msra.mxu0 0.0
    %1771 = vmatprep.subr.mxu0 0.0
    %1772 = vmatpush1.msra.mxu0 0.0
    %1773 = vmatprep.subr.mxu0 0.0
    %1774 = vmatpush1.msra.mxu0 0.0
    %1775 = vmatprep.subr.mxu0 0.0
    %1776 = vmatpush1.msra.mxu0 0.0
    %1777 = vmatprep.subr.mxu0 0.0
    %1778 = vmatpush1.msra.mxu0 0.0
    %1779 = vmatprep.subr.mxu0 0.0
    %1780 = vmatpush1.msra.mxu0 0.0
    %1781 = vmatprep.subr.mxu0 0.0
    %1782 = vmatpush1.msra.mxu0 0.0
    %1783 = vmatprep.subr.mxu0 0.0
    %1784 = vmatpush1.msra.mxu0 0.0
    %1785 = vmatprep.mubr.f32.mxu0 0.0
    %1786 = vmatmul.mubr.f32.gmra.mrb[0].mxu0 %v1710
    %v1787 = vpop.f32.mrb[0].mxu0
    %v1788 = vadd.f32 0.0, %v1787
    %v1789 = vpop.f32.mrb[0].mxu0
    %1790 = vmatprep.mubr.f32.mxu0 0.0
    %1791 = vmatmul.mubr.f32.gmra.mrb[0].mxu0 %v1713
    %v1792 = vpop.f32.mrb[0].mxu0
    %v1793 = vadd.f32 0.0, %v1792
    %v1794 = vpop.f32.mrb[0].mxu0
    %1795 = vmatprep.mubr.f32.mxu0 0.0
    %1796 = vmatmul.mubr.f32.gmra.mrb[0].mxu0 %v1716
    %v1797 = vpop.f32.mrb[0].mxu0
    %v1798 = vadd.f32 0.0, %v1797
    %v1799 = vpop.f32.mrb[0].mxu0
    %1800 = vmatprep.mubr.f32.mxu0 0.0
    %1801 = vmatmul.mubr.f32.gmra.mrb[0].mxu0 %v1719
    %v1802 = vpop.f32.mrb[0].mxu0
    %v1803 = vadd.f32 0.0, %v1802
    %v1804 = vpop.f32.mrb[0].mxu0
    %1805 = vdwg.mxu0
    %v1806 = vld [vmem:[%s7] sm:$0xff]
    %v1807 = vld [vmem:[%s7 + $0x8] sm:$0xff]
    %v1808 = vld [vmem:[%s7 + $0x10] sm:$0xff]
    %v1809 = vld [vmem:[%s7 + $0x18] sm:$0xff]
    %1810 = vmatprep.subr.mxu0 0.0
    %1811 = vmatpush1.msra.mxu0 %v1806
    %1812 = vmatprep.subr.mxu0 0.0
    %1813 = vmatpush1.msra.mxu0 %v1807
    %1814 = vmatprep.subr.mxu0 0.0
    %1815 = vmatpush1.msra.mxu0 %v1808
    %1816 = vmatprep.subr.mxu0 0.0
    %1817 = vmatpush1.msra.mxu0 %v1809
    %1818 = vmatprep.subr.mxu0 0.0
    %1819 = vmatpush1.msra.mxu0 0.0
    %1820 = vmatprep.subr.mxu0 0.0
    %1821 = vmatpush1.msra.mxu0 0.0
    %1822 = vmatprep.subr.mxu0 0.0
    %1823 = vmatpush1.msra.mxu0 0.0
    %1824 = vmatprep.subr.mxu0 0.0
    %1825 = vmatpush1.msra.mxu0 0.0
    %1826 = vmatprep.subr.mxu0 0.0
    %1827 = vmatpush1.msra.mxu0 0.0
    %1828 = vmatprep.subr.mxu0 0.0
    %1829 = vmatpush1.msra.mxu0 0.0
    %1830 = vmatprep.subr.mxu0 0.0
    %1831 = vmatpush1.msra.mxu0 0.0
    %1832 = vmatprep.subr.mxu0 0.0
    %1833 = vmatpush1.msra.mxu0 0.0
    %1834 = vmatprep.subr.mxu0 0.0
    %1835 = vmatpush1.msra.mxu0 0.0
    %1836 = vmatprep.subr.mxu0 0.0
    %1837 = vmatpush1.msra.mxu0 0.0
    %1838 = vmatprep.subr.mxu0 0.0
    %1839 = vmatpush1.msra.mxu0 0.0
    %1840 = vmatprep.subr.mxu0 0.0
    %1841 = vmatpush1.msra.mxu0 0.0
    %1842 = vmatprep.subr.mxu0 0.0
    %1843 = vmatpush1.msra.mxu0 0.0
    %1844 = vmatprep.subr.mxu0 0.0
    %1845 = vmatpush1.msra.mxu0 0.0
    %1846 = vmatprep.subr.mxu0 0.0
    %1847 = vmatpush1.msra.mxu0 0.0
    %1848 = vmatprep.subr.mxu0 0.0
    %1849 = vmatpush1.msra.mxu0 0.0
    %1850 = vmatprep.subr.mxu0 0.0
    %1851 = vmatpush1.msra.mxu0 0.0
    %1852 = vmatprep.subr.mxu0 0.0
    %1853 = vmatpush1.msra.mxu0 0.0
    %1854 = vmatprep.subr.mxu0 0.0
    %1855 = vmatpush1.msra.mxu0 0.0
    %1856 = vmatprep.subr.mxu0 0.0
    %1857 = vmatpush1.msra.mxu0 0.0
    %1858 = vmatprep.subr.mxu0 0.0
    %1859 = vmatpush1.msra.mxu0 0.0
    %1860 = vmatprep.subr.mxu0 0.0
    %1861 = vmatpush1.msra.mxu0 0.0
    %1862 = vmatprep.subr.mxu0 0.0
    %1863 = vmatpush1.msra.mxu0 0.0
    %1864 = vmatprep.subr.mxu0 0.0
    %1865 = vmatpush1.msra.mxu0 0.0
    %1866 = vmatprep.subr.mxu0 0.0
    %1867 = vmatpush1.msra.mxu0 0.0
    %1868 = vmatprep.subr.mxu0 0.0
    %1869 = vmatpush1.msra.mxu0 0.0
    %1870 = vmatprep.subr.mxu0 0.0
    %1871 = vmatpush1.msra.mxu0 0.0
    %1872 = vmatprep.subr.mxu0 0.0
    %1873 = vmatpush1.msra.mxu0 0.0
    %1874 = vmatprep.mubr.f32.mxu0 0.0
    %1875 = vmatmul.mubr.f32.gmra.mrb[0].mxu0 %v1710
    %v1876 = vpop.f32.mrb[0].mxu0
    %v1877 = vadd.f32 0.0, %v1876
    %v1878 = vpop.f32.mrb[0].mxu0
    %1879 = vmatprep.mubr.f32.mxu0 0.0
    %1880 = vmatmul.mubr.f32.gmra.mrb[0].mxu0 %v1713
    %v1881 = vpop.f32.mrb[0].mxu0
    %v1882 = vadd.f32 0.0, %v1881
    %v1883 = vpop.f32.mrb[0].mxu0
    %1884 = vmatprep.mubr.f32.mxu0 0.0
    %1885 = vmatmul.mubr.f32.gmra.mrb[0].mxu0 %v1716
    %v1886 = vpop.f32.mrb[0].mxu0
    %v1887 = vadd.f32 0.0, %v1886
    %v1888 = vpop.f32.mrb[0].mxu0
    %1889 = vmatprep.mubr.f32.mxu0 0.0
    %1890 = vmatmul.mubr.f32.gmra.mrb[0].mxu0 %v1719
    %v1891 = vpop.f32.mrb[0].mxu0
    %v1892 = vadd.f32 0.0, %v1891
    %v1893 = vpop.f32.mrb[0].mxu0
    %1894 = vdwg.mxu0
    %v1895 = vld [vmem:[%s8] sm:$0xff]
    %v1896 = vld [vmem:[%s8 + $0x8] sm:$0xff]
    %v1897 = vld [vmem:[%s8 + $0x10] sm:$0xff]
    %v1898 = vld [vmem:[%s8 + $0x18] sm:$0xff]
    %v1900 = vsel %vm115, %v851, 0
    %v1903 = vsel %vm115, %v924, 0
    %v1906 = vsel %vm115, %v997, 0
    %v1909 = vsel %vm115, %v1070, 0
    %1911 = vmatprep.subr.mxu0 0.0
    %1912 = vmatpush1.msra.mxu0 %v1895
    %1913 = vmatprep.subr.mxu0 0.0
    %1914 = vmatpush1.msra.mxu0 %v1896
    %1915 = vmatprep.subr.mxu0 0.0
    %1916 = vmatpush1.msra.mxu0 %v1897
    %1917 = vmatprep.subr.mxu0 0.0
    %1918 = vmatpush1.msra.mxu0 %v1898
    %1919 = vmatprep.subr.mxu0 0.0
    %1920 = vmatpush1.msra.mxu0 0.0
    %1921 = vmatprep.subr.mxu0 0.0
    %1922 = vmatpush1.msra.mxu0 0.0
    %1923 = vmatprep.subr.mxu0 0.0
    %1924 = vmatpush1.msra.mxu0 0.0
    %1925 = vmatprep.subr.mxu0 0.0
    %1926 = vmatpush1.msra.mxu0 0.0
    %1927 = vmatprep.subr.mxu0 0.0
    %1928 = vmatpush1.msra.mxu0 0.0
    %1929 = vmatprep.subr.mxu0 0.0
    %1930 = vmatpush1.msra.mxu0 0.0
    %1931 = vmatprep.subr.mxu0 0.0
    %1932 = vmatpush1.msra.mxu0 0.0
    %1933 = vmatprep.subr.mxu0 0.0
    %1934 = vmatpush1.msra.mxu0 0.0
    %1935 = vmatprep.subr.mxu0 0.0
    %1936 = vmatpush1.msra.mxu0 0.0
    %1937 = vmatprep.subr.mxu0 0.0
    %1938 = vmatpush1.msra.mxu0 0.0
    %1939 = vmatprep.subr.mxu0 0.0
    %1940 = vmatpush1.msra.mxu0 0.0
    %1941 = vmatprep.subr.mxu0 0.0
    %1942 = vmatpush1.msra.mxu0 0.0
    %1943 = vmatprep.subr.mxu0 0.0
    %1944 = vmatpush1.msra.mxu0 0.0
    %1945 = vmatprep.subr.mxu0 0.0
    %1946 = vmatpush1.msra.mxu0 0.0
    %1947 = vmatprep.subr.mxu0 0.0
    %1948 = vmatpush1.msra.mxu0 0.0
    %1949 = vmatprep.subr.mxu0 0.0
    %1950 = vmatpush1.msra.mxu0 0.0
    %1951 = vmatprep.subr.mxu0 0.0
    %1952 = vmatpush1.msra.mxu0 0.0
    %1953 = vmatprep.subr.mxu0 0.0
    %1954 = vmatpush1.msra.mxu0 0.0
    %1955 = vmatprep.subr.mxu0 0.0
    %1956 = vmatpush1.msra.mxu0 0.0
    %1957 = vmatprep.subr.mxu0 0.0
    %1958 = vmatpush1.msra.mxu0 0.0
    %1959 = vmatprep.subr.mxu0 0.0
    %1960 = vmatpush1.msra.mxu0 0.0
    %1961 = vmatprep.subr.mxu0 0.0
    %1962 = vmatpush1.msra.mxu0 0.0
    %1963 = vmatprep.subr.mxu0 0.0
    %1964 = vmatpush1.msra.mxu0 0.0
    %1965 = vmatprep.subr.mxu0 0.0
    %1966 = vmatpush1.msra.mxu0 0.0
    %1967 = vmatprep.subr.mxu0 0.0
    %1968 = vmatpush1.msra.mxu0 0.0
    %1969 = vmatprep.subr.mxu0 0.0
    %1970 = vmatpush1.msra.mxu0 0.0
    %1971 = vmatprep.subr.mxu0 0.0
    %1972 = vmatpush1.msra.mxu0 0.0
    %1973 = vmatprep.subr.mxu0 0.0
    %1974 = vmatpush1.msra.mxu0 0.0
    %1975 = vmatprep.mubr.f32.mxu0 0.0
    %1976 = vmatmul.mubr.f32.gmra.mrb[0].mxu0 %v1900
    %v1977 = vpop.f32.mrb[0].mxu0
    %v1978 = vadd.f32 0.0, %v1977
    %v1979 = vpop.f32.mrb[0].mxu0
    %1980 = vmatprep.mubr.f32.mxu0 0.0
    %1981 = vmatmul.mubr.f32.gmra.mrb[0].mxu0 %v1903
    %v1982 = vpop.f32.mrb[0].mxu0
    %v1983 = vadd.f32 0.0, %v1982
    %v1984 = vpop.f32.mrb[0].mxu0
    %1985 = vmatprep.mubr.f32.mxu0 0.0
    %1986 = vmatmul.mubr.f32.gmra.mrb[0].mxu0 %v1906
    %v1987 = vpop.f32.mrb[0].mxu0
    %v1988 = vadd.f32 0.0, %v1987
    %v1989 = vpop.f32.mrb[0].mxu0
    %1990 = vmatprep.mubr.f32.mxu0 0.0
    %1991 = vmatmul.mubr.f32.gmra.mrb[0].mxu0 %v1909
    %v1992 = vpop.f32.mrb[0].mxu0
    %v1993 = vadd.f32 0.0, %v1992
    %v1994 = vpop.f32.mrb[0].mxu0
    %1995 = vdwg.mxu0
    %v1996 = vld [vmem:[%s6] sm:$0xff]
    %v1997 = vld [vmem:[%s6 + $0x8] sm:$0xff]
    %v1998 = vld [vmem:[%s6 + $0x10] sm:$0xff]
    %v1999 = vld [vmem:[%s6 + $0x18] sm:$0xff]
    %2000 = vmatprep.subr.mxu0 0.0
    %2001 = vmatpush1.msra.mxu0 %v1996
    %2002 = vmatprep.subr.mxu0 0.0
    %2003 = vmatpush1.msra.mxu0 %v1997
    %2004 = vmatprep.subr.mxu0 0.0
    %2005 = vmatpush1.msra.mxu0 %v1998
    %2006 = vmatprep.subr.mxu0 0.0
    %2007 = vmatpush1.msra.mxu0 %v1999
    %2008 = vmatprep.subr.mxu0 0.0
    %2009 = vmatpush1.msra.mxu0 0.0
    %2010 = vmatprep.subr.mxu0 0.0
    %2011 = vmatpush1.msra.mxu0 0.0
    %2012 = vmatprep.subr.mxu0 0.0
    %2013 = vmatpush1.msra.mxu0 0.0
    %2014 = vmatprep.subr.mxu0 0.0
    %2015 = vmatpush1.msra.mxu0 0.0
    %2016 = vmatprep.subr.mxu0 0.0
    %2017 = vmatpush1.msra.mxu0 0.0
    %2018 = vmatprep.subr.mxu0 0.0
    %2019 = vmatpush1.msra.mxu0 0.0
    %2020 = vmatprep.subr.mxu0 0.0
    %2021 = vmatpush1.msra.mxu0 0.0
    %2022 = vmatprep.subr.mxu0 0.0
    %2023 = vmatpush1.msra.mxu0 0.0
    %2024 = vmatprep.subr.mxu0 0.0
    %2025 = vmatpush1.msra.mxu0 0.0
    %2026 = vmatprep.subr.mxu0 0.0
    %2027 = vmatpush1.msra.mxu0 0.0
    %2028 = vmatprep.subr.mxu0 0.0
    %2029 = vmatpush1.msra.mxu0 0.0
    %2030 = vmatprep.subr.mxu0 0.0
    %2031 = vmatpush1.msra.mxu0 0.0
    %2032 = vmatprep.subr.mxu0 0.0
    %2033 = vmatpush1.msra.mxu0 0.0
    %2034 = vmatprep.subr.mxu0 0.0
    %2035 = vmatpush1.msra.mxu0 0.0
    %2036 = vmatprep.subr.mxu0 0.0
    %2037 = vmatpush1.msra.mxu0 0.0
    %2038 = vmatprep.subr.mxu0 0.0
    %2039 = vmatpush1.msra.mxu0 0.0
    %2040 = vmatprep.subr.mxu0 0.0
    %2041 = vmatpush1.msra.mxu0 0.0
    %2042 = vmatprep.subr.mxu0 0.0
    %2043 = vmatpush1.msra.mxu0 0.0
    %2044 = vmatprep.subr.mxu0 0.0
    %2045 = vmatpush1.msra.mxu0 0.0
    %2046 = vmatprep.subr.mxu0 0.0
    %2047 = vmatpush1.msra.mxu0 0.0
    %2048 = vmatprep.subr.mxu0 0.0
    %2049 = vmatpush1.msra.mxu0 0.0
    %2050 = vmatprep.subr.mxu0 0.0
    %2051 = vmatpush1.msra.mxu0 0.0
    %2052 = vmatprep.subr.mxu0 0.0
    %2053 = vmatpush1.msra.mxu0 0.0
    %2054 = vmatprep.subr.mxu0 0.0
    %2055 = vmatpush1.msra.mxu0 0.0
    %2056 = vmatprep.subr.mxu0 0.0
    %2057 = vmatpush1.msra.mxu0 0.0
    %2058 = vmatprep.subr.mxu0 0.0
    %2059 = vmatpush1.msra.mxu0 0.0
    %2060 = vmatprep.subr.mxu0 0.0
    %2061 = vmatpush1.msra.mxu0 0.0
    %2062 = vmatprep.subr.mxu0 0.0
    %2063 = vmatpush1.msra.mxu0 0.0
    %2064 = vmatprep.mubr.f32.mxu0 0.0
    %2065 = vmatmul.mubr.f32.gmra.mrb[0].mxu0 %v1900
    %v2066 = vpop.f32.mrb[0].mxu0
    %v2067 = vadd.f32 0.0, %v2066
    %v2068 = vpop.f32.mrb[0].mxu0
    %2069 = vmatprep.mubr.f32.mxu0 0.0
    %2070 = vmatmul.mubr.f32.gmra.mrb[0].mxu0 %v1903
    %v2071 = vpop.f32.mrb[0].mxu0
    %v2072 = vadd.f32 0.0, %v2071
    %v2073 = vpop.f32.mrb[0].mxu0
    %2074 = vmatprep.mubr.f32.mxu0 0.0
    %2075 = vmatmul.mubr.f32.gmra.mrb[0].mxu0 %v1906
    %v2076 = vpop.f32.mrb[0].mxu0
    %v2077 = vadd.f32 0.0, %v2076
    %v2078 = vpop.f32.mrb[0].mxu0
    %2079 = vmatprep.mubr.f32.mxu0 0.0
    %2080 = vmatmul.mubr.f32.gmra.mrb[0].mxu0 %v1909
    %v2081 = vpop.f32.mrb[0].mxu0
    %v2082 = vadd.f32 0.0, %v2081
    %v2083 = vpop.f32.mrb[0].mxu0
    %2084 = vdwg.mxu0
    %v2086 = vsel %vm115, %v1788, 0
    %v2089 = vsel %vm115, %v1877, 0
    %2091 = vmatprep.subr.mxu0 0.0
    %2092 = vmatpush1.xpose.msra.mxu0 %v2089
    %2093 = vmatprep.subr.mxu0 0.0
    %2094 = vmatpush1.xpose.msra.mxu0 0.0
    %2095 = vmatprep.subr.mxu0 0.0
    %2096 = vmatpush1.xpose.msra.mxu0 0.0
    %2097 = vmatprep.subr.mxu0 0.0
    %2098 = vmatpush1.xpose.msra.mxu0 0.0
    %2099 = vmatprep.subr.mxu0 0.0
    %2100 = vmatpush1.xpose.msra.mxu0 0.0
    %2101 = vmatprep.subr.mxu0 0.0
    %2102 = vmatpush1.xpose.msra.mxu0 0.0
    %2103 = vmatprep.subr.mxu0 0.0
    %2104 = vmatpush1.xpose.msra.mxu0 0.0
    %2105 = vmatprep.subr.mxu0 0.0
    %2106 = vmatpush1.xpose.msra.mxu0 0.0
    %2107 = vmatprep.subr.mxu0 0.0
    %2108 = vmatpush1.xpose.msra.mxu0 0.0
    %2109 = vmatprep.subr.mxu0 0.0
    %2110 = vmatpush1.xpose.msra.mxu0 0.0
    %2111 = vmatprep.subr.mxu0 0.0
    %2112 = vmatpush1.xpose.msra.mxu0 0.0
    %2113 = vmatprep.subr.mxu0 0.0
    %2114 = vmatpush1.xpose.msra.mxu0 0.0
    %2115 = vmatprep.subr.mxu0 0.0
    %2116 = vmatpush1.xpose.msra.mxu0 0.0
    %2117 = vmatprep.subr.mxu0 0.0
    %2118 = vmatpush1.xpose.msra.mxu0 0.0
    %2119 = vmatprep.subr.mxu0 0.0
    %2120 = vmatpush1.xpose.msra.mxu0 0.0
    %2121 = vmatprep.subr.mxu0 0.0
    %2122 = vmatpush1.xpose.msra.mxu0 0.0
    %2123 = vmatprep.subr.mxu0 0.0
    %2124 = vmatpush1.xpose.msra.mxu0 0.0
    %2125 = vmatprep.subr.mxu0 0.0
    %2126 = vmatpush1.xpose.msra.mxu0 0.0
    %2127 = vmatprep.subr.mxu0 0.0
    %2128 = vmatpush1.xpose.msra.mxu0 0.0
    %2129 = vmatprep.subr.mxu0 0.0
    %2130 = vmatpush1.xpose.msra.mxu0 0.0
    %2131 = vmatprep.subr.mxu0 0.0
    %2132 = vmatpush1.xpose.msra.mxu0 0.0
    %2133 = vmatprep.subr.mxu0 0.0
    %2134 = vmatpush1.xpose.msra.mxu0 0.0
    %2135 = vmatprep.subr.mxu0 0.0
    %2136 = vmatpush1.xpose.msra.mxu0 0.0
    %2137 = vmatprep.subr.mxu0 0.0
    %2138 = vmatpush1.xpose.msra.mxu0 0.0
    %2139 = vmatprep.subr.mxu0 0.0
    %2140 = vmatpush1.xpose.msra.mxu0 0.0
    %2141 = vmatprep.subr.mxu0 0.0
    %2142 = vmatpush1.xpose.msra.mxu0 0.0
    %2143 = vmatprep.subr.mxu0 0.0
    %2144 = vmatpush1.xpose.msra.mxu0 0.0
    %2145 = vmatprep.subr.mxu0 0.0
    %2146 = vmatpush1.xpose.msra.mxu0 0.0
    %2147 = vmatprep.subr.mxu0 0.0
    %2148 = vmatpush1.xpose.msra.mxu0 0.0
    %2149 = vmatprep.subr.mxu0 0.0
    %2150 = vmatpush1.xpose.msra.mxu0 0.0
    %2151 = vmatprep.subr.mxu0 0.0
    %2152 = vmatpush1.xpose.msra.mxu0 0.0
    %2153 = vmatprep.subr.mxu0 0.0
    %2154 = vmatpush1.xpose.msra.mxu0 0.0
    %2155 = vmatprep.mubr.f32.mxu0 0.0
    %2156 = vmatmul.mubr.f32.gmra.mrb[0].mxu0 %v2086
    %v2157 = vpop.f32.mrb[0].mxu0
    %v2158 = vadd.f32 0.0, %v2157
    %v2159 = vpop.f32.mrb[0].mxu0
    %2160 = vdwg.mxu0
    %v2162 = vsel %vm115, %v1793, 0
    %v2165 = vsel %vm115, %v1882, 0
    %2167 = vmatprep.subr.mxu0 0.0
    %2168 = vmatpush1.xpose.msra.mxu0 %v2165
    %2169 = vmatprep.subr.mxu0 0.0
    %2170 = vmatpush1.xpose.msra.mxu0 0.0
    %2171 = vmatprep.subr.mxu0 0.0
    %2172 = vmatpush1.xpose.msra.mxu0 0.0
    %2173 = vmatprep.subr.mxu0 0.0
    %2174 = vmatpush1.xpose.msra.mxu0 0.0
    %2175 = vmatprep.subr.mxu0 0.0
    %2176 = vmatpush1.xpose.msra.mxu0 0.0
    %2177 = vmatprep.subr.mxu0 0.0
    %2178 = vmatpush1.xpose.msra.mxu0 0.0
    %2179 = vmatprep.subr.mxu0 0.0
    %2180 = vmatpush1.xpose.msra.mxu0 0.0
    %2181 = vmatprep.subr.mxu0 0.0
    %2182 = vmatpush1.xpose.msra.mxu0 0.0
    %2183 = vmatprep.subr.mxu0 0.0
    %2184 = vmatpush1.xpose.msra.mxu0 0.0
    %2185 = vmatprep.subr.mxu0 0.0
    %2186 = vmatpush1.xpose.msra.mxu0 0.0
    %2187 = vmatprep.subr.mxu0 0.0
    %2188 = vmatpush1.xpose.msra.mxu0 0.0
    %2189 = vmatprep.subr.mxu0 0.0
    %2190 = vmatpush1.xpose.msra.mxu0 0.0
    %2191 = vmatprep.subr.mxu0 0.0
    %2192 = vmatpush1.xpose.msra.mxu0 0.0
    %2193 = vmatprep.subr.mxu0 0.0
    %2194 = vmatpush1.xpose.msra.mxu0 0.0
    %2195 = vmatprep.subr.mxu0 0.0
    %2196 = vmatpush1.xpose.msra.mxu0 0.0
    %2197 = vmatprep.subr.mxu0 0.0
    %2198 = vmatpush1.xpose.msra.mxu0 0.0
    %2199 = vmatprep.subr.mxu0 0.0
    %2200 = vmatpush1.xpose.msra.mxu0 0.0
    %2201 = vmatprep.subr.mxu0 0.0
    %2202 = vmatpush1.xpose.msra.mxu0 0.0
    %2203 = vmatprep.subr.mxu0 0.0
    %2204 = vmatpush1.xpose.msra.mxu0 0.0
    %2205 = vmatprep.subr.mxu0 0.0
    %2206 = vmatpush1.xpose.msra.mxu0 0.0
    %2207 = vmatprep.subr.mxu0 0.0
    %2208 = vmatpush1.xpose.msra.mxu0 0.0
    %2209 = vmatprep.subr.mxu0 0.0
    %2210 = vmatpush1.xpose.msra.mxu0 0.0
    %2211 = vmatprep.subr.mxu0 0.0
    %2212 = vmatpush1.xpose.msra.mxu0 0.0
    %2213 = vmatprep.subr.mxu0 0.0
    %2214 = vmatpush1.xpose.msra.mxu0 0.0
    %2215 = vmatprep.subr.mxu0 0.0
    %2216 = vmatpush1.xpose.msra.mxu0 0.0
    %2217 = vmatprep.subr.mxu0 0.0
    %2218 = vmatpush1.xpose.msra.mxu0 0.0
    %2219 = vmatprep.subr.mxu0 0.0
    %2220 = vmatpush1.xpose.msra.mxu0 0.0
    %2221 = vmatprep.subr.mxu0 0.0
    %2222 = vmatpush1.xpose.msra.mxu0 0.0
    %2223 = vmatprep.subr.mxu0 0.0
    %2224 = vmatpush1.xpose.msra.mxu0 0.0
    %2225 = vmatprep.subr.mxu0 0.0
    %2226 = vmatpush1.xpose.msra.mxu0 0.0
    %2227 = vmatprep.subr.mxu0 0.0
    %2228 = vmatpush1.xpose.msra.mxu0 0.0
    %2229 = vmatprep.subr.mxu0 0.0
    %2230 = vmatpush1.xpose.msra.mxu0 0.0
    %2231 = vmatprep.mubr.f32.mxu0 0.0
    %2232 = vmatmul.mubr.f32.gmra.mrb[0].mxu0 %v2162
    %v2233 = vpop.f32.mrb[0].mxu0
    %v2234 = vadd.f32 0.0, %v2233
    %v2235 = vpop.f32.mrb[0].mxu0
    %2236 = vdwg.mxu0
    %v2238 = vsel %vm115, %v1798, 0
    %v2241 = vsel %vm115, %v1887, 0
    %2243 = vmatprep.subr.mxu0 0.0
    %2244 = vmatpush1.xpose.msra.mxu0 %v2241
    %2245 = vmatprep.subr.mxu0 0.0
    %2246 = vmatpush1.xpose.msra.mxu0 0.0
    %2247 = vmatprep.subr.mxu0 0.0
    %2248 = vmatpush1.xpose.msra.mxu0 0.0
    %2249 = vmatprep.subr.mxu0 0.0
    %2250 = vmatpush1.xpose.msra.mxu0 0.0
    %2251 = vmatprep.subr.mxu0 0.0
    %2252 = vmatpush1.xpose.msra.mxu0 0.0
    %2253 = vmatprep.subr.mxu0 0.0
    %2254 = vmatpush1.xpose.msra.mxu0 0.0
    %2255 = vmatprep.subr.mxu0 0.0
    %2256 = vmatpush1.xpose.msra.mxu0 0.0
    %2257 = vmatprep.subr.mxu0 0.0
    %2258 = vmatpush1.xpose.msra.mxu0 0.0
    %2259 = vmatprep.subr.mxu0 0.0
    %2260 = vmatpush1.xpose.msra.mxu0 0.0
    %2261 = vmatprep.subr.mxu0 0.0
    %2262 = vmatpush1.xpose.msra.mxu0 0.0
    %2263 = vmatprep.subr.mxu0 0.0
    %2264 = vmatpush1.xpose.msra.mxu0 0.0
    %2265 = vmatprep.subr.mxu0 0.0
    %2266 = vmatpush1.xpose.msra.mxu0 0.0
    %2267 = vmatprep.subr.mxu0 0.0
    %2268 = vmatpush1.xpose.msra.mxu0 0.0
    %2269 = vmatprep.subr.mxu0 0.0
    %2270 = vmatpush1.xpose.msra.mxu0 0.0
    %2271 = vmatprep.subr.mxu0 0.0
    %2272 = vmatpush1.xpose.msra.mxu0 0.0
    %2273 = vmatprep.subr.mxu0 0.0
    %2274 = vmatpush1.xpose.msra.mxu0 0.0
    %2275 = vmatprep.subr.mxu0 0.0
    %2276 = vmatpush1.xpose.msra.mxu0 0.0
    %2277 = vmatprep.subr.mxu0 0.0
    %2278 = vmatpush1.xpose.msra.mxu0 0.0
    %2279 = vmatprep.subr.mxu0 0.0
    %2280 = vmatpush1.xpose.msra.mxu0 0.0
    %2281 = vmatprep.subr.mxu0 0.0
    %2282 = vmatpush1.xpose.msra.mxu0 0.0
    %2283 = vmatprep.subr.mxu0 0.0
    %2284 = vmatpush1.xpose.msra.mxu0 0.0
    %2285 = vmatprep.subr.mxu0 0.0
    %2286 = vmatpush1.xpose.msra.mxu0 0.0
    %2287 = vmatprep.subr.mxu0 0.0
    %2288 = vmatpush1.xpose.msra.mxu0 0.0
    %2289 = vmatprep.subr.mxu0 0.0
    %2290 = vmatpush1.xpose.msra.mxu0 0.0
    %2291 = vmatprep.subr.mxu0 0.0
    %2292 = vmatpush1.xpose.msra.mxu0 0.0
    %2293 = vmatprep.subr.mxu0 0.0
    %2294 = vmatpush1.xpose.msra.mxu0 0.0
    %2295 = vmatprep.subr.mxu0 0.0
    %2296 = vmatpush1.xpose.msra.mxu0 0.0
    %2297 = vmatprep.subr.mxu0 0.0
    %2298 = vmatpush1.xpose.msra.mxu0 0.0
    %2299 = vmatprep.subr.mxu0 0.0
    %2300 = vmatpush1.xpose.msra.mxu0 0.0
    %2301 = vmatprep.subr.mxu0 0.0
    %2302 = vmatpush1.xpose.msra.mxu0 0.0
    %2303 = vmatprep.subr.mxu0 0.0
    %2304 = vmatpush1.xpose.msra.mxu0 0.0
    %2305 = vmatprep.subr.mxu0 0.0
    %2306 = vmatpush1.xpose.msra.mxu0 0.0
    %2307 = vmatprep.mubr.f32.mxu0 0.0
    %2308 = vmatmul.mubr.f32.gmra.mrb[0].mxu0 %v2238
    %v2309 = vpop.f32.mrb[0].mxu0
    %v2310 = vadd.f32 0.0, %v2309
    %v2311 = vpop.f32.mrb[0].mxu0
    %2312 = vdwg.mxu0
    %v2314 = vsel %vm115, %v1803, 0
    %v2317 = vsel %vm115, %v1892, 0
    %2319 = vmatprep.subr.mxu0 0.0
    %2320 = vmatpush1.xpose.msra.mxu0 %v2317
    %2321 = vmatprep.subr.mxu0 0.0
    %2322 = vmatpush1.xpose.msra.mxu0 0.0
    %2323 = vmatprep.subr.mxu0 0.0
    %2324 = vmatpush1.xpose.msra.mxu0 0.0
    %2325 = vmatprep.subr.mxu0 0.0
    %2326 = vmatpush1.xpose.msra.mxu0 0.0
    %2327 = vmatprep.subr.mxu0 0.0
    %2328 = vmatpush1.xpose.msra.mxu0 0.0
    %2329 = vmatprep.subr.mxu0 0.0
    %2330 = vmatpush1.xpose.msra.mxu0 0.0
    %2331 = vmatprep.subr.mxu0 0.0
    %2332 = vmatpush1.xpose.msra.mxu0 0.0
    %2333 = vmatprep.subr.mxu0 0.0
    %2334 = vmatpush1.xpose.msra.mxu0 0.0
    %2335 = vmatprep.subr.mxu0 0.0
    %2336 = vmatpush1.xpose.msra.mxu0 0.0
    %2337 = vmatprep.subr.mxu0 0.0
    %2338 = vmatpush1.xpose.msra.mxu0 0.0
    %2339 = vmatprep.subr.mxu0 0.0
    %2340 = vmatpush1.xpose.msra.mxu0 0.0
    %2341 = vmatprep.subr.mxu0 0.0
    %2342 = vmatpush1.xpose.msra.mxu0 0.0
    %2343 = vmatprep.subr.mxu0 0.0
    %2344 = vmatpush1.xpose.msra.mxu0 0.0
    %2345 = vmatprep.subr.mxu0 0.0
    %2346 = vmatpush1.xpose.msra.mxu0 0.0
    %2347 = vmatprep.subr.mxu0 0.0
    %2348 = vmatpush1.xpose.msra.mxu0 0.0
    %2349 = vmatprep.subr.mxu0 0.0
    %2350 = vmatpush1.xpose.msra.mxu0 0.0
    %2351 = vmatprep.subr.mxu0 0.0
    %2352 = vmatpush1.xpose.msra.mxu0 0.0
    %2353 = vmatprep.subr.mxu0 0.0
    %2354 = vmatpush1.xpose.msra.mxu0 0.0
    %2355 = vmatprep.subr.mxu0 0.0
    %2356 = vmatpush1.xpose.msra.mxu0 0.0
    %2357 = vmatprep.subr.mxu0 0.0
    %2358 = vmatpush1.xpose.msra.mxu0 0.0
    %2359 = vmatprep.subr.mxu0 0.0
    %2360 = vmatpush1.xpose.msra.mxu0 0.0
    %2361 = vmatprep.subr.mxu0 0.0
    %2362 = vmatpush1.xpose.msra.mxu0 0.0
    %2363 = vmatprep.subr.mxu0 0.0
    %2364 = vmatpush1.xpose.msra.mxu0 0.0
    %2365 = vmatprep.subr.mxu0 0.0
    %2366 = vmatpush1.xpose.msra.mxu0 0.0
    %2367 = vmatprep.subr.mxu0 0.0
    %2368 = vmatpush1.xpose.msra.mxu0 0.0
    %2369 = vmatprep.subr.mxu0 0.0
    %2370 = vmatpush1.xpose.msra.mxu0 0.0
    %2371 = vmatprep.subr.mxu0 0.0
    %2372 = vmatpush1.xpose.msra.mxu0 0.0
    %2373 = vmatprep.subr.mxu0 0.0
    %2374 = vmatpush1.xpose.msra.mxu0 0.0
    %2375 = vmatprep.subr.mxu0 0.0
    %2376 = vmatpush1.xpose.msra.mxu0 0.0
    %2377 = vmatprep.subr.mxu0 0.0
    %2378 = vmatpush1.xpose.msra.mxu0 0.0
    %2379 = vmatprep.subr.mxu0 0.0
    %2380 = vmatpush1.xpose.msra.mxu0 0.0
    %2381 = vmatprep.subr.mxu0 0.0
    %2382 = vmatpush1.xpose.msra.mxu0 0.0
    %2383 = vmatprep.mubr.f32.mxu0 0.0
    %2384 = vmatmul.mubr.f32.gmra.mrb[0].mxu0 %v2314
    %v2385 = vpop.f32.mrb[0].mxu0
    %v2386 = vadd.f32 0.0, %v2385
    %v2387 = vpop.f32.mrb[0].mxu0
    %2388 = vdwg.mxu0
    %v2389 = vmul.f32 %v2158, 0.17677669
    %v2390 = vmul.f32 %v2234, 0.17677669
    %v2391 = vmul.f32 %v2310, 0.17677669
    %v2392 = vmul.f32 %v2386, 0.17677669
    %v2393 = vsel %vm736, %v2389, -inf
    %2394 = vmax.xlane.f32.xlu0 %v2393
    %v2395 = vpop.xlane.xlu0 %2394
    %v2396 = vsel %vm736, %v2390, -inf
    %2397 = vmax.xlane.f32.xlu0 %v2396
    %v2398 = vpop.xlane.xlu0 %2397
    %v2399 = vsel %vm736, %v2391, -inf
    %2400 = vmax.xlane.f32.xlu0 %v2399
    %v2401 = vpop.xlane.xlu0 %2400
    %v2402 = vsel %vm736, %v2392, -inf
    %2403 = vmax.xlane.f32.xlu0 %v2402
    %v2404 = vpop.xlane.xlu0 %2403
    %v2405 = vsub.f32 %v2389, %v2395
    %v2406 = vsub.f32 %v2390, %v2398
    %v2407 = vsub.f32 %v2391, %v2401
    %v2408 = vsub.f32 %v2392, %v2404
    %v2409 = vmul.f32 %v2405, 1.442695
    %v2410 = vpow.pop %v2409
    %v2411 = vmul.f32 %v2406, 1.442695
    %v2412 = vpow.pop %v2411
    %v2413 = vmul.f32 %v2407, 1.442695
    %v2414 = vpow.pop %v2413
    %v2415 = vmul.f32 %v2408, 1.442695
    %v2416 = vpow.pop %v2415
    %v2417 = vsel %vm736, %v2410, 0.0
    %2418 = vadd.xlane.f32.xlu0 %v2417
    %v2419 = vpop.xlane.xlu0 %2418
    %v2420 = vsel %vm736, %v2412, 0.0
    %2421 = vadd.xlane.f32.xlu0 %v2420
    %v2422 = vpop.xlane.xlu0 %2421
    %v2423 = vsel %vm736, %v2414, 0.0
    %2424 = vadd.xlane.f32.xlu0 %v2423
    %v2425 = vpop.xlane.xlu0 %2424
    %v2426 = vsel %vm736, %v2416, 0.0
    %2427 = vadd.xlane.f32.xlu0 %v2426
    %v2428 = vpop.xlane.xlu0 %2427
    %v2429 = vrcp.pop %v2419
    %v2430 = vrcp.pop %v2422
    %v2431 = vrcp.pop %v2425
    %v2432 = vrcp.pop %v2428
    %v2433 = vmul.f32 %v2410, %v2429
    %v2434 = vmul.f32 %v2412, %v2430
    %v2435 = vmul.f32 %v2414, %v2431
    %v2436 = vmul.f32 %v2416, %v2432
    %v2438 = vsel %vm736, %v2433, 0
    %2440 = vmatprep.subr.mxu0 0.0
    %2441 = vmatpush1.msra.mxu0 %v1483
    %2442 = vmatprep.subr.mxu0 0.0
    %2443 = vmatpush1.msra.mxu0 0.0
    %2444 = vmatprep.subr.mxu0 0.0
    %2445 = vmatpush1.msra.mxu0 0.0
    %2446 = vmatprep.subr.mxu0 0.0
    %2447 = vmatpush1.msra.mxu0 0.0
    %2448 = vmatprep.subr.mxu0 0.0
    %2449 = vmatpush1.msra.mxu0 0.0
    %2450 = vmatprep.subr.mxu0 0.0
    %2451 = vmatpush1.msra.mxu0 0.0
    %2452 = vmatprep.subr.mxu0 0.0
    %2453 = vmatpush1.msra.mxu0 0.0
    %2454 = vmatprep.subr.mxu0 0.0
    %2455 = vmatpush1.msra.mxu0 0.0
    %2456 = vmatprep.subr.mxu0 0.0
    %2457 = vmatpush1.msra.mxu0 0.0
    %2458 = vmatprep.subr.mxu0 0.0
    %2459 = vmatpush1.msra.mxu0 0.0
    %2460 = vmatprep.subr.mxu0 0.0
    %2461 = vmatpush1.msra.mxu0 0.0
    %2462 = vmatprep.subr.mxu0 0.0
    %2463 = vmatpush1.msra.mxu0 0.0
    %2464 = vmatprep.subr.mxu0 0.0
    %2465 = vmatpush1.msra.mxu0 0.0
    %2466 = vmatprep.subr.mxu0 0.0
    %2467 = vmatpush1.msra.mxu0 0.0
    %2468 = vmatprep.subr.mxu0 0.0
    %2469 = vmatpush1.msra.mxu0 0.0
    %2470 = vmatprep.subr.mxu0 0.0
    %2471 = vmatpush1.msra.mxu0 0.0
    %2472 = vmatprep.subr.mxu0 0.0
    %2473 = vmatpush1.msra.mxu0 0.0
    %2474 = vmatprep.subr.mxu0 0.0
    %2475 = vmatpush1.msra.mxu0 0.0
    %2476 = vmatprep.subr.mxu0 0.0
    %2477 = vmatpush1.msra.mxu0 0.0
    %2478 = vmatprep.subr.mxu0 0.0
    %2479 = vmatpush1.msra.mxu0 0.0
    %2480 = vmatprep.subr.mxu0 0.0
    %2481 = vmatpush1.msra.mxu0 0.0
    %2482 = vmatprep.subr.mxu0 0.0
    %2483 = vmatpush1.msra.mxu0 0.0
    %2484 = vmatprep.subr.mxu0 0.0
    %2485 = vmatpush1.msra.mxu0 0.0
    %2486 = vmatprep.subr.mxu0 0.0
    %2487 = vmatpush1.msra.mxu0 0.0
    %2488 = vmatprep.subr.mxu0 0.0
    %2489 = vmatpush1.msra.mxu0 0.0
    %2490 = vmatprep.subr.mxu0 0.0
    %2491 = vmatpush1.msra.mxu0 0.0
    %2492 = vmatprep.subr.mxu0 0.0
    %2493 = vmatpush1.msra.mxu0 0.0
    %2494 = vmatprep.subr.mxu0 0.0
    %2495 = vmatpush1.msra.mxu0 0.0
    %2496 = vmatprep.subr.mxu0 0.0
    %2497 = vmatpush1.msra.mxu0 0.0
    %2498 = vmatprep.subr.mxu0 0.0
    %2499 = vmatpush1.msra.mxu0 0.0
    %2500 = vmatprep.subr.mxu0 0.0
    %2501 = vmatpush1.msra.mxu0 0.0
    %2502 = vmatprep.subr.mxu0 0.0
    %2503 = vmatpush1.msra.mxu0 0.0
    %2504 = vmatprep.mubr.f32.mxu0 0.0
    %2505 = vmatmul.mubr.f32.gmra.mrb[0].mxu0 %v2438
    %v2506 = vpop.f32.mrb[0].mxu0
    %v2507 = vadd.f32 0.0, %v2506
    %v2508 = vpop.f32.mrb[0].mxu0
    %2509 = vdwg.mxu0
    %v2511 = vsel %vm736, %v2434, 0
    %2513 = vmatprep.subr.mxu0 0.0
    %2514 = vmatpush1.msra.mxu0 %v1556
    %2515 = vmatprep.subr.mxu0 0.0
    %2516 = vmatpush1.msra.mxu0 0.0
    %2517 = vmatprep.subr.mxu0 0.0
    %2518 = vmatpush1.msra.mxu0 0.0
    %2519 = vmatprep.subr.mxu0 0.0
    %2520 = vmatpush1.msra.mxu0 0.0
    %2521 = vmatprep.subr.mxu0 0.0
    %2522 = vmatpush1.msra.mxu0 0.0
    %2523 = vmatprep.subr.mxu0 0.0
    %2524 = vmatpush1.msra.mxu0 0.0
    %2525 = vmatprep.subr.mxu0 0.0
    %2526 = vmatpush1.msra.mxu0 0.0
    %2527 = vmatprep.subr.mxu0 0.0
    %2528 = vmatpush1.msra.mxu0 0.0
    %2529 = vmatprep.subr.mxu0 0.0
    %2530 = vmatpush1.msra.mxu0 0.0
    %2531 = vmatprep.subr.mxu0 0.0
    %2532 = vmatpush1.msra.mxu0 0.0
    %2533 = vmatprep.subr.mxu0 0.0
    %2534 = vmatpush1.msra.mxu0 0.0
    %2535 = vmatprep.subr.mxu0 0.0
    %2536 = vmatpush1.msra.mxu0 0.0
    %2537 = vmatprep.subr.mxu0 0.0
    %2538 = vmatpush1.msra.mxu0 0.0
    %2539 = vmatprep.subr.mxu0 0.0
    %2540 = vmatpush1.msra.mxu0 0.0
    %2541 = vmatprep.subr.mxu0 0.0
    %2542 = vmatpush1.msra.mxu0 0.0
    %2543 = vmatprep.subr.mxu0 0.0
    %2544 = vmatpush1.msra.mxu0 0.0
    %2545 = vmatprep.subr.mxu0 0.0
    %2546 = vmatpush1.msra.mxu0 0.0
    %2547 = vmatprep.subr.mxu0 0.0
    %2548 = vmatpush1.msra.mxu0 0.0
    %2549 = vmatprep.subr.mxu0 0.0
    %2550 = vmatpush1.msra.mxu0 0.0
    %2551 = vmatprep.subr.mxu0 0.0
    %2552 = vmatpush1.msra.mxu0 0.0
    %2553 = vmatprep.subr.mxu0 0.0
    %2554 = vmatpush1.msra.mxu0 0.0
    %2555 = vmatprep.subr.mxu0 0.0
    %2556 = vmatpush1.msra.mxu0 0.0
    %2557 = vmatprep.subr.mxu0 0.0
    %2558 = vmatpush1.msra.mxu0 0.0
    %2559 = vmatprep.subr.mxu0 0.0
    %2560 = vmatpush1.msra.mxu0 0.0
    %2561 = vmatprep.subr.mxu0 0.0
    %2562 = vmatpush1.msra.mxu0 0.0
    %2563 = vmatprep.subr.mxu0 0.0
    %2564 = vmatpush1.msra.mxu0 0.0
    %2565 = vmatprep.subr.mxu0 0.0
    %2566 = vmatpush1.msra.mxu0 0.0
    %2567 = vmatprep.subr.mxu0 0.0
    %2568 = vmatpush1.msra.mxu0 0.0
    %2569 = vmatprep.subr.mxu0 0.0
    %2570 = vmatpush1.msra.mxu0 0.0
    %2571 = vmatprep.subr.mxu0 0.0
    %2572 = vmatpush1.msra.mxu0 0.0
    %2573 = vmatprep.subr.mxu0 0.0
    %2574 = vmatpush1.msra.mxu0 0.0
    %2575 = vmatprep.subr.mxu0 0.0
    %2576 = vmatpush1.msra.mxu0 0.0
    %2577 = vmatprep.mubr.f32.mxu0 0.0
    %2578 = vmatmul.mubr.f32.gmra.mrb[0].mxu0 %v2511
    %v2579 = vpop.f32.mrb[0].mxu0
    %v2580 = vadd.f32 0.0, %v2579
    %v2581 = vpop.f32.mrb[0].mxu0
    %2582 = vdwg.mxu0
    %v2584 = vsel %vm736, %v2435, 0
    %2586 = vmatprep.subr.mxu0 0.0
    %2587 = vmatpush1.msra.mxu0 %v1629
    %2588 = vmatprep.subr.mxu0 0.0
    %2589 = vmatpush1.msra.mxu0 0.0
    %2590 = vmatprep.subr.mxu0 0.0
    %2591 = vmatpush1.msra.mxu0 0.0
    %2592 = vmatprep.subr.mxu0 0.0
    %2593 = vmatpush1.msra.mxu0 0.0
    %2594 = vmatprep.subr.mxu0 0.0
    %2595 = vmatpush1.msra.mxu0 0.0
    %2596 = vmatprep.subr.mxu0 0.0
    %2597 = vmatpush1.msra.mxu0 0.0
    %2598 = vmatprep.subr.mxu0 0.0
    %2599 = vmatpush1.msra.mxu0 0.0
    %2600 = vmatprep.subr.mxu0 0.0
    %2601 = vmatpush1.msra.mxu0 0.0
    %2602 = vmatprep.subr.mxu0 0.0
    %2603 = vmatpush1.msra.mxu0 0.0
    %2604 = vmatprep.subr.mxu0 0.0
    %2605 = vmatpush1.msra.mxu0 0.0
    %2606 = vmatprep.subr.mxu0 0.0
    %2607 = vmatpush1.msra.mxu0 0.0
    %2608 = vmatprep.subr.mxu0 0.0
    %2609 = vmatpush1.msra.mxu0 0.0
    %2610 = vmatprep.subr.mxu0 0.0
    %2611 = vmatpush1.msra.mxu0 0.0
    %2612 = vmatprep.subr.mxu0 0.0
    %2613 = vmatpush1.msra.mxu0 0.0
    %2614 = vmatprep.subr.mxu0 0.0
    %2615 = vmatpush1.msra.mxu0 0.0
    %2616 = vmatprep.subr.mxu0 0.0
    %2617 = vmatpush1.msra.mxu0 0.0
    %2618 = vmatprep.subr.mxu0 0.0
    %2619 = vmatpush1.msra.mxu0 0.0
    %2620 = vmatprep.subr.mxu0 0.0
    %2621 = vmatpush1.msra.mxu0 0.0
    %2622 = vmatprep.subr.mxu0 0.0
    %2623 = vmatpush1.msra.mxu0 0.0
    %2624 = vmatprep.subr.mxu0 0.0
    %2625 = vmatpush1.msra.mxu0 0.0
    %2626 = vmatprep.subr.mxu0 0.0
    %2627 = vmatpush1.msra.mxu0 0.0
    %2628 = vmatprep.subr.mxu0 0.0
    %2629 = vmatpush1.msra.mxu0 0.0
    %2630 = vmatprep.subr.mxu0 0.0
    %2631 = vmatpush1.msra.mxu0 0.0
    %2632 = vmatprep.subr.mxu0 0.0
    %2633 = vmatpush1.msra.mxu0 0.0
    %2634 = vmatprep.subr.mxu0 0.0
    %2635 = vmatpush1.msra.mxu0 0.0
    %2636 = vmatprep.subr.mxu0 0.0
    %2637 = vmatpush1.msra.mxu0 0.0
    %2638 = vmatprep.subr.mxu0 0.0
    %2639 = vmatpush1.msra.mxu0 0.0
    %2640 = vmatprep.subr.mxu0 0.0
    %2641 = vmatpush1.msra.mxu0 0.0
    %2642 = vmatprep.subr.mxu0 0.0
    %2643 = vmatpush1.msra.mxu0 0.0
    %2644 = vmatprep.subr.mxu0 0.0
    %2645 = vmatpush1.msra.mxu0 0.0
    %2646 = vmatprep.subr.mxu0 0.0
    %2647 = vmatpush1.msra.mxu0 0.0
    %2648 = vmatprep.subr.mxu0 0.0
    %2649 = vmatpush1.msra.mxu0 0.0
    %2650 = vmatprep.mubr.f32.mxu0 0.0
    %2651 = vmatmul.mubr.f32.gmra.mrb[0].mxu0 %v2584
    %v2652 = vpop.f32.mrb[0].mxu0
    %v2653 = vadd.f32 0.0, %v2652
    %v2654 = vpop.f32.mrb[0].mxu0
    %2655 = vdwg.mxu0
    %v2657 = vsel %vm736, %v2436, 0
    %2659 = vmatprep.subr.mxu0 0.0
    %2660 = vmatpush1.msra.mxu0 %v1702
    %2661 = vmatprep.subr.mxu0 0.0
    %2662 = vmatpush1.msra.mxu0 0.0
    %2663 = vmatprep.subr.mxu0 0.0
    %2664 = vmatpush1.msra.mxu0 0.0
    %2665 = vmatprep.subr.mxu0 0.0
    %2666 = vmatpush1.msra.mxu0 0.0
    %2667 = vmatprep.subr.mxu0 0.0
    %2668 = vmatpush1.msra.mxu0 0.0
    %2669 = vmatprep.subr.mxu0 0.0
    %2670 = vmatpush1.msra.mxu0 0.0
    %2671 = vmatprep.subr.mxu0 0.0
    %2672 = vmatpush1.msra.mxu0 0.0
    %2673 = vmatprep.subr.mxu0 0.0
    %2674 = vmatpush1.msra.mxu0 0.0
    %2675 = vmatprep.subr.mxu0 0.0
    %2676 = vmatpush1.msra.mxu0 0.0
    %2677 = vmatprep.subr.mxu0 0.0
    %2678 = vmatpush1.msra.mxu0 0.0
    %2679 = vmatprep.subr.mxu0 0.0
    %2680 = vmatpush1.msra.mxu0 0.0
    %2681 = vmatprep.subr.mxu0 0.0
    %2682 = vmatpush1.msra.mxu0 0.0
    %2683 = vmatprep.subr.mxu0 0.0
    %2684 = vmatpush1.msra.mxu0 0.0
    %2685 = vmatprep.subr.mxu0 0.0
    %2686 = vmatpush1.msra.mxu0 0.0
    %2687 = vmatprep.subr.mxu0 0.0
    %2688 = vmatpush1.msra.mxu0 0.0
    %2689 = vmatprep.subr.mxu0 0.0
    %2690 = vmatpush1.msra.mxu0 0.0
    %2691 = vmatprep.subr.mxu0 0.0
    %2692 = vmatpush1.msra.mxu0 0.0
    %2693 = vmatprep.subr.mxu0 0.0
    %2694 = vmatpush1.msra.mxu0 0.0
    %2695 = vmatprep.subr.mxu0 0.0
    %2696 = vmatpush1.msra.mxu0 0.0
    %2697 = vmatprep.subr.mxu0 0.0
    %2698 = vmatpush1.msra.mxu0 0.0
    %2699 = vmatprep.subr.mxu0 0.0
    %2700 = vmatpush1.msra.mxu0 0.0
    %2701 = vmatprep.subr.mxu0 0.0
    %2702 = vmatpush1.msra.mxu0 0.0
    %2703 = vmatprep.subr.mxu0 0.0
    %2704 = vmatpush1.msra.mxu0 0.0
    %2705 = vmatprep.subr.mxu0 0.0
    %2706 = vmatpush1.msra.mxu0 0.0
    %2707 = vmatprep.subr.mxu0 0.0
    %2708 = vmatpush1.msra.mxu0 0.0
    %2709 = vmatprep.subr.mxu0 0.0
    %2710 = vmatpush1.msra.mxu0 0.0
    %2711 = vmatprep.subr.mxu0 0.0
    %2712 = vmatpush1.msra.mxu0 0.0
    %2713 = vmatprep.subr.mxu0 0.0
    %2714 = vmatpush1.msra.mxu0 0.0
    %2715 = vmatprep.subr.mxu0 0.0
    %2716 = vmatpush1.msra.mxu0 0.0
    %2717 = vmatprep.subr.mxu0 0.0
    %2718 = vmatpush1.msra.mxu0 0.0
    %2719 = vmatprep.subr.mxu0 0.0
    %2720 = vmatpush1.msra.mxu0 0.0
    %2721 = vmatprep.subr.mxu0 0.0
    %2722 = vmatpush1.msra.mxu0 0.0
    %2723 = vmatprep.mubr.f32.mxu0 0.0
    %2724 = vmatmul.mubr.f32.gmra.mrb[0].mxu0 %v2657
    %v2725 = vpop.f32.mrb[0].mxu0
    %v2726 = vadd.f32 0.0, %v2725
    %v2727 = vpop.f32.mrb[0].mxu0
    %2728 = vdwg.mxu0
    %v2729 = vmul.f32 %v2507, %v2507
    %v2730 = vmul.f32 %v2580, %v2580
    %v2731 = vmul.f32 %v2653, %v2653
    %v2732 = vmul.f32 %v2726, %v2726
    %v2733 = vsel %vm115, %v2729, 0.0
    %2734 = vadd.xlane.f32.xlu0 %v2733
    %v2735 = vpop.xlane.xlu0 %2734
    %v2736 = vsel %vm115, %v2730, 0.0
    %2737 = vadd.xlane.f32.xlu0 %v2736
    %v2738 = vpop.xlane.xlu0 %2737
    %v2739 = vsel %vm115, %v2731, 0.0
    %2740 = vadd.xlane.f32.xlu0 %v2739
    %v2741 = vpop.xlane.xlu0 %2740
    %v2742 = vsel %vm115, %v2732, 0.0
    %2743 = vadd.xlane.f32.xlu0 %v2742
    %v2744 = vpop.xlane.xlu0 %2743
    %v2745 = vrsqrt.pop %v2735
    %v2746 = vmul.f32 %v2735, %v2745
    %vm2747 = vcmp.eq.f32.partialorder %v2735, inf
    %v2748 = vsel %vm2747, %v2735, %v2746
    %vm2749 = vcmp.eq.f32.partialorder %v2735, 0.0
    %v2750 = vand.u32 %v2735, 2147483648
    %v2751 = vsel %vm2749, %v2750, %v2748
    %v2752 = vrsqrt.pop %v2738
    %v2753 = vmul.f32 %v2738, %v2752
    %vm2754 = vcmp.eq.f32.partialorder %v2738, inf
    %v2755 = vsel %vm2754, %v2738, %v2753
    %vm2756 = vcmp.eq.f32.partialorder %v2738, 0.0
    %v2757 = vand.u32 %v2738, 2147483648
    %v2758 = vsel %vm2756, %v2757, %v2755
    %v2759 = vrsqrt.pop %v2741
    %v2760 = vmul.f32 %v2741, %v2759
    %vm2761 = vcmp.eq.f32.partialorder %v2741, inf
    %v2762 = vsel %vm2761, %v2741, %v2760
    %vm2763 = vcmp.eq.f32.partialorder %v2741, 0.0
    %v2764 = vand.u32 %v2741, 2147483648
    %v2765 = vsel %vm2763, %v2764, %v2762
    %v2766 = vrsqrt.pop %v2744
    %v2767 = vmul.f32 %v2744, %v2766
    %vm2768 = vcmp.eq.f32.partialorder %v2744, inf
    %v2769 = vsel %vm2768, %v2744, %v2767
    %vm2770 = vcmp.eq.f32.partialorder %v2744, 0.0
    %v2771 = vand.u32 %v2744, 2147483648
    %v2772 = vsel %vm2770, %v2771, %v2769
    %v2773 = vadd.f32 %v2751, 1e-08
    %v2774 = vadd.f32 %v2758, 1e-08
    %v2775 = vadd.f32 %v2765, 1e-08
    %v2776 = vadd.f32 %v2772, 1e-08
    %v2777 = vrcp.pop %v2773
    %v2778 = vmul.f32 %v2507, %v2777
    %v2779 = vrcp.pop %v2774
    %v2780 = vmul.f32 %v2580, %v2779
    %v2781 = vrcp.pop %v2775
    %v2782 = vmul.f32 %v2653, %v2781
    %v2783 = vrcp.pop %v2776
    %v2784 = vmul.f32 %v2726, %v2783
    %v2786 = vsel %vm115, %v1978, 0
    %v2789 = vsel %vm115, %v2067, 0
    %2791 = vmatprep.subr.mxu0 0.0
    %2792 = vmatpush1.xpose.msra.mxu0 %v2789
    %2793 = vmatprep.subr.mxu0 0.0
    %2794 = vmatpush1.xpose.msra.mxu0 0.0
    %2795 = vmatprep.subr.mxu0 0.0
    %2796 = vmatpush1.xpose.msra.mxu0 0.0
    %2797 = vmatprep.subr.mxu0 0.0
    %2798 = vmatpush1.xpose.msra.mxu0 0.0
    %2799 = vmatprep.subr.mxu0 0.0
    %2800 = vmatpush1.xpose.msra.mxu0 0.0
    %2801 = vmatprep.subr.mxu0 0.0
    %2802 = vmatpush1.xpose.msra.mxu0 0.0
    %2803 = vmatprep.subr.mxu0 0.0
    %2804 = vmatpush1.xpose.msra.mxu0 0.0
    %2805 = vmatprep.subr.mxu0 0.0
    %2806 = vmatpush1.xpose.msra.mxu0 0.0
    %2807 = vmatprep.subr.mxu0 0.0
    %2808 = vmatpush1.xpose.msra.mxu0 0.0
    %2809 = vmatprep.subr.mxu0 0.0
    %2810 = vmatpush1.xpose.msra.mxu0 0.0
    %2811 = vmatprep.subr.mxu0 0.0
    %2812 = vmatpush1.xpose.msra.mxu0 0.0
    %2813 = vmatprep.subr.mxu0 0.0
    %2814 = vmatpush1.xpose.msra.mxu0 0.0
    %2815 = vmatprep.subr.mxu0 0.0
    %2816 = vmatpush1.xpose.msra.mxu0 0.0
    %2817 = vmatprep.subr.mxu0 0.0
    %2818 = vmatpush1.xpose.msra.mxu0 0.0
    %2819 = vmatprep.subr.mxu0 0.0
    %2820 = vmatpush1.xpose.msra.mxu0 0.0
    %2821 = vmatprep.subr.mxu0 0.0
    %2822 = vmatpush1.xpose.msra.mxu0 0.0
    %2823 = vmatprep.subr.mxu0 0.0
    %2824 = vmatpush1.xpose.msra.mxu0 0.0
    %2825 = vmatprep.subr.mxu0 0.0
    %2826 = vmatpush1.xpose.msra.mxu0 0.0
    %2827 = vmatprep.subr.mxu0 0.0
    %2828 = vmatpush1.xpose.msra.mxu0 0.0
    %2829 = vmatprep.subr.mxu0 0.0
    %2830 = vmatpush1.xpose.msra.mxu0 0.0
    %2831 = vmatprep.subr.mxu0 0.0
    %2832 = vmatpush1.xpose.msra.mxu0 0.0
    %2833 = vmatprep.subr.mxu0 0.0
    %2834 = vmatpush1.xpose.msra.mxu0 0.0
    %2835 = vmatprep.subr.mxu0 0.0
    %2836 = vmatpush1.xpose.msra.mxu0 0.0
    %2837 = vmatprep.subr.mxu0 0.0
    %2838 = vmatpush1.xpose.msra.mxu0 0.0
    %2839 = vmatprep.subr.mxu0 0.0
    %2840 = vmatpush1.xpose.msra.mxu0 0.0
    %2841 = vmatprep.subr.mxu0 0.0
    %2842 = vmatpush1.xpose.msra.mxu0 0.0
    %2843 = vmatprep.subr.mxu0 0.0
    %2844 = vmatpush1.xpose.msra.mxu0 0.0
    %2845 = vmatprep.subr.mxu0 0.0
    %2846 = vmatpush1.xpose.msra.mxu0 0.0
    %2847 = vmatprep.subr.mxu0 0.0
    %2848 = vmatpush1.xpose.msra.mxu0 0.0
    %2849 = vmatprep.subr.mxu0 0.0
    %2850 = vmatpush1.xpose.msra.mxu0 0.0
    %2851 = vmatprep.subr.mxu0 0.0
    %2852 = vmatpush1.xpose.msra.mxu0 0.0
    %2853 = vmatprep.subr.mxu0 0.0
    %2854 = vmatpush1.xpose.msra.mxu0 0.0
    %2855 = vmatprep.mubr.f32.mxu0 0.0
    %2856 = vmatmul.mubr.f32.gmra.mrb[0].mxu0 %v2786
    %v2857 = vpop.f32.mrb[0].mxu0
    %v2858 = vadd.f32 0.0, %v2857
    %v2859 = vpop.f32.mrb[0].mxu0
    %2860 = vdwg.mxu0
    %v2862 = vsel %vm115, %v1983, 0
    %v2865 = vsel %vm115, %v2072, 0
    %2867 = vmatprep.subr.mxu0 0.0
    %2868 = vmatpush1.xpose.msra.mxu0 %v2865
    %2869 = vmatprep.subr.mxu0 0.0
    %2870 = vmatpush1.xpose.msra.mxu0 0.0
    %2871 = vmatprep.subr.mxu0 0.0
    %2872 = vmatpush1.xpose.msra.mxu0 0.0
    %2873 = vmatprep.subr.mxu0 0.0
    %2874 = vmatpush1.xpose.msra.mxu0 0.0
    %2875 = vmatprep.subr.mxu0 0.0
    %2876 = vmatpush1.xpose.msra.mxu0 0.0
    %2877 = vmatprep.subr.mxu0 0.0
    %2878 = vmatpush1.xpose.msra.mxu0 0.0
    %2879 = vmatprep.subr.mxu0 0.0
    %2880 = vmatpush1.xpose.msra.mxu0 0.0
    %2881 = vmatprep.subr.mxu0 0.0
    %2882 = vmatpush1.xpose.msra.mxu0 0.0
    %2883 = vmatprep.subr.mxu0 0.0
    %2884 = vmatpush1.xpose.msra.mxu0 0.0
    %2885 = vmatprep.subr.mxu0 0.0
    %2886 = vmatpush1.xpose.msra.mxu0 0.0
    %2887 = vmatprep.subr.mxu0 0.0
    %2888 = vmatpush1.xpose.msra.mxu0 0.0
    %2889 = vmatprep.subr.mxu0 0.0
    %2890 = vmatpush1.xpose.msra.mxu0 0.0
    %2891 = vmatprep.subr.mxu0 0.0
    %2892 = vmatpush1.xpose.msra.mxu0 0.0
    %2893 = vmatprep.subr.mxu0 0.0
    %2894 = vmatpush1.xpose.msra.mxu0 0.0
    %2895 = vmatprep.subr.mxu0 0.0
    %2896 = vmatpush1.xpose.msra.mxu0 0.0
    %2897 = vmatprep.subr.mxu0 0.0
    %2898 = vmatpush1.xpose.msra.mxu0 0.0
    %2899 = vmatprep.subr.mxu0 0.0
    %2900 = vmatpush1.xpose.msra.mxu0 0.0
    %2901 = vmatprep.subr.mxu0 0.0
    %2902 = vmatpush1.xpose.msra.mxu0 0.0
    %2903 = vmatprep.subr.mxu0 0.0
    %2904 = vmatpush1.xpose.msra.mxu0 0.0
    %2905 = vmatprep.subr.mxu0 0.0
    %2906 = vmatpush1.xpose.msra.mxu0 0.0
    %2907 = vmatprep.subr.mxu0 0.0
    %2908 = vmatpush1.xpose.msra.mxu0 0.0
    %2909 = vmatprep.subr.mxu0 0.0
    %2910 = vmatpush1.xpose.msra.mxu0 0.0
    %2911 = vmatprep.subr.mxu0 0.0
    %2912 = vmatpush1.xpose.msra.mxu0 0.0
    %2913 = vmatprep.subr.mxu0 0.0
    %2914 = vmatpush1.xpose.msra.mxu0 0.0
    %2915 = vmatprep.subr.mxu0 0.0
    %2916 = vmatpush1.xpose.msra.mxu0 0.0
    %2917 = vmatprep.subr.mxu0 0.0
    %2918 = vmatpush1.xpose.msra.mxu0 0.0
    %2919 = vmatprep.subr.mxu0 0.0
    %2920 = vmatpush1.xpose.msra.mxu0 0.0
    %2921 = vmatprep.subr.mxu0 0.0
    %2922 = vmatpush1.xpose.msra.mxu0 0.0
    %2923 = vmatprep.subr.mxu0 0.0
    %2924 = vmatpush1.xpose.msra.mxu0 0.0
    %2925 = vmatprep.subr.mxu0 0.0
    %2926 = vmatpush1.xpose.msra.mxu0 0.0
    %2927 = vmatprep.subr.mxu0 0.0
    %2928 = vmatpush1.xpose.msra.mxu0 0.0
    %2929 = vmatprep.subr.mxu0 0.0
    %2930 = vmatpush1.xpose.msra.mxu0 0.0
    %2931 = vmatprep.mubr.f32.mxu0 0.0
    %2932 = vmatmul.mubr.f32.gmra.mrb[0].mxu0 %v2862
    %v2933 = vpop.f32.mrb[0].mxu0
    %v2934 = vadd.f32 0.0, %v2933
    %v2935 = vpop.f32.mrb[0].mxu0
    %2936 = vdwg.mxu0
    %v2938 = vsel %vm115, %v1988, 0
    %v2941 = vsel %vm115, %v2077, 0
    %2943 = vmatprep.subr.mxu0 0.0
    %2944 = vmatpush1.xpose.msra.mxu0 %v2941
    %2945 = vmatprep.subr.mxu0 0.0
    %2946 = vmatpush1.xpose.msra.mxu0 0.0
    %2947 = vmatprep.subr.mxu0 0.0
    %2948 = vmatpush1.xpose.msra.mxu0 0.0
    %2949 = vmatprep.subr.mxu0 0.0
    %2950 = vmatpush1.xpose.msra.mxu0 0.0
    %2951 = vmatprep.subr.mxu0 0.0
    %2952 = vmatpush1.xpose.msra.mxu0 0.0
    %2953 = vmatprep.subr.mxu0 0.0
    %2954 = vmatpush1.xpose.msra.mxu0 0.0
    %2955 = vmatprep.subr.mxu0 0.0
    %2956 = vmatpush1.xpose.msra.mxu0 0.0
    %2957 = vmatprep.subr.mxu0 0.0
    %2958 = vmatpush1.xpose.msra.mxu0 0.0
    %2959 = vmatprep.subr.mxu0 0.0
    %2960 = vmatpush1.xpose.msra.mxu0 0.0
    %2961 = vmatprep.subr.mxu0 0.0
    %2962 = vmatpush1.xpose.msra.mxu0 0.0
    %2963 = vmatprep.subr.mxu0 0.0
    %2964 = vmatpush1.xpose.msra.mxu0 0.0
    %2965 = vmatprep.subr.mxu0 0.0
    %2966 = vmatpush1.xpose.msra.mxu0 0.0
    %2967 = vmatprep.subr.mxu0 0.0
    %2968 = vmatpush1.xpose.msra.mxu0 0.0
    %2969 = vmatprep.subr.mxu0 0.0
    %2970 = vmatpush1.xpose.msra.mxu0 0.0
    %2971 = vmatprep.subr.mxu0 0.0
    %2972 = vmatpush1.xpose.msra.mxu0 0.0
    %2973 = vmatprep.subr.mxu0 0.0
    %2974 = vmatpush1.xpose.msra.mxu0 0.0
    %2975 = vmatprep.subr.mxu0 0.0
    %2976 = vmatpush1.xpose.msra.mxu0 0.0
    %2977 = vmatprep.subr.mxu0 0.0
    %2978 = vmatpush1.xpose.msra.mxu0 0.0
    %2979 = vmatprep.subr.mxu0 0.0
    %2980 = vmatpush1.xpose.msra.mxu0 0.0
    %2981 = vmatprep.subr.mxu0 0.0
    %2982 = vmatpush1.xpose.msra.mxu0 0.0
    %2983 = vmatprep.subr.mxu0 0.0
    %2984 = vmatpush1.xpose.msra.mxu0 0.0
    %2985 = vmatprep.subr.mxu0 0.0
    %2986 = vmatpush1.xpose.msra.mxu0 0.0
    %2987 = vmatprep.subr.mxu0 0.0
    %2988 = vmatpush1.xpose.msra.mxu0 0.0
    %2989 = vmatprep.subr.mxu0 0.0
    %2990 = vmatpush1.xpose.msra.mxu0 0.0
    %2991 = vmatprep.subr.mxu0 0.0
    %2992 = vmatpush1.xpose.msra.mxu0 0.0
    %2993 = vmatprep.subr.mxu0 0.0
    %2994 = vmatpush1.xpose.msra.mxu0 0.0
    %2995 = vmatprep.subr.mxu0 0.0
    %2996 = vmatpush1.xpose.msra.mxu0 0.0
    %2997 = vmatprep.subr.mxu0 0.0
    %2998 = vmatpush1.xpose.msra.mxu0 0.0
    %2999 = vmatprep.subr.mxu0 0.0
    %3000 = vmatpush1.xpose.msra.mxu0 0.0
    %3001 = vmatprep.subr.mxu0 0.0
    %3002 = vmatpush1.xpose.msra.mxu0 0.0
    %3003 = vmatprep.subr.mxu0 0.0
    %3004 = vmatpush1.xpose.msra.mxu0 0.0
    %3005 = vmatprep.subr.mxu0 0.0
    %3006 = vmatpush1.xpose.msra.mxu0 0.0
    %3007 = vmatprep.mubr.f32.mxu0 0.0
    %3008 = vmatmul.mubr.f32.gmra.mrb[0].mxu0 %v2938
    %v3009 = vpop.f32.mrb[0].mxu0
    %v3010 = vadd.f32 0.0, %v3009
    %v3011 = vpop.f32.mrb[0].mxu0
    %3012 = vdwg.mxu0
    %v3014 = vsel %vm115, %v1993, 0
    %v3017 = vsel %vm115, %v2082, 0
    %3019 = vmatprep.subr.mxu0 0.0
    %3020 = vmatpush1.xpose.msra.mxu0 %v3017
    %3021 = vmatprep.subr.mxu0 0.0
    %3022 = vmatpush1.xpose.msra.mxu0 0.0
    %3023 = vmatprep.subr.mxu0 0.0
    %3024 = vmatpush1.xpose.msra.mxu0 0.0
    %3025 = vmatprep.subr.mxu0 0.0
    %3026 = vmatpush1.xpose.msra.mxu0 0.0
    %3027 = vmatprep.subr.mxu0 0.0
    %3028 = vmatpush1.xpose.msra.mxu0 0.0
    %3029 = vmatprep.subr.mxu0 0.0
    %3030 = vmatpush1.xpose.msra.mxu0 0.0
    %3031 = vmatprep.subr.mxu0 0.0
    %3032 = vmatpush1.xpose.msra.mxu0 0.0
    %3033 = vmatprep.subr.mxu0 0.0
    %3034 = vmatpush1.xpose.msra.mxu0 0.0
    %3035 = vmatprep.subr.mxu0 0.0
    %3036 = vmatpush1.xpose.msra.mxu0 0.0
    %3037 = vmatprep.subr.mxu0 0.0
    %3038 = vmatpush1.xpose.msra.mxu0 0.0
    %3039 = vmatprep.subr.mxu0 0.0
    %3040 = vmatpush1.xpose.msra.mxu0 0.0
    %3041 = vmatprep.subr.mxu0 0.0
    %3042 = vmatpush1.xpose.msra.mxu0 0.0
    %3043 = vmatprep.subr.mxu0 0.0
    %3044 = vmatpush1.xpose.msra.mxu0 0.0
    %3045 = vmatprep.subr.mxu0 0.0
    %3046 = vmatpush1.xpose.msra.mxu0 0.0
    %3047 = vmatprep.subr.mxu0 0.0
    %3048 = vmatpush1.xpose.msra.mxu0 0.0
    %3049 = vmatprep.subr.mxu0 0.0
    %3050 = vmatpush1.xpose.msra.mxu0 0.0
    %3051 = vmatprep.subr.mxu0 0.0
    %3052 = vmatpush1.xpose.msra.mxu0 0.0
    %3053 = vmatprep.subr.mxu0 0.0
    %3054 = vmatpush1.xpose.msra.mxu0 0.0
    %3055 = vmatprep.subr.mxu0 0.0
    %3056 = vmatpush1.xpose.msra.mxu0 0.0
    %3057 = vmatprep.subr.mxu0 0.0
    %3058 = vmatpush1.xpose.msra.mxu0 0.0
    %3059 = vmatprep.subr.mxu0 0.0
    %3060 = vmatpush1.xpose.msra.mxu0 0.0
    %3061 = vmatprep.subr.mxu0 0.0
    %3062 = vmatpush1.xpose.msra.mxu0 0.0
    %3063 = vmatprep.subr.mxu0 0.0
    %3064 = vmatpush1.xpose.msra.mxu0 0.0
    %3065 = vmatprep.subr.mxu0 0.0
    %3066 = vmatpush1.xpose.msra.mxu0 0.0
    %3067 = vmatprep.subr.mxu0 0.0
    %3068 = vmatpush1.xpose.msra.mxu0 0.0
    %3069 = vmatprep.subr.mxu0 0.0
    %3070 = vmatpush1.xpose.msra.mxu0 0.0
    %3071 = vmatprep.subr.mxu0 0.0
    %3072 = vmatpush1.xpose.msra.mxu0 0.0
    %3073 = vmatprep.subr.mxu0 0.0
    %3074 = vmatpush1.xpose.msra.mxu0 0.0
    %3075 = vmatprep.subr.mxu0 0.0
    %3076 = vmatpush1.xpose.msra.mxu0 0.0
    %3077 = vmatprep.subr.mxu0 0.0
    %3078 = vmatpush1.xpose.msra.mxu0 0.0
    %3079 = vmatprep.subr.mxu0 0.0
    %3080 = vmatpush1.xpose.msra.mxu0 0.0
    %3081 = vmatprep.subr.mxu0 0.0
    %3082 = vmatpush1.xpose.msra.mxu0 0.0
    %3083 = vmatprep.mubr.f32.mxu0 0.0
    %3084 = vmatmul.mubr.f32.gmra.mrb[0].mxu0 %v3014
    %v3085 = vpop.f32.mrb[0].mxu0
    %v3086 = vadd.f32 0.0, %v3085
    %v3087 = vpop.f32.mrb[0].mxu0
    %3088 = vdwg.mxu0
    %v3089 = vmul.f32 %v2858, 0.17677669
    %v3090 = vmul.f32 %v2934, 0.17677669
    %v3091 = vmul.f32 %v3010, 0.17677669
    %v3092 = vmul.f32 %v3086, 0.17677669
    %v3093 = vsel %vm736, %v3089, -inf
    %3094 = vmax.xlane.f32.xlu0 %v3093
    %v3095 = vpop.xlane.xlu0 %3094
    %v3096 = vsel %vm736, %v3090, -inf
    %3097 = vmax.xlane.f32.xlu0 %v3096
    %v3098 = vpop.xlane.xlu0 %3097
    %v3099 = vsel %vm736, %v3091, -inf
    %3100 = vmax.xlane.f32.xlu0 %v3099
    %v3101 = vpop.xlane.xlu0 %3100
    %v3102 = vsel %vm736, %v3092, -inf
    %3103 = vmax.xlane.f32.xlu0 %v3102
    %v3104 = vpop.xlane.xlu0 %3103
    %v3105 = vsub.f32 %v3089, %v3095
    %v3106 = vsub.f32 %v3090, %v3098
    %v3107 = vsub.f32 %v3091, %v3101
    %v3108 = vsub.f32 %v3092, %v3104
    %v3109 = vmul.f32 %v3105, 1.442695
    %v3110 = vpow.pop %v3109
    %v3111 = vmul.f32 %v3106, 1.442695
    %v3112 = vpow.pop %v3111
    %v3113 = vmul.f32 %v3107, 1.442695
    %v3114 = vpow.pop %v3113
    %v3115 = vmul.f32 %v3108, 1.442695
    %v3116 = vpow.pop %v3115
    %v3117 = vsel %vm736, %v3110, 0.0
    %3118 = vadd.xlane.f32.xlu0 %v3117
    %v3119 = vpop.xlane.xlu0 %3118
    %v3120 = vsel %vm736, %v3112, 0.0
    %3121 = vadd.xlane.f32.xlu0 %v3120
    %v3122 = vpop.xlane.xlu0 %3121
    %v3123 = vsel %vm736, %v3114, 0.0
    %3124 = vadd.xlane.f32.xlu0 %v3123
    %v3125 = vpop.xlane.xlu0 %3124
    %v3126 = vsel %vm736, %v3116, 0.0
    %3127 = vadd.xlane.f32.xlu0 %v3126
    %v3128 = vpop.xlane.xlu0 %3127
    %v3129 = vrcp.pop %v3119
    %v3130 = vrcp.pop %v3122
    %v3131 = vrcp.pop %v3125
    %v3132 = vrcp.pop %v3128
    %v3133 = vmul.f32 %v3110, %v3129
    %v3134 = vmul.f32 %v3112, %v3130
    %v3135 = vmul.f32 %v3114, %v3131
    %v3136 = vmul.f32 %v3116, %v3132
    %v3138 = vsel %vm736, %v3133, 0
    %3140 = vmatprep.subr.mxu0 0.0
    %3141 = vmatpush1.msra.mxu0 %v851
    %3142 = vmatprep.subr.mxu0 0.0
    %3143 = vmatpush1.msra.mxu0 0.0
    %3144 = vmatprep.subr.mxu0 0.0
    %3145 = vmatpush1.msra.mxu0 0.0
    %3146 = vmatprep.subr.mxu0 0.0
    %3147 = vmatpush1.msra.mxu0 0.0
    %3148 = vmatprep.subr.mxu0 0.0
    %3149 = vmatpush1.msra.mxu0 0.0
    %3150 = vmatprep.subr.mxu0 0.0
    %3151 = vmatpush1.msra.mxu0 0.0
    %3152 = vmatprep.subr.mxu0 0.0
    %3153 = vmatpush1.msra.mxu0 0.0
    %3154 = vmatprep.subr.mxu0 0.0
    %3155 = vmatpush1.msra.mxu0 0.0
    %3156 = vmatprep.subr.mxu0 0.0
    %3157 = vmatpush1.msra.mxu0 0.0
    %3158 = vmatprep.subr.mxu0 0.0
    %3159 = vmatpush1.msra.mxu0 0.0
    %3160 = vmatprep.subr.mxu0 0.0
    %3161 = vmatpush1.msra.mxu0 0.0
    %3162 = vmatprep.subr.mxu0 0.0
    %3163 = vmatpush1.msra.mxu0 0.0
    %3164 = vmatprep.subr.mxu0 0.0
    %3165 = vmatpush1.msra.mxu0 0.0
    %3166 = vmatprep.subr.mxu0 0.0
    %3167 = vmatpush1.msra.mxu0 0.0
    %3168 = vmatprep.subr.mxu0 0.0
    %3169 = vmatpush1.msra.mxu0 0.0
    %3170 = vmatprep.subr.mxu0 0.0
    %3171 = vmatpush1.msra.mxu0 0.0
    %3172 = vmatprep.subr.mxu0 0.0
    %3173 = vmatpush1.msra.mxu0 0.0
    %3174 = vmatprep.subr.mxu0 0.0
    %3175 = vmatpush1.msra.mxu0 0.0
    %3176 = vmatprep.subr.mxu0 0.0
    %3177 = vmatpush1.msra.mxu0 0.0
    %3178 = vmatprep.subr.mxu0 0.0
    %3179 = vmatpush1.msra.mxu0 0.0
    %3180 = vmatprep.subr.mxu0 0.0
    %3181 = vmatpush1.msra.mxu0 0.0
    %3182 = vmatprep.subr.mxu0 0.0
    %3183 = vmatpush1.msra.mxu0 0.0
    %3184 = vmatprep.subr.mxu0 0.0
    %3185 = vmatpush1.msra.mxu0 0.0
    %3186 = vmatprep.subr.mxu0 0.0
    %3187 = vmatpush1.msra.mxu0 0.0
    %3188 = vmatprep.subr.mxu0 0.0
    %3189 = vmatpush1.msra.mxu0 0.0
    %3190 = vmatprep.subr.mxu0 0.0
    %3191 = vmatpush1.msra.mxu0 0.0
    %3192 = vmatprep.subr.mxu0 0.0
    %3193 = vmatpush1.msra.mxu0 0.0
    %3194 = vmatprep.subr.mxu0 0.0
    %3195 = vmatpush1.msra.mxu0 0.0
    %3196 = vmatprep.subr.mxu0 0.0
    %3197 = vmatpush1.msra.mxu0 0.0
    %3198 = vmatprep.subr.mxu0 0.0
    %3199 = vmatpush1.msra.mxu0 0.0
    %3200 = vmatprep.subr.mxu0 0.0
    %3201 = vmatpush1.msra.mxu0 0.0
    %3202 = vmatprep.subr.mxu0 0.0
    %3203 = vmatpush1.msra.mxu0 0.0
    %3204 = vmatprep.mubr.f32.mxu0 0.0
    %3205 = vmatmul.mubr.f32.gmra.mrb[0].mxu0 %v3138
    %v3206 = vpop.f32.mrb[0].mxu0
    %v3207 = vadd.f32 0.0, %v3206
    %v3208 = vpop.f32.mrb[0].mxu0
    %3209 = vdwg.mxu0
    %v3211 = vsel %vm736, %v3134, 0
    %3213 = vmatprep.subr.mxu0 0.0
    %3214 = vmatpush1.msra.mxu0 %v924
    %3215 = vmatprep.subr.mxu0 0.0
    %3216 = vmatpush1.msra.mxu0 0.0
    %3217 = vmatprep.subr.mxu0 0.0
    %3218 = vmatpush1.msra.mxu0 0.0
    %3219 = vmatprep.subr.mxu0 0.0
    %3220 = vmatpush1.msra.mxu0 0.0
    %3221 = vmatprep.subr.mxu0 0.0
    %3222 = vmatpush1.msra.mxu0 0.0
    %3223 = vmatprep.subr.mxu0 0.0
    %3224 = vmatpush1.msra.mxu0 0.0
    %3225 = vmatprep.subr.mxu0 0.0
    %3226 = vmatpush1.msra.mxu0 0.0
    %3227 = vmatprep.subr.mxu0 0.0
    %3228 = vmatpush1.msra.mxu0 0.0
    %3229 = vmatprep.subr.mxu0 0.0
    %3230 = vmatpush1.msra.mxu0 0.0
    %3231 = vmatprep.subr.mxu0 0.0
    %3232 = vmatpush1.msra.mxu0 0.0
    %3233 = vmatprep.subr.mxu0 0.0
    %3234 = vmatpush1.msra.mxu0 0.0
    %3235 = vmatprep.subr.mxu0 0.0
    %3236 = vmatpush1.msra.mxu0 0.0
    %3237 = vmatprep.subr.mxu0 0.0
    %3238 = vmatpush1.msra.mxu0 0.0
    %3239 = vmatprep.subr.mxu0 0.0
    %3240 = vmatpush1.msra.mxu0 0.0
    %3241 = vmatprep.subr.mxu0 0.0
    %3242 = vmatpush1.msra.mxu0 0.0
    %3243 = vmatprep.subr.mxu0 0.0
    %3244 = vmatpush1.msra.mxu0 0.0
    %3245 = vmatprep.subr.mxu0 0.0
    %3246 = vmatpush1.msra.mxu0 0.0
    %3247 = vmatprep.subr.mxu0 0.0
    %3248 = vmatpush1.msra.mxu0 0.0
    %3249 = vmatprep.subr.mxu0 0.0
    %3250 = vmatpush1.msra.mxu0 0.0
    %3251 = vmatprep.subr.mxu0 0.0
    %3252 = vmatpush1.msra.mxu0 0.0
    %3253 = vmatprep.subr.mxu0 0.0
    %3254 = vmatpush1.msra.mxu0 0.0
    %3255 = vmatprep.subr.mxu0 0.0
    %3256 = vmatpush1.msra.mxu0 0.0
    %3257 = vmatprep.subr.mxu0 0.0
    %3258 = vmatpush1.msra.mxu0 0.0
    %3259 = vmatprep.subr.mxu0 0.0
    %3260 = vmatpush1.msra.mxu0 0.0
    %3261 = vmatprep.subr.mxu0 0.0
    %3262 = vmatpush1.msra.mxu0 0.0
    %3263 = vmatprep.subr.mxu0 0.0
    %3264 = vmatpush1.msra.mxu0 0.0
    %3265 = vmatprep.subr.mxu0 0.0
    %3266 = vmatpush1.msra.mxu0 0.0
    %3267 = vmatprep.subr.mxu0 0.0
    %3268 = vmatpush1.msra.mxu0 0.0
    %3269 = vmatprep.subr.mxu0 0.0
    %3270 = vmatpush1.msra.mxu0 0.0
    %3271 = vmatprep.subr.mxu0 0.0
    %3272 = vmatpush1.msra.mxu0 0.0
    %3273 = vmatprep.subr.mxu0 0.0
    %3274 = vmatpush1.msra.mxu0 0.0
    %3275 = vmatprep.subr.mxu0 0.0
    %3276 = vmatpush1.msra.mxu0 0.0
    %3277 = vmatprep.mubr.f32.mxu0 0.0
    %3278 = vmatmul.mubr.f32.gmra.mrb[0].mxu0 %v3211
    %v3279 = vpop.f32.mrb[0].mxu0
    %v3280 = vadd.f32 0.0, %v3279
    %v3281 = vpop.f32.mrb[0].mxu0
    %3282 = vdwg.mxu0
    %v3284 = vsel %vm736, %v3135, 0
    %3286 = vmatprep.subr.mxu0 0.0
    %3287 = vmatpush1.msra.mxu0 %v997
    %3288 = vmatprep.subr.mxu0 0.0
    %3289 = vmatpush1.msra.mxu0 0.0
    %3290 = vmatprep.subr.mxu0 0.0
    %3291 = vmatpush1.msra.mxu0 0.0
    %3292 = vmatprep.subr.mxu0 0.0
    %3293 = vmatpush1.msra.mxu0 0.0
    %3294 = vmatprep.subr.mxu0 0.0
    %3295 = vmatpush1.msra.mxu0 0.0
    %3296 = vmatprep.subr.mxu0 0.0
    %3297 = vmatpush1.msra.mxu0 0.0
    %3298 = vmatprep.subr.mxu0 0.0
    %3299 = vmatpush1.msra.mxu0 0.0
    %3300 = vmatprep.subr.mxu0 0.0
    %3301 = vmatpush1.msra.mxu0 0.0
    %3302 = vmatprep.subr.mxu0 0.0
    %3303 = vmatpush1.msra.mxu0 0.0
    %3304 = vmatprep.subr.mxu0 0.0
    %3305 = vmatpush1.msra.mxu0 0.0
    %3306 = vmatprep.subr.mxu0 0.0
    %3307 = vmatpush1.msra.mxu0 0.0
    %3308 = vmatprep.subr.mxu0 0.0
    %3309 = vmatpush1.msra.mxu0 0.0
    %3310 = vmatprep.subr.mxu0 0.0
    %3311 = vmatpush1.msra.mxu0 0.0
    %3312 = vmatprep.subr.mxu0 0.0
    %3313 = vmatpush1.msra.mxu0 0.0
    %3314 = vmatprep.subr.mxu0 0.0
    %3315 = vmatpush1.msra.mxu0 0.0
    %3316 = vmatprep.subr.mxu0 0.0
    %3317 = vmatpush1.msra.mxu0 0.0
    %3318 = vmatprep.subr.mxu0 0.0
    %3319 = vmatpush1.msra.mxu0 0.0
    %3320 = vmatprep.subr.mxu0 0.0
    %3321 = vmatpush1.msra.mxu0 0.0
    %3322 = vmatprep.subr.mxu0 0.0
    %3323 = vmatpush1.msra.mxu0 0.0
    %3324 = vmatprep.subr.mxu0 0.0
    %3325 = vmatpush1.msra.mxu0 0.0
    %3326 = vmatprep.subr.mxu0 0.0
    %3327 = vmatpush1.msra.mxu0 0.0
    %3328 = vmatprep.subr.mxu0 0.0
    %3329 = vmatpush1.msra.mxu0 0.0
    %3330 = vmatprep.subr.mxu0 0.0
    %3331 = vmatpush1.msra.mxu0 0.0
    %3332 = vmatprep.subr.mxu0 0.0
    %3333 = vmatpush1.msra.mxu0 0.0
    %3334 = vmatprep.subr.mxu0 0.0
    %3335 = vmatpush1.msra.mxu0 0.0
    %3336 = vmatprep.subr.mxu0 0.0
    %3337 = vmatpush1.msra.mxu0 0.0
    %3338 = vmatprep.subr.mxu0 0.0
    %3339 = vmatpush1.msra.mxu0 0.0
    %3340 = vmatprep.subr.mxu0 0.0
    %3341 = vmatpush1.msra.mxu0 0.0
    %3342 = vmatprep.subr.mxu0 0.0
    %3343 = vmatpush1.msra.mxu0 0.0
    %3344 = vmatprep.subr.mxu0 0.0
    %3345 = vmatpush1.msra.mxu0 0.0
    %3346 = vmatprep.subr.mxu0 0.0
    %3347 = vmatpush1.msra.mxu0 0.0
    %3348 = vmatprep.subr.mxu0 0.0
    %3349 = vmatpush1.msra.mxu0 0.0
    %3350 = vmatprep.mubr.f32.mxu0 0.0
    %3351 = vmatmul.mubr.f32.gmra.mrb[0].mxu0 %v3284
    %v3352 = vpop.f32.mrb[0].mxu0
    %v3353 = vadd.f32 0.0, %v3352
    %v3354 = vpop.f32.mrb[0].mxu0
    %3355 = vdwg.mxu0
    %v3357 = vsel %vm736, %v3136, 0
    %3359 = vmatprep.subr.mxu0 0.0
    %3360 = vmatpush1.msra.mxu0 %v1070
    %3361 = vmatprep.subr.mxu0 0.0
    %3362 = vmatpush1.msra.mxu0 0.0
    %3363 = vmatprep.subr.mxu0 0.0
    %3364 = vmatpush1.msra.mxu0 0.0
    %3365 = vmatprep.subr.mxu0 0.0
    %3366 = vmatpush1.msra.mxu0 0.0
    %3367 = vmatprep.subr.mxu0 0.0
    %3368 = vmatpush1.msra.mxu0 0.0
    %3369 = vmatprep.subr.mxu0 0.0
    %3370 = vmatpush1.msra.mxu0 0.0
    %3371 = vmatprep.subr.mxu0 0.0
    %3372 = vmatpush1.msra.mxu0 0.0
    %3373 = vmatprep.subr.mxu0 0.0
    %3374 = vmatpush1.msra.mxu0 0.0
    %3375 = vmatprep.subr.mxu0 0.0
    %3376 = vmatpush1.msra.mxu0 0.0
    %3377 = vmatprep.subr.mxu0 0.0
    %3378 = vmatpush1.msra.mxu0 0.0
    %3379 = vmatprep.subr.mxu0 0.0
    %3380 = vmatpush1.msra.mxu0 0.0
    %3381 = vmatprep.subr.mxu0 0.0
    %3382 = vmatpush1.msra.mxu0 0.0
    %3383 = vmatprep.subr.mxu0 0.0
    %3384 = vmatpush1.msra.mxu0 0.0
    %3385 = vmatprep.subr.mxu0 0.0
    %3386 = vmatpush1.msra.mxu0 0.0
    %3387 = vmatprep.subr.mxu0 0.0
    %3388 = vmatpush1.msra.mxu0 0.0
    %3389 = vmatprep.subr.mxu0 0.0
    %3390 = vmatpush1.msra.mxu0 0.0
    %3391 = vmatprep.subr.mxu0 0.0
    %3392 = vmatpush1.msra.mxu0 0.0
    %3393 = vmatprep.subr.mxu0 0.0
    %3394 = vmatpush1.msra.mxu0 0.0
    %3395 = vmatprep.subr.mxu0 0.0
    %3396 = vmatpush1.msra.mxu0 0.0
    %3397 = vmatprep.subr.mxu0 0.0
    %3398 = vmatpush1.msra.mxu0 0.0
    %3399 = vmatprep.subr.mxu0 0.0
    %3400 = vmatpush1.msra.mxu0 0.0
    %3401 = vmatprep.subr.mxu0 0.0
    %3402 = vmatpush1.msra.mxu0 0.0
    %3403 = vmatprep.subr.mxu0 0.0
    %3404 = vmatpush1.msra.mxu0 0.0
    %3405 = vmatprep.subr.mxu0 0.0
    %3406 = vmatpush1.msra.mxu0 0.0
    %3407 = vmatprep.subr.mxu0 0.0
    %3408 = vmatpush1.msra.mxu0 0.0
    %3409 = vmatprep.subr.mxu0 0.0
    %3410 = vmatpush1.msra.mxu0 0.0
    %3411 = vmatprep.subr.mxu0 0.0
    %3412 = vmatpush1.msra.mxu0 0.0
    %3413 = vmatprep.subr.mxu0 0.0
    %3414 = vmatpush1.msra.mxu0 0.0
    %3415 = vmatprep.subr.mxu0 0.0
    %3416 = vmatpush1.msra.mxu0 0.0
    %3417 = vmatprep.subr.mxu0 0.0
    %3418 = vmatpush1.msra.mxu0 0.0
    %3419 = vmatprep.subr.mxu0 0.0
    %3420 = vmatpush1.msra.mxu0 0.0
    %3421 = vmatprep.subr.mxu0 0.0
    %3422 = vmatpush1.msra.mxu0 0.0
    %3423 = vmatprep.mubr.f32.mxu0 0.0
    %3424 = vmatmul.mubr.f32.gmra.mrb[0].mxu0 %v3357
    %v3425 = vpop.f32.mrb[0].mxu0
    %v3426 = vadd.f32 0.0, %v3425
    %v3427 = vpop.f32.mrb[0].mxu0
    %3428 = vdwg.mxu0
    %v3429 = vmul.f32 %v3207, %v3207
    %v3430 = vmul.f32 %v3280, %v3280
    %v3431 = vmul.f32 %v3353, %v3353
    %v3432 = vmul.f32 %v3426, %v3426
    %v3433 = vsel %vm115, %v3429, 0.0
    %3434 = vadd.xlane.f32.xlu0 %v3433
    %v3435 = vpop.xlane.xlu0 %3434
    %v3436 = vsel %vm115, %v3430, 0.0
    %3437 = vadd.xlane.f32.xlu0 %v3436
    %v3438 = vpop.xlane.xlu0 %3437
    %v3439 = vsel %vm115, %v3431, 0.0
    %3440 = vadd.xlane.f32.xlu0 %v3439
    %v3441 = vpop.xlane.xlu0 %3440
    %v3442 = vsel %vm115, %v3432, 0.0
    %3443 = vadd.xlane.f32.xlu0 %v3442
    %v3444 = vpop.xlane.xlu0 %3443
    %v3445 = vrsqrt.pop %v3435
    %v3446 = vmul.f32 %v3435, %v3445
    %vm3447 = vcmp.eq.f32.partialorder %v3435, inf
    %v3448 = vsel %vm3447, %v3435, %v3446
    %vm3449 = vcmp.eq.f32.partialorder %v3435, 0.0
    %v3450 = vand.u32 %v3435, 2147483648
    %v3451 = vsel %vm3449, %v3450, %v3448
    %v3452 = vrsqrt.pop %v3438
    %v3453 = vmul.f32 %v3438, %v3452
    %vm3454 = vcmp.eq.f32.partialorder %v3438, inf
    %v3455 = vsel %vm3454, %v3438, %v3453
    %vm3456 = vcmp.eq.f32.partialorder %v3438, 0.0
    %v3457 = vand.u32 %v3438, 2147483648
    %v3458 = vsel %vm3456, %v3457, %v3455
    %v3459 = vrsqrt.pop %v3441
    %v3460 = vmul.f32 %v3441, %v3459
    %vm3461 = vcmp.eq.f32.partialorder %v3441, inf
    %v3462 = vsel %vm3461, %v3441, %v3460
    %vm3463 = vcmp.eq.f32.partialorder %v3441, 0.0
    %v3464 = vand.u32 %v3441, 2147483648
    %v3465 = vsel %vm3463, %v3464, %v3462
    %v3466 = vrsqrt.pop %v3444
    %v3467 = vmul.f32 %v3444, %v3466
    %vm3468 = vcmp.eq.f32.partialorder %v3444, inf
    %v3469 = vsel %vm3468, %v3444, %v3467
    %vm3470 = vcmp.eq.f32.partialorder %v3444, 0.0
    %v3471 = vand.u32 %v3444, 2147483648
    %v3472 = vsel %vm3470, %v3471, %v3469
    %v3473 = vadd.f32 %v3451, 1e-08
    %v3474 = vadd.f32 %v3458, 1e-08
    %v3475 = vadd.f32 %v3465, 1e-08
    %v3476 = vadd.f32 %v3472, 1e-08
    %v3477 = vrcp.pop %v3473
    %v3478 = vmul.f32 %v3207, %v3477
    %v3479 = vrcp.pop %v3474
    %v3480 = vmul.f32 %v3280, %v3479
    %v3481 = vrcp.pop %v3475
    %v3482 = vmul.f32 %v3353, %v3481
    %v3483 = vrcp.pop %v3476
    %v3484 = vmul.f32 %v3426, %v3483
    %v3485 = vmul.f32 %v107, %v2778
    %v3486 = vmul.f32 %v107, %v2780
    %v3487 = vmul.f32 %v108, %v2782
    %v3488 = vmul.f32 %v108, %v2784
    %v3489 = vsel %vm115, %v3485, 0.0
    %3490 = vadd.xlane.f32.xlu0 %v3489
    %v3491 = vpop.xlane.xlu0 %3490
    %v3492 = vsel %vm115, %v3486, 0.0
    %3493 = vadd.xlane.f32.xlu0 %v3492
    %v3494 = vpop.xlane.xlu0 %3493
    %v3495 = vsel %vm115, %v3487, 0.0
    %3496 = vadd.xlane.f32.xlu0 %v3495
    %v3497 = vpop.xlane.xlu0 %3496
    %v3498 = vsel %vm115, %v3488, 0.0
    %3499 = vadd.xlane.f32.xlu0 %v3498
    %v3500 = vpop.xlane.xlu0 %3499
    %v3501 = vsub.f32 0.0, %v3491
    %v3502 = vsub.f32 0.0, %v3494
    %v3503 = vsub.f32 0.0, %v3497
    %v3504 = vsub.f32 0.0, %v3500
    %v3505 = vmul.f32 %v3501, 1.442695
    %v3506 = vpow.pop %v3505
    %v3507 = vmul.f32 %v3502, 1.442695
    %v3508 = vpow.pop %v3507
    %v3509 = vmul.f32 %v3503, 1.442695
    %v3510 = vpow.pop %v3509
    %v3511 = vmul.f32 %v3504, 1.442695
    %v3512 = vpow.pop %v3511
    %v3513 = vadd.f32 %v3506, 1.0
    %v3514 = vadd.f32 %v3508, 1.0
    %v3515 = vadd.f32 %v3510, 1.0
    %v3516 = vadd.f32 %v3512, 1.0
    %v3517 = vrcp.pop %v3513
    %v3518 = vmul.f32 1.0, %v3517
    %v3519 = vrcp.pop %v3514
    %v3520 = vmul.f32 1.0, %v3519
    %v3521 = vrcp.pop %v3515
    %v3522 = vmul.f32 1.0, %v3521
    %v3523 = vrcp.pop %v3516
    %v3524 = vmul.f32 1.0, %v3523
    %v3525 = vmul.f32 %v109, %v3478
    %v3526 = vmul.f32 %v110, %v3480
    %v3527 = vmul.f32 %v109, %v3482
    %v3528 = vmul.f32 %v110, %v3484
    %v3529 = vsel %vm115, %v3525, 0.0
    %3530 = vadd.xlane.f32.xlu0 %v3529
    %v3531 = vpop.xlane.xlu0 %3530
    %v3532 = vsel %vm115, %v3526, 0.0
    %3533 = vadd.xlane.f32.xlu0 %v3532
    %v3534 = vpop.xlane.xlu0 %3533
    %v3535 = vsel %vm115, %v3527, 0.0
    %3536 = vadd.xlane.f32.xlu0 %v3535
    %v3537 = vpop.xlane.xlu0 %3536
    %v3538 = vsel %vm115, %v3528, 0.0
    %3539 = vadd.xlane.f32.xlu0 %v3538
    %v3540 = vpop.xlane.xlu0 %3539
    %v3541 = vsub.f32 0.0, %v3531
    %v3542 = vsub.f32 0.0, %v3534
    %v3543 = vsub.f32 0.0, %v3537
    %v3544 = vsub.f32 0.0, %v3540
    %v3545 = vmul.f32 %v3541, 1.442695
    %v3546 = vpow.pop %v3545
    %v3547 = vmul.f32 %v3542, 1.442695
    %v3548 = vpow.pop %v3547
    %v3549 = vmul.f32 %v3543, 1.442695
    %v3550 = vpow.pop %v3549
    %v3551 = vmul.f32 %v3544, 1.442695
    %v3552 = vpow.pop %v3551
    %v3553 = vadd.f32 %v3546, 1.0
    %v3554 = vadd.f32 %v3548, 1.0
    %v3555 = vadd.f32 %v3550, 1.0
    %v3556 = vadd.f32 %v3552, 1.0
    %v3557 = vrcp.pop %v3553
    %v3558 = vmul.f32 1.0, %v3557
    %v3559 = vrcp.pop %v3554
    %v3560 = vmul.f32 1.0, %v3559
    %v3561 = vrcp.pop %v3555
    %v3562 = vmul.f32 1.0, %v3561
    %v3563 = vrcp.pop %v3556
    %v3564 = vmul.f32 1.0, %v3563
    %3569 = vrot.lane.b32.xlu0 %v2778, 32
    %v3570 = vpop.permute.xlu0 %3569
    %3571 = vrot.lane.b32.xlu0 %v2780, 32
    %v3572 = vpop.permute.xlu0 %3571
    %3573 = vrot.lane.b32.xlu0 %v2782, 32
    %v3574 = vpop.permute.xlu0 %3573
    %3575 = vrot.lane.b32.xlu0 %v2784, 32
    %v3576 = vpop.permute.xlu0 %3575
    %v3581 = vsel %vm115, %v107, %v3570
    %v3582 = vsel %vm115, %v107, %v3572
    %v3583 = vsel %vm115, %v108, %v3574
    %v3584 = vsel %vm115, %v108, %v3576
    %v3585 = vmul.f32 %v3581, %v3518
    %v3586 = vmul.f32 %v3582, %v3520
    %v3587 = vmul.f32 %v3583, %v3522
    %v3588 = vmul.f32 %v3584, %v3524
    %3593 = vrot.lane.b32.xlu0 %v3478, 32
    %v3594 = vpop.permute.xlu0 %3593
    %3595 = vrot.lane.b32.xlu0 %v3480, 32
    %v3596 = vpop.permute.xlu0 %3595
    %3597 = vrot.lane.b32.xlu0 %v3482, 32
    %v3598 = vpop.permute.xlu0 %3597
    %3599 = vrot.lane.b32.xlu0 %v3484, 32
    %v3600 = vpop.permute.xlu0 %3599
    %v3605 = vsel %vm115, %v109, %v3594
    %v3606 = vsel %vm115, %v110, %v3596
    %v3607 = vsel %vm115, %v109, %v3598
    %v3608 = vsel %vm115, %v110, %v3600
    %v3609 = vmul.f32 %v3605, %v3558
    %v3610 = vmul.f32 %v3606, %v3560
    %v3611 = vmul.f32 %v3607, %v3562
    %v3612 = vmul.f32 %v3608, %v3564
    %v3613 = vld [vmem:[%s10] sm:$0xff]
    %v3614 = vld [vmem:[%s10 + $0x8] sm:$0xff]
    %v3615 = vld [vmem:[%s10 + $0x10] sm:$0xff]
    %v3616 = vld [vmem:[%s10 + $0x18] sm:$0xff]
    %v3617 = vld [vmem:[%s10 + $0x20] sm:$0xff]
    %v3618 = vld [vmem:[%s10 + $0x28] sm:$0xff]
    %v3619 = vld [vmem:[%s10 + $0x30] sm:$0xff]
    %v3620 = vld [vmem:[%s10 + $0x38] sm:$0xff]
    %vm3621 = vcmask 523264
    %v3623 = vsel %vm3621, %v3585, 0
    %v3626 = vsel %vm3621, %v3586, 0
    %v3629 = vsel %vm3621, %v3587, 0
    %v3632 = vsel %vm3621, %v3588, 0
    %3634 = vmatprep.subr.mxu0 0.0
    %3635 = vmatpush1.msra.mxu0 %v3613
    %3636 = vmatprep.subr.mxu0 0.0
    %3637 = vmatpush1.msra.mxu0 %v3614
    %3638 = vmatprep.subr.mxu0 0.0
    %3639 = vmatpush1.msra.mxu0 %v3615
    %3640 = vmatprep.subr.mxu0 0.0
    %3641 = vmatpush1.msra.mxu0 %v3616
    %3642 = vmatprep.subr.mxu0 0.0
    %3643 = vmatpush1.msra.mxu0 %v3617
    %3644 = vmatprep.subr.mxu0 0.0
    %3645 = vmatpush1.msra.mxu0 %v3618
    %3646 = vmatprep.subr.mxu0 0.0
    %3647 = vmatpush1.msra.mxu0 %v3619
    %3648 = vmatprep.subr.mxu0 0.0
    %3649 = vmatpush1.msra.mxu0 %v3620
    %3650 = vmatprep.subr.mxu0 0.0
    %3651 = vmatpush1.msra.mxu0 0.0
    %3652 = vmatprep.subr.mxu0 0.0
    %3653 = vmatpush1.msra.mxu0 0.0
    %3654 = vmatprep.subr.mxu0 0.0
    %3655 = vmatpush1.msra.mxu0 0.0
    %3656 = vmatprep.subr.mxu0 0.0
    %3657 = vmatpush1.msra.mxu0 0.0
    %3658 = vmatprep.subr.mxu0 0.0
    %3659 = vmatpush1.msra.mxu0 0.0
    %3660 = vmatprep.subr.mxu0 0.0
    %3661 = vmatpush1.msra.mxu0 0.0
    %3662 = vmatprep.subr.mxu0 0.0
    %3663 = vmatpush1.msra.mxu0 0.0
    %3664 = vmatprep.subr.mxu0 0.0
    %3665 = vmatpush1.msra.mxu0 0.0
    %3666 = vmatprep.subr.mxu0 0.0
    %3667 = vmatpush1.msra.mxu0 0.0
    %3668 = vmatprep.subr.mxu0 0.0
    %3669 = vmatpush1.msra.mxu0 0.0
    %3670 = vmatprep.subr.mxu0 0.0
    %3671 = vmatpush1.msra.mxu0 0.0
    %3672 = vmatprep.subr.mxu0 0.0
    %3673 = vmatpush1.msra.mxu0 0.0
    %3674 = vmatprep.subr.mxu0 0.0
    %3675 = vmatpush1.msra.mxu0 0.0
    %3676 = vmatprep.subr.mxu0 0.0
    %3677 = vmatpush1.msra.mxu0 0.0
    %3678 = vmatprep.subr.mxu0 0.0
    %3679 = vmatpush1.msra.mxu0 0.0
    %3680 = vmatprep.subr.mxu0 0.0
    %3681 = vmatpush1.msra.mxu0 0.0
    %3682 = vmatprep.subr.mxu0 0.0
    %3683 = vmatpush1.msra.mxu0 0.0
    %3684 = vmatprep.subr.mxu0 0.0
    %3685 = vmatpush1.msra.mxu0 0.0
    %3686 = vmatprep.subr.mxu0 0.0
    %3687 = vmatpush1.msra.mxu0 0.0
    %3688 = vmatprep.subr.mxu0 0.0
    %3689 = vmatpush1.msra.mxu0 0.0
    %3690 = vmatprep.subr.mxu0 0.0
    %3691 = vmatpush1.msra.mxu0 0.0
    %3692 = vmatprep.subr.mxu0 0.0
    %3693 = vmatpush1.msra.mxu0 0.0
    %3694 = vmatprep.subr.mxu0 0.0
    %3695 = vmatpush1.msra.mxu0 0.0
    %3696 = vmatprep.subr.mxu0 0.0
    %3697 = vmatpush1.msra.mxu0 0.0
    %3698 = vmatprep.mubr.f32.mxu0 0.0
    %3699 = vmatmul.mubr.f32.gmra.mrb[0].mxu0 %v3623
    %v3700 = vpop.f32.mrb[0].mxu0
    %v3701 = vadd.f32 0.0, %v3700
    %v3702 = vpop.f32.mrb[0].mxu0
    %3703 = vmatprep.mubr.f32.mxu0 0.0
    %3704 = vmatmul.mubr.f32.gmra.mrb[0].mxu0 %v3626
    %v3705 = vpop.f32.mrb[0].mxu0
    %v3706 = vadd.f32 0.0, %v3705
    %v3707 = vpop.f32.mrb[0].mxu0
    %3708 = vmatprep.mubr.f32.mxu0 0.0
    %3709 = vmatmul.mubr.f32.gmra.mrb[0].mxu0 %v3629
    %v3710 = vpop.f32.mrb[0].mxu0
    %v3711 = vadd.f32 0.0, %v3710
    %v3712 = vpop.f32.mrb[0].mxu0
    %3713 = vmatprep.mubr.f32.mxu0 0.0
    %3714 = vmatmul.mubr.f32.gmra.mrb[0].mxu0 %v3632
    %v3715 = vpop.f32.mrb[0].mxu0
    %v3716 = vadd.f32 0.0, %v3715
    %v3717 = vpop.f32.mrb[0].mxu0
    %3718 = vdwg.mxu0
    %v3719 = vmax.f32 %v3701, 0.0
    %v3720 = vmax.f32 %v3706, 0.0
    %v3721 = vmax.f32 %v3711, 0.0
    %v3722 = vmax.f32 %v3716, 0.0
    %v3723 = vadd.f32 %v3719, %v107
    %v3724 = vadd.f32 %v3720, %v107
    %v3725 = vadd.f32 %v3721, %v108
    %v3726 = vadd.f32 %v3722, %v108
    %v3727 = vld [vmem:[%s11] sm:$0xff]
    %v3728 = vld [vmem:[%s11 + $0x8] sm:$0xff]
    %v3729 = vld [vmem:[%s11 + $0x10] sm:$0xff]
    %v3730 = vld [vmem:[%s11 + $0x18] sm:$0xff]
    %v3731 = vld [vmem:[%s11 + $0x20] sm:$0xff]
    %v3732 = vld [vmem:[%s11 + $0x28] sm:$0xff]
    %v3733 = vld [vmem:[%s11 + $0x30] sm:$0xff]
    %v3734 = vld [vmem:[%s11 + $0x38] sm:$0xff]
    %v3736 = vsel %vm3621, %v3609, 0
    %v3739 = vsel %vm3621, %v3610, 0
    %v3742 = vsel %vm3621, %v3611, 0
    %v3745 = vsel %vm3621, %v3612, 0
    %3747 = vmatprep.subr.mxu0 0.0
    %3748 = vmatpush1.msra.mxu0 %v3727
    %3749 = vmatprep.subr.mxu0 0.0
    %3750 = vmatpush1.msra.mxu0 %v3728
    %3751 = vmatprep.subr.mxu0 0.0
    %3752 = vmatpush1.msra.mxu0 %v3729
    %3753 = vmatprep.subr.mxu0 0.0
    %3754 = vmatpush1.msra.mxu0 %v3730
    %3755 = vmatprep.subr.mxu0 0.0
    %3756 = vmatpush1.msra.mxu0 %v3731
    %3757 = vmatprep.subr.mxu0 0.0
    %3758 = vmatpush1.msra.mxu0 %v3732
    %3759 = vmatprep.subr.mxu0 0.0
    %3760 = vmatpush1.msra.mxu0 %v3733
    %3761 = vmatprep.subr.mxu0 0.0
    %3762 = vmatpush1.msra.mxu0 %v3734
    %3763 = vmatprep.subr.mxu0 0.0
    %3764 = vmatpush1.msra.mxu0 0.0
    %3765 = vmatprep.subr.mxu0 0.0
    %3766 = vmatpush1.msra.mxu0 0.0
    %3767 = vmatprep.subr.mxu0 0.0
    %3768 = vmatpush1.msra.mxu0 0.0
    %3769 = vmatprep.subr.mxu0 0.0
    %3770 = vmatpush1.msra.mxu0 0.0
    %3771 = vmatprep.subr.mxu0 0.0
    %3772 = vmatpush1.msra.mxu0 0.0
    %3773 = vmatprep.subr.mxu0 0.0
    %3774 = vmatpush1.msra.mxu0 0.0
    %3775 = vmatprep.subr.mxu0 0.0
    %3776 = vmatpush1.msra.mxu0 0.0
    %3777 = vmatprep.subr.mxu0 0.0
    %3778 = vmatpush1.msra.mxu0 0.0
    %3779 = vmatprep.subr.mxu0 0.0
    %3780 = vmatpush1.msra.mxu0 0.0
    %3781 = vmatprep.subr.mxu0 0.0
    %3782 = vmatpush1.msra.mxu0 0.0
    %3783 = vmatprep.subr.mxu0 0.0
    %3784 = vmatpush1.msra.mxu0 0.0
    %3785 = vmatprep.subr.mxu0 0.0
    %3786 = vmatpush1.msra.mxu0 0.0
    %3787 = vmatprep.subr.mxu0 0.0
    %3788 = vmatpush1.msra.mxu0 0.0
    %3789 = vmatprep.subr.mxu0 0.0
    %3790 = vmatpush1.msra.mxu0 0.0
    %3791 = vmatprep.subr.mxu0 0.0
    %3792 = vmatpush1.msra.mxu0 0.0
    %3793 = vmatprep.subr.mxu0 0.0
    %3794 = vmatpush1.msra.mxu0 0.0
    %3795 = vmatprep.subr.mxu0 0.0
    %3796 = vmatpush1.msra.mxu0 0.0
    %3797 = vmatprep.subr.mxu0 0.0
    %3798 = vmatpush1.msra.mxu0 0.0
    %3799 = vmatprep.subr.mxu0 0.0
    %3800 = vmatpush1.msra.mxu0 0.0
    %3801 = vmatprep.subr.mxu0 0.0
    %3802 = vmatpush1.msra.mxu0 0.0
    %3803 = vmatprep.subr.mxu0 0.0
    %3804 = vmatpush1.msra.mxu0 0.0
    %3805 = vmatprep.subr.mxu0 0.0
    %3806 = vmatpush1.msra.mxu0 0.0
    %3807 = vmatprep.subr.mxu0 0.0
    %3808 = vmatpush1.msra.mxu0 0.0
    %3809 = vmatprep.subr.mxu0 0.0
    %3810 = vmatpush1.msra.mxu0 0.0
    %3811 = vmatprep.mubr.f32.mxu0 0.0
    %3812 = vmatmul.mubr.f32.gmra.mrb[0].mxu0 %v3736
    %v3813 = vpop.f32.mrb[0].mxu0
    %v3814 = vadd.f32 0.0, %v3813
    %v3815 = vpop.f32.mrb[0].mxu0
    %3816 = vmatprep.mubr.f32.mxu0 0.0
    %3817 = vmatmul.mubr.f32.gmra.mrb[0].mxu0 %v3739
    %v3818 = vpop.f32.mrb[0].mxu0
    %v3819 = vadd.f32 0.0, %v3818
    %v3820 = vpop.f32.mrb[0].mxu0
    %3821 = vmatprep.mubr.f32.mxu0 0.0
    %3822 = vmatmul.mubr.f32.gmra.mrb[0].mxu0 %v3742
    %v3823 = vpop.f32.mrb[0].mxu0
    %v3824 = vadd.f32 0.0, %v3823
    %v3825 = vpop.f32.mrb[0].mxu0
    %3826 = vmatprep.mubr.f32.mxu0 0.0
    %3827 = vmatmul.mubr.f32.gmra.mrb[0].mxu0 %v3745
    %v3828 = vpop.f32.mrb[0].mxu0
    %v3829 = vadd.f32 0.0, %v3828
    %v3830 = vpop.f32.mrb[0].mxu0
    %3831 = vdwg.mxu0
    %v3832 = vmax.f32 %v3814, 0.0
    %v3833 = vmax.f32 %v3819, 0.0
    %v3834 = vmax.f32 %v3824, 0.0
    %v3835 = vmax.f32 %v3829, 0.0
    %v3836 = vadd.f32 %v3832, %v109
    %v3837 = vadd.f32 %v3833, %v110
    %v3838 = vadd.f32 %v3834, %v109
    %v3839 = vadd.f32 %v3835, %v110
    %v3840 = vld [vmem:[%s16] sm:$0xff]
    %v3841 = vld [vmem:[%s16 + $0x8] sm:$0xff]
    %v3842 = vld [vmem:[%s16 + $0x10] sm:$0xff]
    %v3843 = vld [vmem:[%s16 + $0x18] sm:$0xff]
    %v3844 = vld [vmem:[%s17] sm:$0x1]
    %v3845 = vld [vmem:[%s18] sm:$0xff]
    %v3846 = vld [vmem:[%s18 + $0x8] sm:$0xff]
    %v3847 = vld [vmem:[%s18 + $0x10] sm:$0xff]
    %v3848 = vld [vmem:[%s18 + $0x18] sm:$0xff]
    %v3849 = vld [vmem:[%s19] sm:$0x1]
    %v3851 = vlaneseq
    %v3852 = vshrl.u32 %v3851, 7
    %v3853 = vsub.s32 0, %v3852
    %v3854 = vrot.slane %v3844, %v3853
    %v3857 = vsel %vm115, %v3723, 0
    %v3860 = vsel %vm115, %v3724, 0
    %v3863 = vsel %vm115, %v3725, 0
    %v3866 = vsel %vm115, %v3726, 0
    %3868 = vmatprep.subr.mxu0 0.0
    %3869 = vmatpush1.msra.mxu0 %v3840
    %3870 = vmatprep.subr.mxu0 0.0
    %3871 = vmatpush1.msra.mxu0 %v3841
    %3872 = vmatprep.subr.mxu0 0.0
    %3873 = vmatpush1.msra.mxu0 %v3842
    %3874 = vmatprep.subr.mxu0 0.0
    %3875 = vmatpush1.msra.mxu0 %v3843
    %3876 = vmatprep.subr.mxu0 0.0
    %3877 = vmatpush1.msra.mxu0 0.0
    %3878 = vmatprep.subr.mxu0 0.0
    %3879 = vmatpush1.msra.mxu0 0.0
    %3880 = vmatprep.subr.mxu0 0.0
    %3881 = vmatpush1.msra.mxu0 0.0
    %3882 = vmatprep.subr.mxu0 0.0
    %3883 = vmatpush1.msra.mxu0 0.0
    %3884 = vmatprep.subr.mxu0 0.0
    %3885 = vmatpush1.msra.mxu0 0.0
    %3886 = vmatprep.subr.mxu0 0.0
    %3887 = vmatpush1.msra.mxu0 0.0
    %3888 = vmatprep.subr.mxu0 0.0
    %3889 = vmatpush1.msra.mxu0 0.0
    %3890 = vmatprep.subr.mxu0 0.0
    %3891 = vmatpush1.msra.mxu0 0.0
    %3892 = vmatprep.subr.mxu0 0.0
    %3893 = vmatpush1.msra.mxu0 0.0
    %3894 = vmatprep.subr.mxu0 0.0
    %3895 = vmatpush1.msra.mxu0 0.0
    %3896 = vmatprep.subr.mxu0 0.0
    %3897 = vmatpush1.msra.mxu0 0.0
    %3898 = vmatprep.subr.mxu0 0.0
    %3899 = vmatpush1.msra.mxu0 0.0
    %3900 = vmatprep.subr.mxu0 0.0
    %3901 = vmatpush1.msra.mxu0 0.0
    %3902 = vmatprep.subr.mxu0 0.0
    %3903 = vmatpush1.msra.mxu0 0.0
    %3904 = vmatprep.subr.mxu0 0.0
    %3905 = vmatpush1.msra.mxu0 0.0
    %3906 = vmatprep.subr.mxu0 0.0
    %3907 = vmatpush1.msra.mxu0 0.0
    %3908 = vmatprep.subr.mxu0 0.0
    %3909 = vmatpush1.msra.mxu0 0.0
    %3910 = vmatprep.subr.mxu0 0.0
    %3911 = vmatpush1.msra.mxu0 0.0
    %3912 = vmatprep.subr.mxu0 0.0
    %3913 = vmatpush1.msra.mxu0 0.0
    %3914 = vmatprep.subr.mxu0 0.0
    %3915 = vmatpush1.msra.mxu0 0.0
    %3916 = vmatprep.subr.mxu0 0.0
    %3917 = vmatpush1.msra.mxu0 0.0
    %3918 = vmatprep.subr.mxu0 0.0
    %3919 = vmatpush1.msra.mxu0 0.0
    %3920 = vmatprep.subr.mxu0 0.0
    %3921 = vmatpush1.msra.mxu0 0.0
    %3922 = vmatprep.subr.mxu0 0.0
    %3923 = vmatpush1.msra.mxu0 0.0
    %3924 = vmatprep.subr.mxu0 0.0
    %3925 = vmatpush1.msra.mxu0 0.0
    %3926 = vmatprep.subr.mxu0 0.0
    %3927 = vmatpush1.msra.mxu0 0.0
    %3928 = vmatprep.subr.mxu0 0.0
    %3929 = vmatpush1.msra.mxu0 0.0
    %3930 = vmatprep.subr.mxu0 0.0
    %3931 = vmatpush1.msra.mxu0 0.0
    %3932 = vmatprep.mubr.f32.mxu0 0.0
    %3933 = vmatmul.mubr.f32.gmra.mrb[0].mxu0 %v3857
    %v3934 = vpop.f32.mrb[0].mxu0
    %v3935 = vadd.f32 %v3854, %v3934
    %v3936 = vpop.f32.mrb[0].mxu0
    %3937 = vmatprep.mubr.f32.mxu0 0.0
    %3938 = vmatmul.mubr.f32.gmra.mrb[0].mxu0 %v3860
    %v3939 = vpop.f32.mrb[0].mxu0
    %v3940 = vadd.f32 %v3854, %v3939
    %v3941 = vpop.f32.mrb[0].mxu0
    %3942 = vmatprep.mubr.f32.mxu0 0.0
    %3943 = vmatmul.mubr.f32.gmra.mrb[0].mxu0 %v3863
    %v3944 = vpop.f32.mrb[0].mxu0
    %v3945 = vadd.f32 %v3854, %v3944
    %v3946 = vpop.f32.mrb[0].mxu0
    %3947 = vmatprep.mubr.f32.mxu0 0.0
    %3948 = vmatmul.mubr.f32.gmra.mrb[0].mxu0 %v3866
    %v3949 = vpop.f32.mrb[0].mxu0
    %v3950 = vadd.f32 %v3854, %v3949
    %v3951 = vpop.f32.mrb[0].mxu0
    %3952 = vdwg.mxu0
    %v3953 = vmax.f32 %v3935, 0.0
    %v3954 = vmax.f32 %v3940, 0.0
    %v3955 = vmax.f32 %v3945, 0.0
    %v3956 = vmax.f32 %v3950, 0.0
    %v3958 = vlaneseq
    %v3959 = vshrl.u32 %v3958, 7
    %v3960 = vsub.s32 0, %v3959
    %v3961 = vrot.slane %v3849, %v3960
    %v3964 = vsel %vm115, %v3953, 0
    %v3967 = vsel %vm115, %v3954, 0
    %v3970 = vsel %vm115, %v3955, 0
    %v3973 = vsel %vm115, %v3956, 0
    %3975 = vmatprep.subr.mxu0 0.0
    %3976 = vmatpush1.msra.mxu0 %v3845
    %3977 = vmatprep.subr.mxu0 0.0
    %3978 = vmatpush1.msra.mxu0 %v3846
    %3979 = vmatprep.subr.mxu0 0.0
    %3980 = vmatpush1.msra.mxu0 %v3847
    %3981 = vmatprep.subr.mxu0 0.0
    %3982 = vmatpush1.msra.mxu0 %v3848
    %3983 = vmatprep.subr.mxu0 0.0
    %3984 = vmatpush1.msra.mxu0 0.0
    %3985 = vmatprep.subr.mxu0 0.0
    %3986 = vmatpush1.msra.mxu0 0.0
    %3987 = vmatprep.subr.mxu0 0.0
    %3988 = vmatpush1.msra.mxu0 0.0
    %3989 = vmatprep.subr.mxu0 0.0
    %3990 = vmatpush1.msra.mxu0 0.0
    %3991 = vmatprep.subr.mxu0 0.0
    %3992 = vmatpush1.msra.mxu0 0.0
    %3993 = vmatprep.subr.mxu0 0.0
    %3994 = vmatpush1.msra.mxu0 0.0
    %3995 = vmatprep.subr.mxu0 0.0
    %3996 = vmatpush1.msra.mxu0 0.0
    %3997 = vmatprep.subr.mxu0 0.0
    %3998 = vmatpush1.msra.mxu0 0.0
    %3999 = vmatprep.subr.mxu0 0.0
    %4000 = vmatpush1.msra.mxu0 0.0
    %4001 = vmatprep.subr.mxu0 0.0
    %4002 = vmatpush1.msra.mxu0 0.0
    %4003 = vmatprep.subr.mxu0 0.0
    %4004 = vmatpush1.msra.mxu0 0.0
    %4005 = vmatprep.subr.mxu0 0.0
    %4006 = vmatpush1.msra.mxu0 0.0
    %4007 = vmatprep.subr.mxu0 0.0
    %4008 = vmatpush1.msra.mxu0 0.0
    %4009 = vmatprep.subr.mxu0 0.0
    %4010 = vmatpush1.msra.mxu0 0.0
    %4011 = vmatprep.subr.mxu0 0.0
    %4012 = vmatpush1.msra.mxu0 0.0
    %4013 = vmatprep.subr.mxu0 0.0
    %4014 = vmatpush1.msra.mxu0 0.0
    %4015 = vmatprep.subr.mxu0 0.0
    %4016 = vmatpush1.msra.mxu0 0.0
    %4017 = vmatprep.subr.mxu0 0.0
    %4018 = vmatpush1.msra.mxu0 0.0
    %4019 = vmatprep.subr.mxu0 0.0
    %4020 = vmatpush1.msra.mxu0 0.0
    %4021 = vmatprep.subr.mxu0 0.0
    %4022 = vmatpush1.msra.mxu0 0.0
    %4023 = vmatprep.subr.mxu0 0.0
    %4024 = vmatpush1.msra.mxu0 0.0
    %4025 = vmatprep.subr.mxu0 0.0
    %4026 = vmatpush1.msra.mxu0 0.0
    %4027 = vmatprep.subr.mxu0 0.0
    %4028 = vmatpush1.msra.mxu0 0.0
    %4029 = vmatprep.subr.mxu0 0.0
    %4030 = vmatpush1.msra.mxu0 0.0
    %4031 = vmatprep.subr.mxu0 0.0
    %4032 = vmatpush1.msra.mxu0 0.0
    %4033 = vmatprep.subr.mxu0 0.0
    %4034 = vmatpush1.msra.mxu0 0.0
    %4035 = vmatprep.subr.mxu0 0.0
    %4036 = vmatpush1.msra.mxu0 0.0
    %4037 = vmatprep.subr.mxu0 0.0
    %4038 = vmatpush1.msra.mxu0 0.0
    %4039 = vmatprep.mubr.f32.mxu0 0.0
    %4040 = vmatmul.mubr.f32.gmra.mrb[0].mxu0 %v3964
    %v4041 = vpop.f32.mrb[0].mxu0
    %v4042 = vadd.f32 %v3961, %v4041
    %v4043 = vpop.f32.mrb[0].mxu0
    %4044 = vmatprep.mubr.f32.mxu0 0.0
    %4045 = vmatmul.mubr.f32.gmra.mrb[0].mxu0 %v3967
    %v4046 = vpop.f32.mrb[0].mxu0
    %v4047 = vadd.f32 %v3961, %v4046
    %v4048 = vpop.f32.mrb[0].mxu0
    %4049 = vmatprep.mubr.f32.mxu0 0.0
    %4050 = vmatmul.mubr.f32.gmra.mrb[0].mxu0 %v3970
    %v4051 = vpop.f32.mrb[0].mxu0
    %v4052 = vadd.f32 %v3961, %v4051
    %v4053 = vpop.f32.mrb[0].mxu0
    %4054 = vmatprep.mubr.f32.mxu0 0.0
    %4055 = vmatmul.mubr.f32.gmra.mrb[0].mxu0 %v3973
    %v4056 = vpop.f32.mrb[0].mxu0
    %v4057 = vadd.f32 %v3961, %v4056
    %v4058 = vpop.f32.mrb[0].mxu0
    %4059 = vdwg.mxu0
    %vm4060 = vcmask 31744
    %v4061 = vsel %vm4060, %v4042, -inf
    %v4062 = vrot.slane %v4061, 4
    %v4063 = vmax.f32 %v4061, %v4062
    %v4064 = vrot.slane %v4063, 2
    %v4065 = vmax.f32 %v4063, %v4064
    %v4066 = vrot.slane %v4065, 1
    %v4067 = vmax.f32 %v4065, %v4066
    %v4068 = vsel %vm4060, %v4047, -inf
    %v4069 = vrot.slane %v4068, 4
    %v4070 = vmax.f32 %v4068, %v4069
    %v4071 = vrot.slane %v4070, 2
    %v4072 = vmax.f32 %v4070, %v4071
    %v4073 = vrot.slane %v4072, 1
    %v4074 = vmax.f32 %v4072, %v4073
    %v4075 = vsel %vm4060, %v4052, -inf
    %v4076 = vrot.slane %v4075, 4
    %v4077 = vmax.f32 %v4075, %v4076
    %v4078 = vrot.slane %v4077, 2
    %v4079 = vmax.f32 %v4077, %v4078
    %v4080 = vrot.slane %v4079, 1
    %v4081 = vmax.f32 %v4079, %v4080
    %v4082 = vsel %vm4060, %v4057, -inf
    %v4083 = vrot.slane %v4082, 4
    %v4084 = vmax.f32 %v4082, %v4083
    %v4085 = vrot.slane %v4084, 2
    %v4086 = vmax.f32 %v4084, %v4085
    %v4087 = vrot.slane %v4086, 1
    %v4088 = vmax.f32 %v4086, %v4087
    %v4089 = vsub.f32 %v4042, %v4067
    %v4090 = vsub.f32 %v4047, %v4074
    %v4091 = vsub.f32 %v4052, %v4081
    %v4092 = vsub.f32 %v4057, %v4088
    %v4093 = vmul.f32 %v4089, 1.442695
    %v4094 = vpow.pop %v4093
    %v4095 = vmul.f32 %v4090, 1.442695
    %v4096 = vpow.pop %v4095
    %v4097 = vmul.f32 %v4091, 1.442695
    %v4098 = vpow.pop %v4097
    %v4099 = vmul.f32 %v4092, 1.442695
    %v4100 = vpow.pop %v4099
    %v4101 = vsel %vm4060, %v4094, 0.0
    %v4102 = vrot.slane %v4101, 4
    %v4103 = vadd.f32 %v4101, %v4102
    %v4104 = vrot.slane %v4103, 2
    %v4105 = vadd.f32 %v4103, %v4104
    %v4106 = vrot.slane %v4105, 1
    %v4107 = vadd.f32 %v4105, %v4106
    %v4108 = vsel %vm4060, %v4096, 0.0
    %v4109 = vrot.slane %v4108, 4
    %v4110 = vadd.f32 %v4108, %v4109
    %v4111 = vrot.slane %v4110, 2
    %v4112 = vadd.f32 %v4110, %v4111
    %v4113 = vrot.slane %v4112, 1
    %v4114 = vadd.f32 %v4112, %v4113
    %v4115 = vsel %vm4060, %v4098, 0.0
    %v4116 = vrot.slane %v4115, 4
    %v4117 = vadd.f32 %v4115, %v4116
    %v4118 = vrot.slane %v4117, 2
    %v4119 = vadd.f32 %v4117, %v4118
    %v4120 = vrot.slane %v4119, 1
    %v4121 = vadd.f32 %v4119, %v4120
    %v4122 = vsel %vm4060, %v4100, 0.0
    %v4123 = vrot.slane %v4122, 4
    %v4124 = vadd.f32 %v4122, %v4123
    %v4125 = vrot.slane %v4124, 2
    %v4126 = vadd.f32 %v4124, %v4125
    %v4127 = vrot.slane %v4126, 1
    %v4128 = vadd.f32 %v4126, %v4127
    %v4129 = vrcp.pop %v4107
    %v4130 = vrcp.pop %v4114
    %v4131 = vrcp.pop %v4121
    %v4132 = vrcp.pop %v4128
    %v4133 = vmul.f32 %v4094, %v4129
    %v4134 = vmul.f32 %v4096, %v4130
    %v4135 = vmul.f32 %v4098, %v4131
    %v4136 = vmul.f32 %v4100, %v4132
    %v4137 = vsel %vm4060, %v4133, 0.0
    %4138 = vadd.xlane.f32.xlu0 %v4137
    %v4139 = vpop.xlane.xlu0 %4138
    %v4140 = vsel %vm4060, %v4134, 0.0
    %4141 = vadd.xlane.f32.xlu0 %v4140
    %v4142 = vpop.xlane.xlu0 %4141
    %v4143 = vsel %vm4060, %v4135, 0.0
    %4144 = vadd.xlane.f32.xlu0 %v4143
    %v4145 = vpop.xlane.xlu0 %4144
    %v4146 = vsel %vm4060, %v4136, 0.0
    %4147 = vadd.xlane.f32.xlu0 %v4146
    %v4148 = vpop.xlane.xlu0 %4147
    %v4149 = vrcp.pop 4.0
    %v4150 = vmul.f32 %v4139, %v4149
    %v4151 = vmul.f32 %v4142, %v4149
    %v4152 = vmul.f32 %v4145, %v4149
    %v4153 = vmul.f32 %v4148, %v4149
    %v4154 = vmul.f32 %v4150, %v3723
    %v4155 = vmul.f32 %v4151, %v3724
    %v4156 = vmul.f32 %v4152, %v3725
    %v4157 = vmul.f32 %v4153, %v3726
    %v4158 = vsel %vm115, %v4154, 0.0
    %v4159 = vrot.slane %v4158, 4
    %v4160 = vadd.f32 %v4158, %v4159
    %v4161 = vrot.slane %v4160, 2
    %v4162 = vadd.f32 %v4160, %v4161
    %v4163 = vrot.slane %v4162, 1
    %v4164 = vadd.f32 %v4162, %v4163
    %v4165 = vsel %vm115, %v4155, 0.0
    %v4166 = vrot.slane %v4165, 4
    %v4167 = vadd.f32 %v4165, %v4166
    %v4168 = vrot.slane %v4167, 2
    %v4169 = vadd.f32 %v4167, %v4168
    %v4170 = vrot.slane %v4169, 1
    %v4171 = vadd.f32 %v4169, %v4170
    %v4172 = vsel %vm115, %v4156, 0.0
    %v4173 = vrot.slane %v4172, 4
    %v4174 = vadd.f32 %v4172, %v4173
    %v4175 = vrot.slane %v4174, 2
    %v4176 = vadd.f32 %v4174, %v4175
    %v4177 = vrot.slane %v4176, 1
    %v4178 = vadd.f32 %v4176, %v4177
    %v4179 = vsel %vm115, %v4157, 0.0
    %v4180 = vrot.slane %v4179, 4
    %v4181 = vadd.f32 %v4179, %v4180
    %v4182 = vrot.slane %v4181, 2
    %v4183 = vadd.f32 %v4181, %v4182
    %v4184 = vrot.slane %v4183, 1
    %v4185 = vadd.f32 %v4183, %v4184
    %v4186 = vmul.f32 %v4164, %v4164
    %v4187 = vmul.f32 %v4171, %v4171
    %v4188 = vmul.f32 %v4178, %v4178
    %v4189 = vmul.f32 %v4185, %v4185
    %vm4194 = vcmask 1041409
    %v4195 = vsel %vm4194, %v4187, %v4186
    %vm4196 = vcmask 1042434
    %v4197 = vsel %vm4196, %v4188, %v4195
    %vm4198 = vcmask 1043459
    %v4199 = vsel %vm4198, %v4189, %v4197
    %vm4201 = vcmask 257024
    %v4202 = vsel %vm4201, %v4199, 0.0
    %4203 = vadd.xlane.f32.xlu0 %v4202
    %v4204 = vpop.xlane.xlu0 %4203
    %v4205 = vrsqrt.pop %v4204
    %v4206 = vmul.f32 %v4204, %v4205
    %vm4207 = vcmp.eq.f32.partialorder %v4204, inf
    %v4208 = vsel %vm4207, %v4204, %v4206
    %vm4209 = vcmp.eq.f32.partialorder %v4204, 0.0
    %v4210 = vand.u32 %v4204, 2147483648
    %v4211 = vsel %vm4209, %v4210, %v4208
    %v4212 = vadd.f32 %v4211, 1e-08
    %v4214 = vrot.slane %v4212, 1
    %v4215 = vrot.slane %v4212, 2
    %v4216 = vrot.slane %v4212, 3
    %v4221 = vrcp.pop %v4212
    %v4222 = vmul.f32 %v4164, %v4221
    %v4223 = vrcp.pop %v4214
    %v4224 = vmul.f32 %v4171, %v4223
    %v4225 = vrcp.pop %v4215
    %v4226 = vmul.f32 %v4178, %v4225
    %v4227 = vrcp.pop %v4216
    %v4228 = vmul.f32 %v4185, %v4227
    %v4229 = vld [vmem:[%s20] sm:$0xff]
    %v4230 = vld [vmem:[%s20 + $0x8] sm:$0xff]
    %v4231 = vld [vmem:[%s20 + $0x10] sm:$0xff]
    %v4232 = vld [vmem:[%s20 + $0x18] sm:$0xff]
    %v4233 = vld [vmem:[%s21] sm:$0x1]
    %v4234 = vld [vmem:[%s22] sm:$0xff]
    %v4235 = vld [vmem:[%s22 + $0x8] sm:$0xff]
    %v4236 = vld [vmem:[%s22 + $0x10] sm:$0xff]
    %v4237 = vld [vmem:[%s22 + $0x18] sm:$0xff]
    %v4238 = vld [vmem:[%s23] sm:$0x1]
    %v4240 = vlaneseq
    %v4241 = vshrl.u32 %v4240, 7
    %v4242 = vsub.s32 0, %v4241
    %v4243 = vrot.slane %v4233, %v4242
    %v4246 = vsel %vm115, %v3836, 0
    %v4249 = vsel %vm115, %v3837, 0
    %v4252 = vsel %vm115, %v3838, 0
    %v4255 = vsel %vm115, %v3839, 0
    %4257 = vmatprep.subr.mxu0 0.0
    %4258 = vmatpush1.msra.mxu0 %v4229
    %4259 = vmatprep.subr.mxu0 0.0
    %4260 = vmatpush1.msra.mxu0 %v4230
    %4261 = vmatprep.subr.mxu0 0.0
    %4262 = vmatpush1.msra.mxu0 %v4231
    %4263 = vmatprep.subr.mxu0 0.0
    %4264 = vmatpush1.msra.mxu0 %v4232
    %4265 = vmatprep.subr.mxu0 0.0
    %4266 = vmatpush1.msra.mxu0 0.0
    %4267 = vmatprep.subr.mxu0 0.0
    %4268 = vmatpush1.msra.mxu0 0.0
    %4269 = vmatprep.subr.mxu0 0.0
    %4270 = vmatpush1.msra.mxu0 0.0
    %4271 = vmatprep.subr.mxu0 0.0
    %4272 = vmatpush1.msra.mxu0 0.0
    %4273 = vmatprep.subr.mxu0 0.0
    %4274 = vmatpush1.msra.mxu0 0.0
    %4275 = vmatprep.subr.mxu0 0.0
    %4276 = vmatpush1.msra.mxu0 0.0
    %4277 = vmatprep.subr.mxu0 0.0
    %4278 = vmatpush1.msra.mxu0 0.0
    %4279 = vmatprep.subr.mxu0 0.0
    %4280 = vmatpush1.msra.mxu0 0.0
    %4281 = vmatprep.subr.mxu0 0.0
    %4282 = vmatpush1.msra.mxu0 0.0
    %4283 = vmatprep.subr.mxu0 0.0
    %4284 = vmatpush1.msra.mxu0 0.0
    %4285 = vmatprep.subr.mxu0 0.0
    %4286 = vmatpush1.msra.mxu0 0.0
    %4287 = vmatprep.subr.mxu0 0.0
    %4288 = vmatpush1.msra.mxu0 0.0
    %4289 = vmatprep.subr.mxu0 0.0
    %4290 = vmatpush1.msra.mxu0 0.0
    %4291 = vmatprep.subr.mxu0 0.0
    %4292 = vmatpush1.msra.mxu0 0.0
    %4293 = vmatprep.subr.mxu0 0.0
    %4294 = vmatpush1.msra.mxu0 0.0
    %4295 = vmatprep.subr.mxu0 0.0
    %4296 = vmatpush1.msra.mxu0 0.0
    %4297 = vmatprep.subr.mxu0 0.0
    %4298 = vmatpush1.msra.mxu0 0.0
    %4299 = vmatprep.subr.mxu0 0.0
    %4300 = vmatpush1.msra.mxu0 0.0
    %4301 = vmatprep.subr.mxu0 0.0
    %4302 = vmatpush1.msra.mxu0 0.0
    %4303 = vmatprep.subr.mxu0 0.0
    %4304 = vmatpush1.msra.mxu0 0.0
    %4305 = vmatprep.subr.mxu0 0.0
    %4306 = vmatpush1.msra.mxu0 0.0
    %4307 = vmatprep.subr.mxu0 0.0
    %4308 = vmatpush1.msra.mxu0 0.0
    %4309 = vmatprep.subr.mxu0 0.0
    %4310 = vmatpush1.msra.mxu0 0.0
    %4311 = vmatprep.subr.mxu0 0.0
    %4312 = vmatpush1.msra.mxu0 0.0
    %4313 = vmatprep.subr.mxu0 0.0
    %4314 = vmatpush1.msra.mxu0 0.0
    %4315 = vmatprep.subr.mxu0 0.0
    %4316 = vmatpush1.msra.mxu0 0.0
    %4317 = vmatprep.subr.mxu0 0.0
    %4318 = vmatpush1.msra.mxu0 0.0
    %4319 = vmatprep.subr.mxu0 0.0
    %4320 = vmatpush1.msra.mxu0 0.0
    %4321 = vmatprep.mubr.f32.mxu0 0.0
    %4322 = vmatmul.mubr.f32.gmra.mrb[0].mxu0 %v4246
    %v4323 = vpop.f32.mrb[0].mxu0
    %v4324 = vadd.f32 %v4243, %v4323
    %v4325 = vpop.f32.mrb[0].mxu0
    %4326 = vmatprep.mubr.f32.mxu0 0.0
    %4327 = vmatmul.mubr.f32.gmra.mrb[0].mxu0 %v4249
    %v4328 = vpop.f32.mrb[0].mxu0
    %v4329 = vadd.f32 %v4243, %v4328
    %v4330 = vpop.f32.mrb[0].mxu0
    %4331 = vmatprep.mubr.f32.mxu0 0.0
    %4332 = vmatmul.mubr.f32.gmra.mrb[0].mxu0 %v4252
    %v4333 = vpop.f32.mrb[0].mxu0
    %v4334 = vadd.f32 %v4243, %v4333
    %v4335 = vpop.f32.mrb[0].mxu0
    %4336 = vmatprep.mubr.f32.mxu0 0.0
    %4337 = vmatmul.mubr.f32.gmra.mrb[0].mxu0 %v4255
    %v4338 = vpop.f32.mrb[0].mxu0
    %v4339 = vadd.f32 %v4243, %v4338
    %v4340 = vpop.f32.mrb[0].mxu0
    %4341 = vdwg.mxu0
    %v4342 = vmax.f32 %v4324, 0.0
    %v4343 = vmax.f32 %v4329, 0.0
    %v4344 = vmax.f32 %v4334, 0.0
    %v4345 = vmax.f32 %v4339, 0.0
    %v4347 = vlaneseq
    %v4348 = vshrl.u32 %v4347, 7
    %v4349 = vsub.s32 0, %v4348
    %v4350 = vrot.slane %v4238, %v4349
    %v4353 = vsel %vm115, %v4342, 0
    %v4356 = vsel %vm115, %v4343, 0
    %v4359 = vsel %vm115, %v4344, 0
    %v4362 = vsel %vm115, %v4345, 0
    %4364 = vmatprep.subr.mxu0 0.0
    %4365 = vmatpush1.msra.mxu0 %v4234
    %4366 = vmatprep.subr.mxu0 0.0
    %4367 = vmatpush1.msra.mxu0 %v4235
    %4368 = vmatprep.subr.mxu0 0.0
    %4369 = vmatpush1.msra.mxu0 %v4236
    %4370 = vmatprep.subr.mxu0 0.0
    %4371 = vmatpush1.msra.mxu0 %v4237
    %4372 = vmatprep.subr.mxu0 0.0
    %4373 = vmatpush1.msra.mxu0 0.0
    %4374 = vmatprep.subr.mxu0 0.0
    %4375 = vmatpush1.msra.mxu0 0.0
    %4376 = vmatprep.subr.mxu0 0.0
    %4377 = vmatpush1.msra.mxu0 0.0
    %4378 = vmatprep.subr.mxu0 0.0
    %4379 = vmatpush1.msra.mxu0 0.0
    %4380 = vmatprep.subr.mxu0 0.0
    %4381 = vmatpush1.msra.mxu0 0.0
    %4382 = vmatprep.subr.mxu0 0.0
    %4383 = vmatpush1.msra.mxu0 0.0
    %4384 = vmatprep.subr.mxu0 0.0
    %4385 = vmatpush1.msra.mxu0 0.0
    %4386 = vmatprep.subr.mxu0 0.0
    %4387 = vmatpush1.msra.mxu0 0.0
    %4388 = vmatprep.subr.mxu0 0.0
    %4389 = vmatpush1.msra.mxu0 0.0
    %4390 = vmatprep.subr.mxu0 0.0
    %4391 = vmatpush1.msra.mxu0 0.0
    %4392 = vmatprep.subr.mxu0 0.0
    %4393 = vmatpush1.msra.mxu0 0.0
    %4394 = vmatprep.subr.mxu0 0.0
    %4395 = vmatpush1.msra.mxu0 0.0
    %4396 = vmatprep.subr.mxu0 0.0
    %4397 = vmatpush1.msra.mxu0 0.0
    %4398 = vmatprep.subr.mxu0 0.0
    %4399 = vmatpush1.msra.mxu0 0.0
    %4400 = vmatprep.subr.mxu0 0.0
    %4401 = vmatpush1.msra.mxu0 0.0
    %4402 = vmatprep.subr.mxu0 0.0
    %4403 = vmatpush1.msra.mxu0 0.0
    %4404 = vmatprep.subr.mxu0 0.0
    %4405 = vmatpush1.msra.mxu0 0.0
    %4406 = vmatprep.subr.mxu0 0.0
    %4407 = vmatpush1.msra.mxu0 0.0
    %4408 = vmatprep.subr.mxu0 0.0
    %4409 = vmatpush1.msra.mxu0 0.0
    %4410 = vmatprep.subr.mxu0 0.0
    %4411 = vmatpush1.msra.mxu0 0.0
    %4412 = vmatprep.subr.mxu0 0.0
    %4413 = vmatpush1.msra.mxu0 0.0
    %4414 = vmatprep.subr.mxu0 0.0
    %4415 = vmatpush1.msra.mxu0 0.0
    %4416 = vmatprep.subr.mxu0 0.0
    %4417 = vmatpush1.msra.mxu0 0.0
    %4418 = vmatprep.subr.mxu0 0.0
    %4419 = vmatpush1.msra.mxu0 0.0
    %4420 = vmatprep.subr.mxu0 0.0
    %4421 = vmatpush1.msra.mxu0 0.0
    %4422 = vmatprep.subr.mxu0 0.0
    %4423 = vmatpush1.msra.mxu0 0.0
    %4424 = vmatprep.subr.mxu0 0.0
    %4425 = vmatpush1.msra.mxu0 0.0
    %4426 = vmatprep.subr.mxu0 0.0
    %4427 = vmatpush1.msra.mxu0 0.0
    %4428 = vmatprep.mubr.f32.mxu0 0.0
    %4429 = vmatmul.mubr.f32.gmra.mrb[0].mxu0 %v4353
    %v4430 = vpop.f32.mrb[0].mxu0
    %v4431 = vadd.f32 %v4350, %v4430
    %v4432 = vpop.f32.mrb[0].mxu0
    %4433 = vmatprep.mubr.f32.mxu0 0.0
    %4434 = vmatmul.mubr.f32.gmra.mrb[0].mxu0 %v4356
    %v4435 = vpop.f32.mrb[0].mxu0
    %v4436 = vadd.f32 %v4350, %v4435
    %v4437 = vpop.f32.mrb[0].mxu0
    %4438 = vmatprep.mubr.f32.mxu0 0.0
    %4439 = vmatmul.mubr.f32.gmra.mrb[0].mxu0 %v4359
    %v4440 = vpop.f32.mrb[0].mxu0
    %v4441 = vadd.f32 %v4350, %v4440
    %v4442 = vpop.f32.mrb[0].mxu0
    %4443 = vmatprep.mubr.f32.mxu0 0.0
    %4444 = vmatmul.mubr.f32.gmra.mrb[0].mxu0 %v4362
    %v4445 = vpop.f32.mrb[0].mxu0
    %v4446 = vadd.f32 %v4350, %v4445
    %v4447 = vpop.f32.mrb[0].mxu0
    %4448 = vdwg.mxu0
    %v4449 = vsel %vm4060, %v4431, -inf
    %v4450 = vrot.slane %v4449, 4
    %v4451 = vmax.f32 %v4449, %v4450
    %v4452 = vrot.slane %v4451, 2
    %v4453 = vmax.f32 %v4451, %v4452
    %v4454 = vrot.slane %v4453, 1
    %v4455 = vmax.f32 %v4453, %v4454
    %v4456 = vsel %vm4060, %v4436, -inf
    %v4457 = vrot.slane %v4456, 4
    %v4458 = vmax.f32 %v4456, %v4457
    %v4459 = vrot.slane %v4458, 2
    %v4460 = vmax.f32 %v4458, %v4459
    %v4461 = vrot.slane %v4460, 1
    %v4462 = vmax.f32 %v4460, %v4461
    %v4463 = vsel %vm4060, %v4441, -inf
    %v4464 = vrot.slane %v4463, 4
    %v4465 = vmax.f32 %v4463, %v4464
    %v4466 = vrot.slane %v4465, 2
    %v4467 = vmax.f32 %v4465, %v4466
    %v4468 = vrot.slane %v4467, 1
    %v4469 = vmax.f32 %v4467, %v4468
    %v4470 = vsel %vm4060, %v4446, -inf
    %v4471 = vrot.slane %v4470, 4
    %v4472 = vmax.f32 %v4470, %v4471
    %v4473 = vrot.slane %v4472, 2
    %v4474 = vmax.f32 %v4472, %v4473
    %v4475 = vrot.slane %v4474, 1
    %v4476 = vmax.f32 %v4474, %v4475
    %v4477 = vsub.f32 %v4431, %v4455
    %v4478 = vsub.f32 %v4436, %v4462
    %v4479 = vsub.f32 %v4441, %v4469
    %v4480 = vsub.f32 %v4446, %v4476
    %v4481 = vmul.f32 %v4477, 1.442695
    %v4482 = vpow.pop %v4481
    %v4483 = vmul.f32 %v4478, 1.442695
    %v4484 = vpow.pop %v4483
    %v4485 = vmul.f32 %v4479, 1.442695
    %v4486 = vpow.pop %v4485
    %v4487 = vmul.f32 %v4480, 1.442695
    %v4488 = vpow.pop %v4487
    %v4489 = vsel %vm4060, %v4482, 0.0
    %v4490 = vrot.slane %v4489, 4
    %v4491 = vadd.f32 %v4489, %v4490
    %v4492 = vrot.slane %v4491, 2
    %v4493 = vadd.f32 %v4491, %v4492
    %v4494 = vrot.slane %v4493, 1
    %v4495 = vadd.f32 %v4493, %v4494
    %v4496 = vsel %vm4060, %v4484, 0.0
    %v4497 = vrot.slane %v4496, 4
    %v4498 = vadd.f32 %v4496, %v4497
    %v4499 = vrot.slane %v4498, 2
    %v4500 = vadd.f32 %v4498, %v4499
    %v4501 = vrot.slane %v4500, 1
    %v4502 = vadd.f32 %v4500, %v4501
    %v4503 = vsel %vm4060, %v4486, 0.0
    %v4504 = vrot.slane %v4503, 4
    %v4505 = vadd.f32 %v4503, %v4504
    %v4506 = vrot.slane %v4505, 2
    %v4507 = vadd.f32 %v4505, %v4506
    %v4508 = vrot.slane %v4507, 1
    %v4509 = vadd.f32 %v4507, %v4508
    %v4510 = vsel %vm4060, %v4488, 0.0
    %v4511 = vrot.slane %v4510, 4
    %v4512 = vadd.f32 %v4510, %v4511
    %v4513 = vrot.slane %v4512, 2
    %v4514 = vadd.f32 %v4512, %v4513
    %v4515 = vrot.slane %v4514, 1
    %v4516 = vadd.f32 %v4514, %v4515
    %v4517 = vrcp.pop %v4495
    %v4518 = vrcp.pop %v4502
    %v4519 = vrcp.pop %v4509
    %v4520 = vrcp.pop %v4516
    %v4521 = vmul.f32 %v4482, %v4517
    %v4522 = vmul.f32 %v4484, %v4518
    %v4523 = vmul.f32 %v4486, %v4519
    %v4524 = vmul.f32 %v4488, %v4520
    %v4525 = vsel %vm4060, %v4521, 0.0
    %4526 = vadd.xlane.f32.xlu0 %v4525
    %v4527 = vpop.xlane.xlu0 %4526
    %v4528 = vsel %vm4060, %v4522, 0.0
    %4529 = vadd.xlane.f32.xlu0 %v4528
    %v4530 = vpop.xlane.xlu0 %4529
    %v4531 = vsel %vm4060, %v4523, 0.0
    %4532 = vadd.xlane.f32.xlu0 %v4531
    %v4533 = vpop.xlane.xlu0 %4532
    %v4534 = vsel %vm4060, %v4524, 0.0
    %4535 = vadd.xlane.f32.xlu0 %v4534
    %v4536 = vpop.xlane.xlu0 %4535
    %v4537 = vmul.f32 %v4527, %v4149
    %v4538 = vmul.f32 %v4530, %v4149
    %v4539 = vmul.f32 %v4533, %v4149
    %v4540 = vmul.f32 %v4536, %v4149
    %v4541 = vmul.f32 %v4537, %v3836
    %v4542 = vmul.f32 %v4538, %v3837
    %v4543 = vmul.f32 %v4539, %v3838
    %v4544 = vmul.f32 %v4540, %v3839
    %v4545 = vsel %vm115, %v4541, 0.0
    %v4546 = vrot.slane %v4545, 4
    %v4547 = vadd.f32 %v4545, %v4546
    %v4548 = vrot.slane %v4547, 2
    %v4549 = vadd.f32 %v4547, %v4548
    %v4550 = vrot.slane %v4549, 1
    %v4551 = vadd.f32 %v4549, %v4550
    %v4552 = vsel %vm115, %v4542, 0.0
    %v4553 = vrot.slane %v4552, 4
    %v4554 = vadd.f32 %v4552, %v4553
    %v4555 = vrot.slane %v4554, 2
    %v4556 = vadd.f32 %v4554, %v4555
    %v4557 = vrot.slane %v4556, 1
    %v4558 = vadd.f32 %v4556, %v4557
    %v4559 = vsel %vm115, %v4543, 0.0
    %v4560 = vrot.slane %v4559, 4
    %v4561 = vadd.f32 %v4559, %v4560
    %v4562 = vrot.slane %v4561, 2
    %v4563 = vadd.f32 %v4561, %v4562
    %v4564 = vrot.slane %v4563, 1
    %v4565 = vadd.f32 %v4563, %v4564
    %v4566 = vsel %vm115, %v4544, 0.0
    %v4567 = vrot.slane %v4566, 4
    %v4568 = vadd.f32 %v4566, %v4567
    %v4569 = vrot.slane %v4568, 2
    %v4570 = vadd.f32 %v4568, %v4569
    %v4571 = vrot.slane %v4570, 1
    %v4572 = vadd.f32 %v4570, %v4571
    %v4573 = vmul.f32 %v4551, %v4551
    %v4574 = vmul.f32 %v4558, %v4558
    %v4575 = vmul.f32 %v4565, %v4565
    %v4576 = vmul.f32 %v4572, %v4572
    %v4581 = vsel %vm4194, %v4574, %v4573
    %v4582 = vsel %vm4196, %v4575, %v4581
    %v4583 = vsel %vm4198, %v4576, %v4582
    %v4585 = vsel %vm4201, %v4583, 0.0
    %4586 = vadd.xlane.f32.xlu0 %v4585
    %v4587 = vpop.xlane.xlu0 %4586
    %v4588 = vrsqrt.pop %v4587
    %v4589 = vmul.f32 %v4587, %v4588
    %vm4590 = vcmp.eq.f32.partialorder %v4587, inf
    %v4591 = vsel %vm4590, %v4587, %v4589
    %vm4592 = vcmp.eq.f32.partialorder %v4587, 0.0
    %v4593 = vand.u32 %v4587, 2147483648
    %v4594 = vsel %vm4592, %v4593, %v4591
    %v4595 = vadd.f32 %v4594, 1e-08
    %v4597 = vrot.slane %v4595, 1
    %v4598 = vrot.slane %v4595, 2
    %v4599 = vrot.slane %v4595, 3
    %v4604 = vrcp.pop %v4595
    %v4605 = vmul.f32 %v4551, %v4604
    %v4606 = vrcp.pop %v4597
    %v4607 = vmul.f32 %v4558, %v4606
    %v4608 = vrcp.pop %v4598
    %v4609 = vmul.f32 %v4565, %v4608
    %v4610 = vrcp.pop %v4599
    %v4611 = vmul.f32 %v4572, %v4610
    %v4616 = vrot.slane %v4224, 7
    %v4617 = vsel %vm4194, %v4616, %v4222
    %v4618 = vrot.slane %v4226, 6
    %v4619 = vsel %vm4196, %v4618, %v4617
    %v4620 = vrot.slane %v4228, 5
    %v4621 = vsel %vm4198, %v4620, %v4619
    %v4627 = vrot.slane %v4607, 7
    %v4628 = vsel %vm4194, %v4627, %v4605
    %v4629 = vrot.slane %v4609, 6
    %v4630 = vsel %vm4196, %v4629, %v4628
    %v4631 = vrot.slane %v4611, 5
    %v4632 = vsel %vm4198, %v4631, %v4630
    %4633 = vrot.lane.b32.xlu0 %v4632, 32
    %v4634 = vpop.permute.xlu0 %4633
    %v4636 = vsel %vm115, %v4621, %v4634
    %v4637 = vld [vmem:[%s12] sm:$0xff]
    %v4638 = vld [vmem:[%s12 + $0x8] sm:$0xff]
    %v4639 = vld [vmem:[%s12 + $0x10] sm:$0xff]
    %v4640 = vld [vmem:[%s12 + $0x18] sm:$0xff]
    %v4641 = vld [vmem:[%s12 + $0x20] sm:$0xff]
    %v4642 = vld [vmem:[%s12 + $0x28] sm:$0xff]
    %v4643 = vld [vmem:[%s12 + $0x30] sm:$0xff]
    %v4644 = vld [vmem:[%s12 + $0x38] sm:$0xff]
    %v4645 = vld [vmem:[%s13] sm:$0x1]
    %v4647 = vlaneseq
    %v4648 = vshrl.u32 %v4647, 7
    %v4649 = vsub.s32 0, %v4648
    %v4650 = vrot.slane %v4645, %v4649
    %v4653 = vsel %vm3621, %v4636, 0
    %4655 = vmatprep.subr.mxu0 0.0
    %4656 = vmatpush1.msra.mxu0 %v4637
    %4657 = vmatprep.subr.mxu0 0.0
    %4658 = vmatpush1.msra.mxu0 %v4638
    %4659 = vmatprep.subr.mxu0 0.0
    %4660 = vmatpush1.msra.mxu0 %v4639
    %4661 = vmatprep.subr.mxu0 0.0
    %4662 = vmatpush1.msra.mxu0 %v4640
    %4663 = vmatprep.subr.mxu0 0.0
    %4664 = vmatpush1.msra.mxu0 %v4641
    %4665 = vmatprep.subr.mxu0 0.0
    %4666 = vmatpush1.msra.mxu0 %v4642
    %4667 = vmatprep.subr.mxu0 0.0
    %4668 = vmatpush1.msra.mxu0 %v4643
    %4669 = vmatprep.subr.mxu0 0.0
    %4670 = vmatpush1.msra.mxu0 %v4644
    %4671 = vmatprep.subr.mxu0 0.0
    %4672 = vmatpush1.msra.mxu0 0.0
    %4673 = vmatprep.subr.mxu0 0.0
    %4674 = vmatpush1.msra.mxu0 0.0
    %4675 = vmatprep.subr.mxu0 0.0
    %4676 = vmatpush1.msra.mxu0 0.0
    %4677 = vmatprep.subr.mxu0 0.0
    %4678 = vmatpush1.msra.mxu0 0.0
    %4679 = vmatprep.subr.mxu0 0.0
    %4680 = vmatpush1.msra.mxu0 0.0
    %4681 = vmatprep.subr.mxu0 0.0
    %4682 = vmatpush1.msra.mxu0 0.0
    %4683 = vmatprep.subr.mxu0 0.0
    %4684 = vmatpush1.msra.mxu0 0.0
    %4685 = vmatprep.subr.mxu0 0.0
    %4686 = vmatpush1.msra.mxu0 0.0
    %4687 = vmatprep.subr.mxu0 0.0
    %4688 = vmatpush1.msra.mxu0 0.0
    %4689 = vmatprep.subr.mxu0 0.0
    %4690 = vmatpush1.msra.mxu0 0.0
    %4691 = vmatprep.subr.mxu0 0.0
    %4692 = vmatpush1.msra.mxu0 0.0
    %4693 = vmatprep.subr.mxu0 0.0
    %4694 = vmatpush1.msra.mxu0 0.0
    %4695 = vmatprep.subr.mxu0 0.0
    %4696 = vmatpush1.msra.mxu0 0.0
    %4697 = vmatprep.subr.mxu0 0.0
    %4698 = vmatpush1.msra.mxu0 0.0
    %4699 = vmatprep.subr.mxu0 0.0
    %4700 = vmatpush1.msra.mxu0 0.0
    %4701 = vmatprep.subr.mxu0 0.0
    %4702 = vmatpush1.msra.mxu0 0.0
    %4703 = vmatprep.subr.mxu0 0.0
    %4704 = vmatpush1.msra.mxu0 0.0
    %4705 = vmatprep.subr.mxu0 0.0
    %4706 = vmatpush1.msra.mxu0 0.0
    %4707 = vmatprep.subr.mxu0 0.0
    %4708 = vmatpush1.msra.mxu0 0.0
    %4709 = vmatprep.subr.mxu0 0.0
    %4710 = vmatpush1.msra.mxu0 0.0
    %4711 = vmatprep.subr.mxu0 0.0
    %4712 = vmatpush1.msra.mxu0 0.0
    %4713 = vmatprep.subr.mxu0 0.0
    %4714 = vmatpush1.msra.mxu0 0.0
    %4715 = vmatprep.subr.mxu0 0.0
    %4716 = vmatpush1.msra.mxu0 0.0
    %4717 = vmatprep.subr.mxu0 0.0
    %4718 = vmatpush1.msra.mxu0 0.0
    %4719 = vmatprep.mubr.f32.mxu0 0.0
    %4720 = vmatmul.mubr.f32.gmra.mrb[0].mxu0 %v4653
    %v4721 = vpop.f32.mrb[0].mxu0
    %v4722 = vadd.f32 %v4650, %v4721
    %v4723 = vpop.f32.mrb[0].mxu0
    %4724 = vdwg.mxu0
    %v4725 = vmax.f32 %v4722, 0.0
    %v4726 = vld [vmem:[%s14] sm:$0xff]
    %v4727 = vld [vmem:[%s14 + $0x8] sm:$0xff]
    %v4728 = vld [vmem:[%s14 + $0x10] sm:$0xff]
    %v4729 = vld [vmem:[%s14 + $0x18] sm:$0xff]
    %v4730 = vld [vmem:[#allocation2] sm:$0x1]
    %v4732 = vlaneseq
    %v4733 = vshrl.u32 %v4732, 7
    %v4734 = vsub.s32 0, %v4733
    %v4735 = vrot.slane %v4730, %v4734
    %v4738 = vsel %vm115, %v4725, 0
    %4740 = vmatprep.subr.mxu0 0.0
    %4741 = vmatpush1.msra.mxu0 %v4726
    %4742 = vmatprep.subr.mxu0 0.0
    %4743 = vmatpush1.msra.mxu0 %v4727
    %4744 = vmatprep.subr.mxu0 0.0
    %4745 = vmatpush1.msra.mxu0 %v4728
    %4746 = vmatprep.subr.mxu0 0.0
    %4747 = vmatpush1.msra.mxu0 %v4729
    %4748 = vmatprep.subr.mxu0 0.0
    %4749 = vmatpush1.msra.mxu0 0.0
    %4750 = vmatprep.subr.mxu0 0.0
    %4751 = vmatpush1.msra.mxu0 0.0
    %4752 = vmatprep.subr.mxu0 0.0
    %4753 = vmatpush1.msra.mxu0 0.0
    %4754 = vmatprep.subr.mxu0 0.0
    %4755 = vmatpush1.msra.mxu0 0.0
    %4756 = vmatprep.subr.mxu0 0.0
    %4757 = vmatpush1.msra.mxu0 0.0
    %4758 = vmatprep.subr.mxu0 0.0
    %4759 = vmatpush1.msra.mxu0 0.0
    %4760 = vmatprep.subr.mxu0 0.0
    %4761 = vmatpush1.msra.mxu0 0.0
    %4762 = vmatprep.subr.mxu0 0.0
    %4763 = vmatpush1.msra.mxu0 0.0
    %4764 = vmatprep.subr.mxu0 0.0
    %4765 = vmatpush1.msra.mxu0 0.0
    %4766 = vmatprep.subr.mxu0 0.0
    %4767 = vmatpush1.msra.mxu0 0.0
    %4768 = vmatprep.subr.mxu0 0.0
    %4769 = vmatpush1.msra.mxu0 0.0
    %4770 = vmatprep.subr.mxu0 0.0
    %4771 = vmatpush1.msra.mxu0 0.0
    %4772 = vmatprep.subr.mxu0 0.0
    %4773 = vmatpush1.msra.mxu0 0.0
    %4774 = vmatprep.subr.mxu0 0.0
    %4775 = vmatpush1.msra.mxu0 0.0
    %4776 = vmatprep.subr.mxu0 0.0
    %4777 = vmatpush1.msra.mxu0 0.0
    %4778 = vmatprep.subr.mxu0 0.0
    %4779 = vmatpush1.msra.mxu0 0.0
    %4780 = vmatprep.subr.mxu0 0.0
    %4781 = vmatpush1.msra.mxu0 0.0
    %4782 = vmatprep.subr.mxu0 0.0
    %4783 = vmatpush1.msra.mxu0 0.0
    %4784 = vmatprep.subr.mxu0 0.0
    %4785 = vmatpush1.msra.mxu0 0.0
    %4786 = vmatprep.subr.mxu0 0.0
    %4787 = vmatpush1.msra.mxu0 0.0
    %4788 = vmatprep.subr.mxu0 0.0
    %4789 = vmatpush1.msra.mxu0 0.0
    %4790 = vmatprep.subr.mxu0 0.0
    %4791 = vmatpush1.msra.mxu0 0.0
    %4792 = vmatprep.subr.mxu0 0.0
    %4793 = vmatpush1.msra.mxu0 0.0
    %4794 = vmatprep.subr.mxu0 0.0
    %4795 = vmatpush1.msra.mxu0 0.0
    %4796 = vmatprep.subr.mxu0 0.0
    %4797 = vmatpush1.msra.mxu0 0.0
    %4798 = vmatprep.subr.mxu0 0.0
    %4799 = vmatpush1.msra.mxu0 0.0
    %4800 = vmatprep.subr.mxu0 0.0
    %4801 = vmatpush1.msra.mxu0 0.0
    %4802 = vmatprep.subr.mxu0 0.0
    %4803 = vmatpush1.msra.mxu0 0.0
    %4804 = vmatprep.mubr.f32.mxu0 0.0
    %4805 = vmatmul.mubr.f32.gmra.mrb[0].mxu0 %v4738
    %v4806 = vpop.f32.mrb[0].mxu0
    %v4807 = vadd.f32 %v4735, %v4806
    %v4808 = vpop.f32.mrb[0].mxu0
    %4809 = vdwg.mxu0
    %v4810 = vsub.f32 0.0, %v4807
    %v4811 = vmul.f32 %v4810, 1.442695
    %v4812 = vpow.pop %v4811
    %v4813 = vadd.f32 %v4812, 1.0
    %v4814 = vrcp.pop %v4813
    %v4815 = vmul.f32 1.0, %v4814
    %vm4816 = vcmask 3072
    %4817 = vst.msk [vmem:[%s24] sm:$0xf] %vm4816, %v4815
    // Predicated region
    $region106: #{tpu_custom_call.1} parent=1 // pred_check
      _
    $region107: #{tpu_custom_call.1} parent=1 // pred_check_branch
      %4819 = sbr.rel (0) target = $region109
    $region108: #{tpu_custom_call.1} parent=1 // pred_region
      _
    $region109: #{tpu_custom_call.1} parent=1 // pred_fallthru
      _
    // Predicated region
    $region110: #{tpu_custom_call.1} parent=1 // pred_check
      _
    $region111: #{tpu_custom_call.1} parent=1 // pred_check_branch
      %4821 = sbr.rel (0) target = $region113
    $region112: #{tpu_custom_call.1} parent=1 // pred_region
      _
    $region113: #{tpu_custom_call.1} parent=1 // pred_fallthru
      _
    %4822 = vsyncpa [#allocation4], 1
    %4823 = vsyncpa [#allocation6], 1

</llo_original>
